<compile_context>
chip_gen: v5e
topology: v5e:2x2
jax: 0.10.0
libtpu: 0.0.40
codegen_flags: <defaults>
</compile_context>

<pallas_src>
import jax
import jax.numpy as jnp
from jax import lax
from jax.experimental import pallas as pl
from jax.experimental.pallas import tpu as pltpu

# ---- config (mirrors the repo's `config` module, kept small) ----------------
EMB_SIZE = 32          # config.embedding_dim
HIDDEN_SIZE = 32       # config.encoder_hdn_size
_LANE = 128            # vocab padding target -> lane-dense stores / MXU tiles
_NEG_INF = -1e9

_VMEM = pl.BlockSpec(memory_space=pltpu.MemorySpace.VMEM)


def _round_up(n, m):
    return ((n + m - 1) // m) * m


def _gru_cell(x, h, wih, whh, bih, bhh):
    """3-gate GRU cell (gate order r, z, n).

    Weights are gate-major: wih/whh have shape (3, in_dim, H) so gate
    extraction is a tile-aligned leading-axis index instead of a sub-128-lane
    slice of a fused (in, 3H) matmul result.
    """
    f32 = jnp.float32
    r = jax.nn.sigmoid(
        jnp.dot(x, wih[0], preferred_element_type=f32) + bih[0]
        + jnp.dot(h, whh[0], preferred_element_type=f32) + bhh[0])
    z = jax.nn.sigmoid(
        jnp.dot(x, wih[1], preferred_element_type=f32) + bih[1]
        + jnp.dot(h, whh[1], preferred_element_type=f32) + bhh[1])
    n = jnp.tanh(
        jnp.dot(x, wih[2], preferred_element_type=f32) + bih[2]
        + r * (jnp.dot(h, whh[2], preferred_element_type=f32) + bhh[2]))
    return (1.0 - z) * n + z * h


# =============================================================================
# Kernel 1: both GRU encoders (embedding + recurrence), grid=(2,) "parallel"
# =============================================================================
def _encoder_kernel(tok_ref, mask_ref, emb_ref, wih_ref, whh_ref,
                    bih_ref, bhh_ref, out_ref, ht_ref):
    # tok_ref : (1, T*B, 1) int32      token ids, row index = t*B + b
    # mask_ref: (1, T, B, 1) f32       1.0 where t < seq_len else 0.0
    # emb_ref : (1, Vpad, E)           zero-padded embedding table
    # wih_ref : (1, 3, E, H)  whh_ref: (1, 3, H, H)  bih/bhh: (1, 3, 1, H)
    # out_ref : (1, B, T, H)           per-step (masked) outputs
    # ht_ref  : (1, B, H)              final hidden at each true length
    T = mask_ref.shape[1]
    B = mask_ref.shape[2]
    H = ht_ref.shape[2]
    V = emb_ref.shape[1]

    tok = tok_ref[0]                                        # (T*B, 1) int32
    emb = emb_ref[0]                                        # (V, E)
    v_iota = lax.broadcasted_iota(jnp.int32, (T * B, V), 1)
    onehot = (v_iota == tok).astype(jnp.float32)            # (T*B, V)
    x_emb = jnp.dot(onehot, emb, preferred_element_type=jnp.float32)  # (T*B, E)

    wih = wih_ref[0]
    whh = whh_ref[0]
    bih = bih_ref[0]
    bhh = bhh_ref[0]

    h = jnp.zeros((B, H), dtype=jnp.float32)
    # T is small and static -> fully unrolled recurrence (LLO can interleave
    # the per-step MXU / EUP / store work across steps).
    for t in range(T):
        x_t = x_emb[t * B:(t + 1) * B, :]                   # (B, E)
        m_t = mask_ref[0, t]                                # (B, 1)
        h_cand = _gru_cell(x_t, h, wih, whh, bih, bhh)
        # packed-sequence semantics: freeze hidden past the true length,
        # zero-out padded output positions (like pad_packed_sequence).
        h = m_t * h_cand + (1.0 - m_t) * h
        out_ref[0, :, t, :] = (m_t * h).astype(out_ref.dtype)
    ht_ref[0] = h.astype(ht_ref.dtype)


def encoders_fused(tok_flat, step_mask, emb, wih, whh, bih, bhh):
    _, TB, _ = tok_flat.shape
    _, T, B, _ = step_mask.shape
    V, E = emb.shape[1], emb.shape[2]
    H = whh.shape[-1]
    return pl.pallas_call(
        _encoder_kernel,
        out_shape=(jax.ShapeDtypeStruct((2, B, T, H), jnp.float32),
                   jax.ShapeDtypeStruct((2, B, H), jnp.float32)),
        grid=(2,),
        in_specs=[
            pl.BlockSpec((1, TB, 1), lambda i: (i, 0, 0)),
            pl.BlockSpec((1, T, B, 1), lambda i: (i, 0, 0, 0)),
            pl.BlockSpec((1, V, E), lambda i: (i, 0, 0)),
            pl.BlockSpec((1, 3, E, H), lambda i: (i, 0, 0, 0)),
            pl.BlockSpec((1, 3, H, H), lambda i: (i, 0, 0, 0)),
            pl.BlockSpec((1, 3, 1, H), lambda i: (i, 0, 0, 0)),
            pl.BlockSpec((1, 3, 1, H), lambda i: (i, 0, 0, 0)),
        ],
        out_specs=(pl.BlockSpec((1, B, T, H), lambda i: (i, 0, 0, 0)),
                   pl.BlockSpec((1, B, H), lambda i: (i, 0, 0))),
        compiler_params=pltpu.CompilerParams(
            dimension_semantics=("parallel",)),   # v7x: one encoder per TC
    )(tok_flat, step_mask, emb, wih, whh, bih, bhh)


# =============================================================================
# Kernel 2: hidden_merge + fused greedy decoder loop (single pallas_call)
# =============================================================================
def _decoder_kernel(enc_ref, ht_ref, bias_ref, mw_ref, mb_ref, nlemb_ref,
                    wih_ref, whh_ref, bih_ref, bhh_ref, ow_ref, ob_ref,
                    bos_ref, out_ref):
    # enc_ref : (2, B, T, H)   bias_ref: (2, B, T)   ht_ref: (2, B, H)
    # nlemb_ref: (Vpad, E)     ow_ref: (H, Vpad)     ob_ref: (1, Vpad)
    # bos_ref : (B, Vpad) one-hot of BOS             out_ref: (T_dec, B, Vpad)
    f32 = jnp.float32
    B = ht_ref.shape[1]
    T_dec = out_ref.shape[0]
    VPAD = out_ref.shape[2]

    key_enc = enc_ref[0]                     # (B, T, H)
    sbt_enc = enc_ref[1]
    key_bias = bias_ref[0]                   # (B, T)   0 / -1e9
    sbt_bias = bias_ref[1]
    nl_emb = nlemb_ref[...]
    wih = wih_ref[...]
    whh = whh_ref[...]
    bih = bih_ref[...]
    bhh = bhh_ref[...]
    ow = ow_ref[...]
    ob = ob_ref[...]

    # hidden_merge_layer + ReLU on concatenated final hidden states
    merged_in = jnp.concatenate([ht_ref[0], ht_ref[1]], axis=1)   # (B, 2H)
    h0 = jnp.maximum(
        jnp.dot(merged_in, mw_ref[...], preferred_element_type=f32)
        + mb_ref[...], 0.0)

    v_iota = lax.broadcasted_iota(f32, (B, VPAD), 1)   # hoisted out of loop

    def attend(enc, bias, h):
        # lane-major (B, T) scores; softmax reduce along last (lane) axis;
        # length mask applied as an additive -1e9 bias before the softmax.
        scores = jnp.einsum('bth,bh->bt', enc, h,
                            preferred_element_type=f32) + bias
        m = jnp.max(scores, axis=1, keepdims=True)
        e = jnp.exp(scores - m)
        alpha = e / jnp.sum(e, axis=1, keepdims=True)
        return jnp.einsum('bt,bth->bh', alpha, enc,
                          preferred_element_type=f32)

    def step(t, carry):
        h, oh = carry                                   # oh: (B, Vpad) one-hot
        emb = jnp.dot(oh, nl_emb, preferred_element_type=f32)      # (B, E)
        ctx_k = attend(key_enc, key_bias, h)
        ctx_s = attend(sbt_enc, sbt_bias, h)
        x = jnp.concatenate([emb, ctx_k, ctx_s], axis=1)            # (B, E+2H)
        h_new = _gru_cell(x, h, wih, whh, bih, bhh)

        # padded vocab lanes carry bias -1e9 -> identical log_softmax / argmax
        logits = jnp.dot(h_new, ow, preferred_element_type=f32) + ob
        mx = jnp.max(logits, axis=1, keepdims=True)
        shifted = logits - mx
        logp = shifted - jnp.log(jnp.sum(jnp.exp(shifted), axis=1,
                                         keepdims=True))
        out_ref[t] = logp.astype(out_ref.dtype)

        # greedy feedback == topk(1): first index achieving the max
        is_max = logits >= mx
        idx = jnp.min(jnp.where(is_max, v_iota, f32(VPAD)),
                      axis=1, keepdims=True)
        oh_next = (v_iota == idx).astype(f32)
        return (h_new, oh_next)

    lax.fori_loop(0, T_dec, step, (h0, bos_ref[...]), unroll=True)


def decoder_fused(enc_out, enc_ht, attn_bias, merge_w, merge_b, nl_emb,
                  wih, whh, bih, bhh, out_w, out_b, bos_onehot, t_dec):
    B = enc_ht.shape[1]
    VPAD = out_w.shape[1]
    return pl.pallas_call(
        _decoder_kernel,
        out_shape=jax.ShapeDtypeStruct((t_dec, B, VPAD), jnp.float32),
        in_specs=[_VMEM] * 13,
        out_specs=_VMEM,
    )(enc_out, enc_ht, attn_bias, merge_w, merge_b, nl_emb,
      wih, whh, bih, bhh, out_w, out_b, bos_onehot)


# =============================================================================
# MainModel.forward (greedy decoding path)
# =============================================================================
def main_model_forward(params, batch_data, nl_bos_idx):
    (key_tokens, key_lens, sbt_tokens, sbt_lens,
     _nl_tokens, _nl_lens) = batch_data

    T_key, B = key_tokens.shape
    T_sbt = sbt_tokens.shape[0]
    T_enc = max(T_key, T_sbt)          # pad both encoders to a common length

    def pad_time(x):
        return jnp.pad(x, ((0, T_enc - x.shape[0]), (0, 0)))

    def pad_rows(a, n):
        return jnp.pad(a, ((0, n - a.shape[0]), (0, 0)))

    # ---- stacked encoder inputs -------------------------------------------
    tok_stacked = jnp.stack([pad_time(key_tokens), pad_time(sbt_tokens)],
                            axis=0).astype(jnp.int32)          # (2, T, B)
    tok_flat = tok_stacked.reshape(2, T_enc * B, 1)            # row = t*B + b

    lens = jnp.stack([key_lens, sbt_lens], axis=0).astype(jnp.int32)  # (2, B)
    t_idx = jnp.arange(T_enc, dtype=jnp.int32)
    step_mask = (t_idx[None, :, None] < lens[:, None, :]
                 ).astype(jnp.float32)[..., None]              # (2, T, B, 1)
    attn_bias = jnp.where(t_idx[None, None, :] < lens[:, :, None],
                          0.0, _NEG_INF).astype(jnp.float32)   # (2, B, T)

    v_enc_pad = _round_up(max(params["key_emb"].shape[0],
                              params["sbt_emb"].shape[0]), _LANE)
    emb_stacked = jnp.stack([pad_rows(params["key_emb"], v_enc_pad),
                             pad_rows(params["sbt_emb"], v_enc_pad)], axis=0)
    wih_s, whh_s, bih_s, bhh_s = (
        jnp.stack([a, b], axis=0)
        for a, b in zip(params["key_gru"], params["sbt_gru"]))

    # ---- both encoders in one call (v7x: one per TensorCore) ---------------
    enc_out, enc_ht = encoders_fused(tok_flat, step_mask, emb_stacked,
                                     wih_s, whh_s, bih_s, bhh_s)

    # ---- fused merge + greedy decoder --------------------------------------
    # static horizon (== max(nl_seq_lens) for a padded batch): no host sync
    t_dec = _nl_tokens.shape[0]
    v_nl = params["out_w"].shape[1]
    v_nl_pad = _round_up(v_nl, _LANE)
    nl_emb_p = pad_rows(params["nl_emb"], v_nl_pad)
    out_w_p = jnp.pad(params["out_w"], ((0, 0), (0, v_nl_pad - v_nl)))
    out_b_p = jnp.pad(params["out_b"], ((0, 0), (0, v_nl_pad - v_nl)),
                      constant_values=_NEG_INF)
    bos_onehot = jax.nn.one_hot(
        jnp.full((B,), nl_bos_idx, dtype=jnp.int32), v_nl_pad,
        dtype=jnp.float32)

    wih_d, whh_d, bih_d, bhh_d = params["dec_gru"]
    logp = decoder_fused(enc_out, enc_ht, attn_bias,
                         params["merge_w"], params["merge_b"], nl_emb_p,
                         wih_d, whh_d, bih_d, bhh_d,
                         out_w_p, out_b_p, bos_onehot, t_dec)
    return logp[:, :, :v_nl]          # (max_dec_step, B, nl_vocab)


# =============================================================================
# Deterministic parameter construction
# =============================================================================
def make_params(key, keycode_vocab, sbt_vocab, nl_vocab):
    E, H = EMB_SIZE, HIDDEN_SIZE
    ks = iter(jax.random.split(key, 24))

    def nrm(k, shape, std):
        return jax.random.normal(k, shape, dtype=jnp.float32) * std

    def gru_params(in_dim):
        # gate-major layout: (3, in_dim, H) etc., gate order r, z, n
        return (nrm(next(ks), (3, in_dim, H), 0.08),
                nrm(next(ks), (3, H, H), 0.08),
                nrm(next(ks), (3, 1, H), 0.08),
                nrm(next(ks), (3, 1, H), 0.08))

    return {
        "key_emb": nrm(next(ks), (keycode_vocab, E), 0.1),
        "sbt_emb": nrm(next(ks), (sbt_vocab, E), 0.1),
        "nl_emb": nrm(next(ks), (nl_vocab, E), 0.1),
        "key_gru": gru_params(E),
        "sbt_gru": gru_params(E),
        # hidden_merge_layer init: normal_(std=0.0001), as in the PyTorch code
        "merge_w": nrm(next(ks), (2 * H, H), 1e-4),
        "merge_b": nrm(next(ks), (1, H), 1e-4),
        "dec_gru": gru_params(E + 2 * H),
        "out_w": nrm(next(ks), (H, nl_vocab), 0.08),
        "out_b": nrm(next(ks), (1, nl_vocab), 0.08),
    }


if __name__ == "__main__":
    B = 2
    T_KEY, T_SBT, T_NL = 8, 8, 6
    KEYCODE_VOCAB, SBT_VOCAB, NL_VOCAB = 60, 50, 64
    NL_BOS_IDX = 1

    root = jax.random.PRNGKey(0)
    k_par, k_key, k_sbt, k_nl = jax.random.split(root, 4)

    params = make_params(k_par, KEYCODE_VOCAB, SBT_VOCAB, NL_VOCAB)

    keycode_tokens = jax.random.randint(k_key, (T_KEY, B), 2, KEYCODE_VOCAB,
                                        dtype=jnp.int32)
    sbt_tokens = jax.random.randint(k_sbt, (T_SBT, B), 2, SBT_VOCAB,
                                    dtype=jnp.int32)
    nl_tokens = jax.random.randint(k_nl, (T_NL, B), 2, NL_VOCAB,
                                   dtype=jnp.int32)

    keycode_seq_lens = jnp.array([8, 6], dtype=jnp.int32)
    sbt_seq_lens = jnp.array([8, 7], dtype=jnp.int32)
    nl_seq_lens = jnp.array([6, 5], dtype=jnp.int32)

    batch_data = (keycode_tokens, keycode_seq_lens,
                  sbt_tokens, sbt_seq_lens,
                  nl_tokens, nl_seq_lens)

    dec_output = main_model_forward(params, batch_data, NL_BOS_IDX)
    jax.block_until_ready(dec_output)

    assert dec_output.shape == (T_NL, B, NL_VOCAB)
    assert bool(jnp.all(jnp.isfinite(dec_output)))
    print("KERNEL_OK")
</pallas_src>

<mosaic_0001>
module attributes {stable_mosaic.version = 11 : i64} {
  func.func @_encoder_kernel(%arg0: i32, %arg1: memref<1x16x1xi32, #tpu.memory_space<vmem>>, %arg2: memref<1x8x2x1xf32, #tpu.memory_space<vmem>>, %arg3: memref<1x128x32xf32, #tpu.memory_space<vmem>>, %arg4: memref<1x3x32x32xf32, #tpu.memory_space<vmem>>, %arg5: memref<1x3x32x32xf32, #tpu.memory_space<vmem>>, %arg6: memref<1x3x1x32xf32, #tpu.memory_space<vmem>>, %arg7: memref<1x3x1x32xf32, #tpu.memory_space<vmem>>, %arg8: memref<1x2x8x32xf32, #tpu.memory_space<vmem>>, %arg9: memref<1x2x32xf32, #tpu.memory_space<vmem>>) attributes {dimension_semantics = [#tpu.dimension_semantics<parallel>], iteration_bounds = array<i64: 2>, scalar_prefetch = 0 : i64, scratch_operands = 0 : i64, tpu.core_type = #tpu.core_type<tc>, window_params = [{transform_indices = @transform_0, window_bounds = array<i64: 1, 16, 1>}, {transform_indices = @transform_1, window_bounds = array<i64: 1, 8, 2, 1>}, {transform_indices = @transform_2, window_bounds = array<i64: 1, 128, 32>}, {transform_indices = @transform_3, window_bounds = array<i64: 1, 3, 32, 32>}, {transform_indices = @transform_4, window_bounds = array<i64: 1, 3, 32, 32>}, {transform_indices = @transform_5, window_bounds = array<i64: 1, 3, 1, 32>}, {transform_indices = @transform_6, window_bounds = array<i64: 1, 3, 1, 32>}, {transform_indices = @transform_7, window_bounds = array<i64: 1, 2, 8, 32>}, {transform_indices = @transform_8, window_bounds = array<i64: 1, 2, 32>}]} {
    %c0 = arith.constant 0 : index
    %c0_0 = arith.constant 0 : index
    %c0_1 = arith.constant 0 : index
    %0 = vector.load %arg1[%c0, %c0_0, %c0_1] : memref<1x16x1xi32, #tpu.memory_space<vmem>>, vector<1x16x1xi32>
    %1 = vector.shape_cast %0 : vector<1x16x1xi32> to vector<16x1xi32>
    %c0_2 = arith.constant 0 : index
    %c0_3 = arith.constant 0 : index
    %c0_4 = arith.constant 0 : index
    %2 = vector.load %arg3[%c0_2, %c0_3, %c0_4] : memref<1x128x32xf32, #tpu.memory_space<vmem>>, vector<1x128x32xf32>
    %3 = vector.shape_cast %2 : vector<1x128x32xf32> to vector<128x32xf32>
    %4 = tpu.iota {dimensions = array<i32: 1>} : vector<16x128xi32>
    %5 = vector.broadcast %1 : vector<16x1xi32> to vector<16x128xi32>
    %6 = arith.cmpi eq, %4, %5 : vector<16x128xi32>
    %7 = arith.extui %6 : vector<16x128xi1> to vector<16x128xi32>
    %8 = arith.sitofp %7 : vector<16x128xi32> to vector<16x128xf32>
    %cst = arith.constant dense<0.000000e+00> : vector<16x32xf32>
    %9 = tpu.matmul %8, %3, %cst {dimension_numbers = #tpu.dot_dimension_numbers<[1], [0], [0], [1], [0, 0, 1, 1], [], []>} : vector<16x128xf32>, vector<128x32xf32>, vector<16x32xf32> -> vector<16x32xf32>
    %c0_5 = arith.constant 0 : index
    %c0_6 = arith.constant 0 : index
    %c0_7 = arith.constant 0 : index
    %c0_8 = arith.constant 0 : index
    %10 = vector.load %arg4[%c0_5, %c0_6, %c0_7, %c0_8] : memref<1x3x32x32xf32, #tpu.memory_space<vmem>>, vector<1x3x32x32xf32>
    %11 = vector.shape_cast %10 : vector<1x3x32x32xf32> to vector<3x32x32xf32>
    %c0_9 = arith.constant 0 : index
    %c0_10 = arith.constant 0 : index
    %c0_11 = arith.constant 0 : index
    %c0_12 = arith.constant 0 : index
    %12 = vector.load %arg5[%c0_9, %c0_10, %c0_11, %c0_12] : memref<1x3x32x32xf32, #tpu.memory_space<vmem>>, vector<1x3x32x32xf32>
    %13 = vector.shape_cast %12 : vector<1x3x32x32xf32> to vector<3x32x32xf32>
    %c0_13 = arith.constant 0 : index
    %c0_14 = arith.constant 0 : index
    %c0_15 = arith.constant 0 : index
    %c0_16 = arith.constant 0 : index
    %14 = vector.load %arg6[%c0_13, %c0_14, %c0_15, %c0_16] : memref<1x3x1x32xf32, #tpu.memory_space<vmem>>, vector<1x3x1x32xf32>
    %15 = vector.shape_cast %14 : vector<1x3x1x32xf32> to vector<3x1x32xf32>
    %c0_17 = arith.constant 0 : index
    %c0_18 = arith.constant 0 : index
    %c0_19 = arith.constant 0 : index
    %c0_20 = arith.constant 0 : index
    %16 = vector.load %arg7[%c0_17, %c0_18, %c0_19, %c0_20] : memref<1x3x1x32xf32, #tpu.memory_space<vmem>>, vector<1x3x1x32xf32>
    %17 = vector.shape_cast %16 : vector<1x3x1x32xf32> to vector<3x1x32xf32>
    %cst_21 = arith.constant 0.000000e+00 : f32
    %18 = vector.broadcast %cst_21 : f32 to vector<2x32xf32>
    %19 = vector.extract_strided_slice %9 {offsets = [0, 0], sizes = [2, 32], strides = [1, 1]} : vector<16x32xf32> to vector<2x32xf32>
    %c0_22 = arith.constant 0 : index
    %c0_23 = arith.constant 0 : index
    %c0_24 = arith.constant 0 : index
    %c0_25 = arith.constant 0 : index
    %20 = vector.load %arg2[%c0_22, %c0_23, %c0_24, %c0_25] : memref<1x8x2x1xf32, #tpu.memory_space<vmem>>, vector<1x1x2x1xf32>
    %21 = vector.shape_cast %20 : vector<1x1x2x1xf32> to vector<2x1xf32>
    %22 = vector.extract_strided_slice %11 {offsets = [0, 0, 0], sizes = [1, 32, 32], strides = [1, 1, 1]} : vector<3x32x32xf32> to vector<1x32x32xf32>
    %23 = vector.shape_cast %22 : vector<1x32x32xf32> to vector<32x32xf32>
    %cst_26 = arith.constant dense<0.000000e+00> : vector<2x32xf32>
    %24 = tpu.matmul %19, %23, %cst_26 {dimension_numbers = #tpu.dot_dimension_numbers<[1], [0], [0], [1], [0, 0, 1, 1], [], []>} : vector<2x32xf32>, vector<32x32xf32>, vector<2x32xf32> -> vector<2x32xf32>
    %25 = vector.extract_strided_slice %15 {offsets = [0, 0, 0], sizes = [1, 1, 32], strides = [1, 1, 1]} : vector<3x1x32xf32> to vector<1x1x32xf32>
    %26 = vector.shape_cast %25 : vector<1x1x32xf32> to vector<1x32xf32>
    %27 = vector.broadcast %26 : vector<1x32xf32> to vector<2x32xf32>
    %28 = arith.addf %24, %27 : vector<2x32xf32>
    %29 = vector.extract_strided_slice %13 {offsets = [0, 0, 0], sizes = [1, 32, 32], strides = [1, 1, 1]} : vector<3x32x32xf32> to vector<1x32x32xf32>
    %30 = vector.shape_cast %29 : vector<1x32x32xf32> to vector<32x32xf32>
    %cst_27 = arith.constant dense<0.000000e+00> : vector<2x32xf32>
    %31 = tpu.matmul %18, %30, %cst_27 {dimension_numbers = #tpu.dot_dimension_numbers<[1], [0], [0], [1], [0, 0, 1, 1], [], []>} : vector<2x32xf32>, vector<32x32xf32>, vector<2x32xf32> -> vector<2x32xf32>
    %32 = arith.addf %28, %31 : vector<2x32xf32>
    %33 = vector.extract_strided_slice %17 {offsets = [0, 0, 0], sizes = [1, 1, 32], strides = [1, 1, 1]} : vector<3x1x32xf32> to vector<1x1x32xf32>
    %34 = vector.shape_cast %33 : vector<1x1x32xf32> to vector<1x32xf32>
    %35 = vector.broadcast %34 : vector<1x32xf32> to vector<2x32xf32>
    %36 = arith.addf %32, %35 : vector<2x32xf32>
    %37 = arith.negf %36 : vector<2x32xf32>
    %38 = math.exp %37 : vector<2x32xf32>
    %cst_28 = arith.constant 1.000000e+00 : f32
    %39 = vector.broadcast %cst_28 : f32 to vector<2x32xf32>
    %40 = arith.addf %39, %38 : vector<2x32xf32>
    %41 = arith.divf %39, %40 : vector<2x32xf32>
    %42 = vector.extract_strided_slice %11 {offsets = [1, 0, 0], sizes = [1, 32, 32], strides = [1, 1, 1]} : vector<3x32x32xf32> to vector<1x32x32xf32>
    %43 = vector.shape_cast %42 : vector<1x32x32xf32> to vector<32x32xf32>
    %cst_29 = arith.constant dense<0.000000e+00> : vector<2x32xf32>
    %44 = tpu.matmul %19, %43, %cst_29 {dimension_numbers = #tpu.dot_dimension_numbers<[1], [0], [0], [1], [0, 0, 1, 1], [], []>} : vector<2x32xf32>, vector<32x32xf32>, vector<2x32xf32> -> vector<2x32xf32>
    %45 = vector.extract_strided_slice %15 {offsets = [1, 0, 0], sizes = [1, 1, 32], strides = [1, 1, 1]} : vector<3x1x32xf32> to vector<1x1x32xf32>
    %46 = vector.shape_cast %45 : vector<1x1x32xf32> to vector<1x32xf32>
    %47 = vector.broadcast %46 : vector<1x32xf32> to vector<2x32xf32>
    %48 = arith.addf %44, %47 : vector<2x32xf32>
    %49 = vector.extract_strided_slice %13 {offsets = [1, 0, 0], sizes = [1, 32, 32], strides = [1, 1, 1]} : vector<3x32x32xf32> to vector<1x32x32xf32>
    %50 = vector.shape_cast %49 : vector<1x32x32xf32> to vector<32x32xf32>
    %cst_30 = arith.constant dense<0.000000e+00> : vector<2x32xf32>
    %51 = tpu.matmul %18, %50, %cst_30 {dimension_numbers = #tpu.dot_dimension_numbers<[1], [0], [0], [1], [0, 0, 1, 1], [], []>} : vector<2x32xf32>, vector<32x32xf32>, vector<2x32xf32> -> vector<2x32xf32>
    %52 = arith.addf %48, %51 : vector<2x32xf32>
    %53 = vector.extract_strided_slice %17 {offsets = [1, 0, 0], sizes = [1, 1, 32], strides = [1, 1, 1]} : vector<3x1x32xf32> to vector<1x1x32xf32>
    %54 = vector.shape_cast %53 : vector<1x1x32xf32> to vector<1x32xf32>
    %55 = vector.broadcast %54 : vector<1x32xf32> to vector<2x32xf32>
    %56 = arith.addf %52, %55 : vector<2x32xf32>
    %57 = arith.negf %56 : vector<2x32xf32>
    %58 = math.exp %57 : vector<2x32xf32>
    %cst_31 = arith.constant 1.000000e+00 : f32
    %59 = vector.broadcast %cst_31 : f32 to vector<2x32xf32>
    %60 = arith.addf %59, %58 : vector<2x32xf32>
    %61 = arith.divf %59, %60 : vector<2x32xf32>
    %62 = vector.extract_strided_slice %11 {offsets = [2, 0, 0], sizes = [1, 32, 32], strides = [1, 1, 1]} : vector<3x32x32xf32> to vector<1x32x32xf32>
    %63 = vector.shape_cast %62 : vector<1x32x32xf32> to vector<32x32xf32>
    %cst_32 = arith.constant dense<0.000000e+00> : vector<2x32xf32>
    %64 = tpu.matmul %19, %63, %cst_32 {dimension_numbers = #tpu.dot_dimension_numbers<[1], [0], [0], [1], [0, 0, 1, 1], [], []>} : vector<2x32xf32>, vector<32x32xf32>, vector<2x32xf32> -> vector<2x32xf32>
    %65 = vector.extract_strided_slice %15 {offsets = [2, 0, 0], sizes = [1, 1, 32], strides = [1, 1, 1]} : vector<3x1x32xf32> to vector<1x1x32xf32>
    %66 = vector.shape_cast %65 : vector<1x1x32xf32> to vector<1x32xf32>
    %67 = vector.broadcast %66 : vector<1x32xf32> to vector<2x32xf32>
    %68 = arith.addf %64, %67 : vector<2x32xf32>
    %69 = vector.extract_strided_slice %13 {offsets = [2, 0, 0], sizes = [1, 32, 32], strides = [1, 1, 1]} : vector<3x32x32xf32> to vector<1x32x32xf32>
    %70 = vector.shape_cast %69 : vector<1x32x32xf32> to vector<32x32xf32>
    %cst_33 = arith.constant dense<0.000000e+00> : vector<2x32xf32>
    %71 = tpu.matmul %18, %70, %cst_33 {dimension_numbers = #tpu.dot_dimension_numbers<[1], [0], [0], [1], [0, 0, 1, 1], [], []>} : vector<2x32xf32>, vector<32x32xf32>, vector<2x32xf32> -> vector<2x32xf32>
    %72 = vector.extract_strided_slice %17 {offsets = [2, 0, 0], sizes = [1, 1, 32], strides = [1, 1, 1]} : vector<3x1x32xf32> to vector<1x1x32xf32>
    %73 = vector.shape_cast %72 : vector<1x1x32xf32> to vector<1x32xf32>
    %74 = vector.broadcast %73 : vector<1x32xf32> to vector<2x32xf32>
    %75 = arith.addf %71, %74 : vector<2x32xf32>
    %76 = arith.mulf %41, %75 : vector<2x32xf32>
    %77 = arith.addf %68, %76 : vector<2x32xf32>
    %78 = math.tanh %77 : vector<2x32xf32>
    %cst_34 = arith.constant 1.000000e+00 : f32
    %79 = vector.broadcast %cst_34 : f32 to vector<2x32xf32>
    %80 = arith.subf %79, %61 : vector<2x32xf32>
    %81 = arith.mulf %80, %78 : vector<2x32xf32>
    %82 = arith.mulf %61, %18 : vector<2x32xf32>
    %83 = arith.addf %81, %82 : vector<2x32xf32>
    %84 = vector.broadcast %21 : vector<2x1xf32> to vector<2x32xf32>
    %85 = arith.mulf %84, %83 : vector<2x32xf32>
    %cst_35 = arith.constant 1.000000e+00 : f32
    %86 = vector.broadcast %cst_35 : f32 to vector<2x1xf32>
    %87 = arith.subf %86, %21 : vector<2x1xf32>
    %88 = vector.broadcast %87 : vector<2x1xf32> to vector<2x32xf32>
    %89 = arith.mulf %88, %18 : vector<2x32xf32>
    %90 = arith.addf %85, %89 : vector<2x32xf32>
    %91 = vector.broadcast %21 : vector<2x1xf32> to vector<2x32xf32>
    %92 = arith.mulf %91, %90 : vector<2x32xf32>
    %c0_36 = arith.constant 0 : index
    %c0_37 = arith.constant 0 : index
    %c0_38 = arith.constant 0 : index
    %c0_39 = arith.constant 0 : index
    %93 = vector.load %arg8[%c0_36, %c0_37, %c0_38, %c0_39] : memref<1x2x8x32xf32, #tpu.memory_space<vmem>>, vector<1x2x1x32xf32>
    %94 = vector.shape_cast %93 : vector<1x2x1x32xf32> to vector<2x32xf32>
    %95 = vector.shape_cast %92 : vector<2x32xf32> to vector<1x2x1x32xf32>
    tpu.vector_store %arg8[%c0_36, %c0_37, %c0_38, %c0_39], %95 {strides = array<i32>} : memref<1x2x8x32xf32, #tpu.memory_space<vmem>>, vector<1x2x1x32xf32>,
    %96 = vector.extract_strided_slice %9 {offsets = [2, 0], sizes = [2, 32], strides = [1, 1]} : vector<16x32xf32> to vector<2x32xf32>
    %c0_40 = arith.constant 0 : index
    %c1 = arith.constant 1 : index
    %c0_41 = arith.constant 0 : index
    %c0_42 = arith.constant 0 : index
    %97 = vector.load %arg2[%c0_40, %c1, %c0_41, %c0_42] : memref<1x8x2x1xf32, #tpu.memory_space<vmem>>, vector<1x1x2x1xf32>
    %98 = vector.shape_cast %97 : vector<1x1x2x1xf32> to vector<2x1xf32>
    %99 = vector.extract_strided_slice %11 {offsets = [0, 0, 0], sizes = [1, 32, 32], strides = [1, 1, 1]} : vector<3x32x32xf32> to vector<1x32x32xf32>
    %100 = vector.shape_cast %99 : vector<1x32x32xf32> to vector<32x32xf32>
    %cst_43 = arith.constant dense<0.000000e+00> : vector<2x32xf32>
    %101 = tpu.matmul %96, %100, %cst_43 {dimension_numbers = #tpu.dot_dimension_numbers<[1], [0], [0], [1], [0, 0, 1, 1], [], []>} : vector<2x32xf32>, vector<32x32xf32>, vector<2x32xf32> -> vector<2x32xf32>
    %102 = vector.extract_strided_slice %15 {offsets = [0, 0, 0], sizes = [1, 1, 32], strides = [1, 1, 1]} : vector<3x1x32xf32> to vector<1x1x32xf32>
    %103 = vector.shape_cast %102 : vector<1x1x32xf32> to vector<1x32xf32>
    %104 = vector.broadcast %103 : vector<1x32xf32> to vector<2x32xf32>
    %105 = arith.addf %101, %104 : vector<2x32xf32>
    %106 = vector.extract_strided_slice %13 {offsets = [0, 0, 0], sizes = [1, 32, 32], strides = [1, 1, 1]} : vector<3x32x32xf32> to vector<1x32x32xf32>
    %107 = vector.shape_cast %106 : vector<1x32x32xf32> to vector<32x32xf32>
    %cst_44 = arith.constant dense<0.000000e+00> : vector<2x32xf32>
    %108 = tpu.matmul %90, %107, %cst_44 {dimension_numbers = #tpu.dot_dimension_numbers<[1], [0], [0], [1], [0, 0, 1, 1], [], []>} : vector<2x32xf32>, vector<32x32xf32>, vector<2x32xf32> -> vector<2x32xf32>
    %109 = arith.addf %105, %108 : vector<2x32xf32>
    %110 = vector.extract_strided_slice %17 {offsets = [0, 0, 0], sizes = [1, 1, 32], strides = [1, 1, 1]} : vector<3x1x32xf32> to vector<1x1x32xf32>
    %111 = vector.shape_cast %110 : vector<1x1x32xf32> to vector<1x32xf32>
    %112 = vector.broadcast %111 : vector<1x32xf32> to vector<2x32xf32>
    %113 = arith.addf %109, %112 : vector<2x32xf32>
    %114 = arith.negf %113 : vector<2x32xf32>
    %115 = math.exp %114 : vector<2x32xf32>
    %cst_45 = arith.constant 1.000000e+00 : f32
    %116 = vector.broadcast %cst_45 : f32 to vector<2x32xf32>
    %117 = arith.addf %116, %115 : vector<2x32xf32>
    %118 = arith.divf %116, %117 : vector<2x32xf32>
    %119 = vector.extract_strided_slice %11 {offsets = [1, 0, 0], sizes = [1, 32, 32], strides = [1, 1, 1]} : vector<3x32x32xf32> to vector<1x32x32xf32>
    %120 = vector.shape_cast %119 : vector<1x32x32xf32> to vector<32x32xf32>
    %cst_46 = arith.constant dense<0.000000e+00> : vector<2x32xf32>
    %121 = tpu.matmul %96, %120, %cst_46 {dimension_numbers = #tpu.dot_dimension_numbers<[1], [0], [0], [1], [0, 0, 1, 1], [], []>} : vector<2x32xf32>, vector<32x32xf32>, vector<2x32xf32> -> vector<2x32xf32>
    %122 = vector.extract_strided_slice %15 {offsets = [1, 0, 0], sizes = [1, 1, 32], strides = [1, 1, 1]} : vector<3x1x32xf32> to vector<1x1x32xf32>
    %123 = vector.shape_cast %122 : vector<1x1x32xf32> to vector<1x32xf32>
    %124 = vector.broadcast %123 : vector<1x32xf32> to vector<2x32xf32>
    %125 = arith.addf %121, %124 : vector<2x32xf32>
    %126 = vector.extract_strided_slice %13 {offsets = [1, 0, 0], sizes = [1, 32, 32], strides = [1, 1, 1]} : vector<3x32x32xf32> to vector<1x32x32xf32>
    %127 = vector.shape_cast %126 : vector<1x32x32xf32> to vector<32x32xf32>
    %cst_47 = arith.constant dense<0.000000e+00> : vector<2x32xf32>
    %128 = tpu.matmul %90, %127, %cst_47 {dimension_numbers = #tpu.dot_dimension_numbers<[1], [0], [0], [1], [0, 0, 1, 1], [], []>} : vector<2x32xf32>, vector<32x32xf32>, vector<2x32xf32> -> vector<2x32xf32>
    %129 = arith.addf %125, %128 : vector<2x32xf32>
    %130 = vector.extract_strided_slice %17 {offsets = [1, 0, 0], sizes = [1, 1, 32], strides = [1, 1, 1]} : vector<3x1x32xf32> to vector<1x1x32xf32>
    %131 = vector.shape_cast %130 : vector<1x1x32xf32> to vector<1x32xf32>
    %132 = vector.broadcast %131 : vector<1x32xf32> to vector<2x32xf32>
    %133 = arith.addf %129, %132 : vector<2x32xf32>
    %134 = arith.negf %133 : vector<2x32xf32>
    %135 = math.exp %134 : vector<2x32xf32>
    %cst_48 = arith.constant 1.000000e+00 : f32
    %136 = vector.broadcast %cst_48 : f32 to vector<2x32xf32>
    %137 = arith.addf %136, %135 : vector<2x32xf32>
    %138 = arith.divf %136, %137 : vector<2x32xf32>
    %139 = vector.extract_strided_slice %11 {offsets = [2, 0, 0], sizes = [1, 32, 32], strides = [1, 1, 1]} : vector<3x32x32xf32> to vector<1x32x32xf32>
    %140 = vector.shape_cast %139 : vector<1x32x32xf32> to vector<32x32xf32>
    %cst_49 = arith.constant dense<0.000000e+00> : vector<2x32xf32>
    %141 = tpu.matmul %96, %140, %cst_49 {dimension_numbers = #tpu.dot_dimension_numbers<[1], [0], [0], [1], [0, 0, 1, 1], [], []>} : vector<2x32xf32>, vector<32x32xf32>, vector<2x32xf32> -> vector<2x32xf32>
    %142 = vector.extract_strided_slice %15 {offsets = [2, 0, 0], sizes = [1, 1, 32], strides = [1, 1, 1]} : vector<3x1x32xf32> to vector<1x1x32xf32>
    %143 = vector.shape_cast %142 : vector<1x1x32xf32> to vector<1x32xf32>
    %144 = vector.broadcast %143 : vector<1x32xf32> to vector<2x32xf32>
    %145 = arith.addf %141, %144 : vector<2x32xf32>
    %146 = vector.extract_strided_slice %13 {offsets = [2, 0, 0], sizes = [1, 32, 32], strides = [1, 1, 1]} : vector<3x32x32xf32> to vector<1x32x32xf32>
    %147 = vector.shape_cast %146 : vector<1x32x32xf32> to vector<32x32xf32>
    %cst_50 = arith.constant dense<0.000000e+00> : vector<2x32xf32>
    %148 = tpu.matmul %90, %147, %cst_50 {dimension_numbers = #tpu.dot_dimension_numbers<[1], [0], [0], [1], [0, 0, 1, 1], [], []>} : vector<2x32xf32>, vector<32x32xf32>, vector<2x32xf32> -> vector<2x32xf32>
    %149 = vector.extract_strided_slice %17 {offsets = [2, 0, 0], sizes = [1, 1, 32], strides = [1, 1, 1]} : vector<3x1x32xf32> to vector<1x1x32xf32>
    %150 = vector.shape_cast %149 : vector<1x1x32xf32> to vector<1x32xf32>
    %151 = vector.broadcast %150 : vector<1x32xf32> to vector<2x32xf32>
    %152 = arith.addf %148, %151 : vector<2x32xf32>
    %153 = arith.mulf %118, %152 : vector<2x32xf32>
    %154 = arith.addf %145, %153 : vector<2x32xf32>
    %155 = math.tanh %154 : vector<2x32xf32>
    %cst_51 = arith.constant 1.000000e+00 : f32
    %156 = vector.broadcast %cst_51 : f32 to vector<2x32xf32>
    %157 = arith.subf %156, %138 : vector<2x32xf32>
    %158 = arith.mulf %157, %155 : vector<2x32xf32>
    %159 = arith.mulf %138, %90 : vector<2x32xf32>
    %160 = arith.addf %158, %159 : vector<2x32xf32>
    %161 = vector.broadcast %98 : vector<2x1xf32> to vector<2x32xf32>
    %162 = arith.mulf %161, %160 : vector<2x32xf32>
    %cst_52 = arith.constant 1.000000e+00 : f32
    %163 = vector.broadcast %cst_52 : f32 to vector<2x1xf32>
    %164 = arith.subf %163, %98 : vector<2x1xf32>
    %165 = vector.broadcast %164 : vector<2x1xf32> to vector<2x32xf32>
    %166 = arith.mulf %165, %90 : vector<2x32xf32>
    %167 = arith.addf %162, %166 : vector<2x32xf32>
    %168 = vector.broadcast %98 : vector<2x1xf32> to vector<2x32xf32>
    %169 = arith.mulf %168, %167 : vector<2x32xf32>
    %c0_53 = arith.constant 0 : index
    %c0_54 = arith.constant 0 : index
    %c1_55 = arith.constant 1 : index
    %c0_56 = arith.constant 0 : index
    %170 = vector.load %arg8[%c0_53, %c0_54, %c1_55, %c0_56] : memref<1x2x8x32xf32, #tpu.memory_space<vmem>>, vector<1x2x1x32xf32>
    %171 = vector.shape_cast %170 : vector<1x2x1x32xf32> to vector<2x32xf32>
    %172 = vector.shape_cast %169 : vector<2x32xf32> to vector<1x2x1x32xf32>
    tpu.vector_store %arg8[%c0_53, %c0_54, %c1_55, %c0_56], %172 {strides = array<i32>} : memref<1x2x8x32xf32, #tpu.memory_space<vmem>>, vector<1x2x1x32xf32>,
    %173 = vector.extract_strided_slice %9 {offsets = [4, 0], sizes = [2, 32], strides = [1, 1]} : vector<16x32xf32> to vector<2x32xf32>
    %c0_57 = arith.constant 0 : index
    %c2 = arith.constant 2 : index
    %c0_58 = arith.constant 0 : index
    %c0_59 = arith.constant 0 : index
    %174 = vector.load %arg2[%c0_57, %c2, %c0_58, %c0_59] : memref<1x8x2x1xf32, #tpu.memory_space<vmem>>, vector<1x1x2x1xf32>
    %175 = vector.shape_cast %174 : vector<1x1x2x1xf32> to vector<2x1xf32>
    %176 = vector.extract_strided_slice %11 {offsets = [0, 0, 0], sizes = [1, 32, 32], strides = [1, 1, 1]} : vector<3x32x32xf32> to vector<1x32x32xf32>
    %177 = vector.shape_cast %176 : vector<1x32x32xf32> to vector<32x32xf32>
    %cst_60 = arith.constant dense<0.000000e+00> : vector<2x32xf32>
    %178 = tpu.matmul %173, %177, %cst_60 {dimension_numbers = #tpu.dot_dimension_numbers<[1], [0], [0], [1], [0, 0, 1, 1], [], []>} : vector<2x32xf32>, vector<32x32xf32>, vector<2x32xf32> -> vector<2x32xf32>
    %179 = vector.extract_strided_slice %15 {offsets = [0, 0, 0], sizes = [1, 1, 32], strides = [1, 1, 1]} : vector<3x1x32xf32> to vector<1x1x32xf32>
    %180 = vector.shape_cast %179 : vector<1x1x32xf32> to vector<1x32xf32>
    %181 = vector.broadcast %180 : vector<1x32xf32> to vector<2x32xf32>
    %182 = arith.addf %178, %181 : vector<2x32xf32>
    %183 = vector.extract_strided_slice %13 {offsets = [0, 0, 0], sizes = [1, 32, 32], strides = [1, 1, 1]} : vector<3x32x32xf32> to vector<1x32x32xf32>
    %184 = vector.shape_cast %183 : vector<1x32x32xf32> to vector<32x32xf32>
    %cst_61 = arith.constant dense<0.000000e+00> : vector<2x32xf32>
    %185 = tpu.matmul %167, %184, %cst_61 {dimension_numbers = #tpu.dot_dimension_numbers<[1], [0], [0], [1], [0, 0, 1, 1], [], []>} : vector<2x32xf32>, vector<32x32xf32>, vector<2x32xf32> -> vector<2x32xf32>
    %186 = arith.addf %182, %185 : vector<2x32xf32>
    %187 = vector.extract_strided_slice %17 {offsets = [0, 0, 0], sizes = [1, 1, 32], strides = [1, 1, 1]} : vector<3x1x32xf32> to vector<1x1x32xf32>
    %188 = vector.shape_cast %187 : vector<1x1x32xf32> to vector<1x32xf32>
    %189 = vector.broadcast %188 : vector<1x32xf32> to vector<2x32xf32>
    %190 = arith.addf %186, %189 : vector<2x32xf32>
    %191 = arith.negf %190 : vector<2x32xf32>
    %192 = math.exp %191 : vector<2x32xf32>
    %cst_62 = arith.constant 1.000000e+00 : f32
    %193 = vector.broadcast %cst_62 : f32 to vector<2x32xf32>
    %194 = arith.addf %193, %192 : vector<2x32xf32>
    %195 = arith.divf %193, %194 : vector<2x32xf32>
    %196 = vector.extract_strided_slice %11 {offsets = [1, 0, 0], sizes = [1, 32, 32], strides = [1, 1, 1]} : vector<3x32x32xf32> to vector<1x32x32xf32>
    %197 = vector.shape_cast %196 : vector<1x32x32xf32> to vector<32x32xf32>
    %cst_63 = arith.constant dense<0.000000e+00> : vector<2x32xf32>
    %198 = tpu.matmul %173, %197, %cst_63 {dimension_numbers = #tpu.dot_dimension_numbers<[1], [0], [0], [1], [0, 0, 1, 1], [], []>} : vector<2x32xf32>, vector<32x32xf32>, vector<2x32xf32> -> vector<2x32xf32>
    %199 = vector.extract_strided_slice %15 {offsets = [1, 0, 0], sizes = [1, 1, 32], strides = [1, 1, 1]} : vector<3x1x32xf32> to vector<1x1x32xf32>
    %200 = vector.shape_cast %199 : vector<1x1x32xf32> to vector<1x32xf32>
    %201 = vector.broadcast %200 : vector<1x32xf32> to vector<2x32xf32>
    %202 = arith.addf %198, %201 : vector<2x32xf32>
    %203 = vector.extract_strided_slice %13 {offsets = [1, 0, 0], sizes = [1, 32, 32], strides = [1, 1, 1]} : vector<3x32x32xf32> to vector<1x32x32xf32>
    %204 = vector.shape_cast %203 : vector<1x32x32xf32> to vector<32x32xf32>
    %cst_64 = arith.constant dense<0.000000e+00> : vector<2x32xf32>
    %205 = tpu.matmul %167, %204, %cst_64 {dimension_numbers = #tpu.dot_dimension_numbers<[1], [0], [0], [1], [0, 0, 1, 1], [], []>} : vector<2x32xf32>, vector<32x32xf32>, vector<2x32xf32> -> vector<2x32xf32>
    %206 = arith.addf %202, %205 : vector<2x32xf32>
    %207 = vector.extract_strided_slice %17 {offsets = [1, 0, 0], sizes = [1, 1, 32], strides = [1, 1, 1]} : vector<3x1x32xf32> to vector<1x1x32xf32>
    %208 = vector.shape_cast %207 : vector<1x1x32xf32> to vector<1x32xf32>
    %209 = vector.broadcast %208 : vector<1x32xf32> to vector<2x32xf32>
    %210 = arith.addf %206, %209 : vector<2x32xf32>
    %211 = arith.negf %210 : vector<2x32xf32>
    %212 = math.exp %211 : vector<2x32xf32>
    %cst_65 = arith.constant 1.000000e+00 : f32
    %213 = vector.broadcast %cst_65 : f32 to vector<2x32xf32>
    %214 = arith.addf %213, %212 : vector<2x32xf32>
    %215 = arith.divf %213, %214 : vector<2x32xf32>
    %216 = vector.extract_strided_slice %11 {offsets = [2, 0, 0], sizes = [1, 32, 32], strides = [1, 1, 1]} : vector<3x32x32xf32> to vector<1x32x32xf32>
    %217 = vector.shape_cast %216 : vector<1x32x32xf32> to vector<32x32xf32>
    %cst_66 = arith.constant dense<0.000000e+00> : vector<2x32xf32>
    %218 = tpu.matmul %173, %217, %cst_66 {dimension_numbers = #tpu.dot_dimension_numbers<[1], [0], [0], [1], [0, 0, 1, 1], [], []>} : vector<2x32xf32>, vector<32x32xf32>, vector<2x32xf32> -> vector<2x32xf32>
    %219 = vector.extract_strided_slice %15 {offsets = [2, 0, 0], sizes = [1, 1, 32], strides = [1, 1, 1]} : vector<3x1x32xf32> to vector<1x1x32xf32>
    %220 = vector.shape_cast %219 : vector<1x1x32xf32> to vector<1x32xf32>
    %221 = vector.broadcast %220 : vector<1x32xf32> to vector<2x32xf32>
    %222 = arith.addf %218, %221 : vector<2x32xf32>
    %223 = vector.extract_strided_slice %13 {offsets = [2, 0, 0], sizes = [1, 32, 32], strides = [1, 1, 1]} : vector<3x32x32xf32> to vector<1x32x32xf32>
    %224 = vector.shape_cast %223 : vector<1x32x32xf32> to vector<32x32xf32>
    %cst_67 = arith.constant dense<0.000000e+00> : vector<2x32xf32>
    %225 = tpu.matmul %167, %224, %cst_67 {dimension_numbers = #tpu.dot_dimension_numbers<[1], [0], [0], [1], [0, 0, 1, 1], [], []>} : vector<2x32xf32>, vector<32x32xf32>, vector<2x32xf32> -> vector<2x32xf32>
    %226 = vector.extract_strided_slice %17 {offsets = [2, 0, 0], sizes = [1, 1, 32], strides = [1, 1, 1]} : vector<3x1x32xf32> to vector<1x1x32xf32>
    %227 = vector.shape_cast %226 : vector<1x1x32xf32> to vector<1x32xf32>
    %228 = vector.broadcast %227 : vector<1x32xf32> to vector<2x32xf32>
    %229 = arith.addf %225, %228 : vector<2x32xf32>
    %230 = arith.mulf %195, %229 : vector<2x32xf32>
    %231 = arith.addf %222, %230 : vector<2x32xf32>
    %232 = math.tanh %231 : vector<2x32xf32>
    %cst_68 = arith.constant 1.000000e+00 : f32
    %233 = vector.broadcast %cst_68 : f32 to vector<2x32xf32>
    %234 = arith.subf %233, %215 : vector<2x32xf32>
    %235 = arith.mulf %234, %232 : vector<2x32xf32>
    %236 = arith.mulf %215, %167 : vector<2x32xf32>
    %237 = arith.addf %235, %236 : vector<2x32xf32>
    %238 = vector.broadcast %175 : vector<2x1xf32> to vector<2x32xf32>
    %239 = arith.mulf %238, %237 : vector<2x32xf32>
    %cst_69 = arith.constant 1.000000e+00 : f32
    %240 = vector.broadcast %cst_69 : f32 to vector<2x1xf32>
    %241 = arith.subf %240, %175 : vector<2x1xf32>
    %242 = vector.broadcast %241 : vector<2x1xf32> to vector<2x32xf32>
    %243 = arith.mulf %242, %167 : vector<2x32xf32>
    %244 = arith.addf %239, %243 : vector<2x32xf32>
    %245 = vector.broadcast %175 : vector<2x1xf32> to vector<2x32xf32>
    %246 = arith.mulf %245, %244 : vector<2x32xf32>
    %c0_70 = arith.constant 0 : index
    %c0_71 = arith.constant 0 : index
    %c2_72 = arith.constant 2 : index
    %c0_73 = arith.constant 0 : index
    %247 = vector.load %arg8[%c0_70, %c0_71, %c2_72, %c0_73] : memref<1x2x8x32xf32, #tpu.memory_space<vmem>>, vector<1x2x1x32xf32>
    %248 = vector.shape_cast %247 : vector<1x2x1x32xf32> to vector<2x32xf32>
    %249 = vector.shape_cast %246 : vector<2x32xf32> to vector<1x2x1x32xf32>
    tpu.vector_store %arg8[%c0_70, %c0_71, %c2_72, %c0_73], %249 {strides = array<i32>} : memref<1x2x8x32xf32, #tpu.memory_space<vmem>>, vector<1x2x1x32xf32>,
    %250 = vector.extract_strided_slice %9 {offsets = [6, 0], sizes = [2, 32], strides = [1, 1]} : vector<16x32xf32> to vector<2x32xf32>
    %c0_74 = arith.constant 0 : index
    %c3 = arith.constant 3 : index
    %c0_75 = arith.constant 0 : index
    %c0_76 = arith.constant 0 : index
    %251 = vector.load %arg2[%c0_74, %c3, %c0_75, %c0_76] : memref<1x8x2x1xf32, #tpu.memory_space<vmem>>, vector<1x1x2x1xf32>
    %252 = vector.shape_cast %251 : vector<1x1x2x1xf32> to vector<2x1xf32>
    %253 = vector.extract_strided_slice %11 {offsets = [0, 0, 0], sizes = [1, 32, 32], strides = [1, 1, 1]} : vector<3x32x32xf32> to vector<1x32x32xf32>
    %254 = vector.shape_cast %253 : vector<1x32x32xf32> to vector<32x32xf32>
    %cst_77 = arith.constant dense<0.000000e+00> : vector<2x32xf32>
    %255 = tpu.matmul %250, %254, %cst_77 {dimension_numbers = #tpu.dot_dimension_numbers<[1], [0], [0], [1], [0, 0, 1, 1], [], []>} : vector<2x32xf32>, vector<32x32xf32>, vector<2x32xf32> -> vector<2x32xf32>
    %256 = vector.extract_strided_slice %15 {offsets = [0, 0, 0], sizes = [1, 1, 32], strides = [1, 1, 1]} : vector<3x1x32xf32> to vector<1x1x32xf32>
    %257 = vector.shape_cast %256 : vector<1x1x32xf32> to vector<1x32xf32>
    %258 = vector.broadcast %257 : vector<1x32xf32> to vector<2x32xf32>
    %259 = arith.addf %255, %258 : vector<2x32xf32>
    %260 = vector.extract_strided_slice %13 {offsets = [0, 0, 0], sizes = [1, 32, 32], strides = [1, 1, 1]} : vector<3x32x32xf32> to vector<1x32x32xf32>
    %261 = vector.shape_cast %260 : vector<1x32x32xf32> to vector<32x32xf32>
    %cst_78 = arith.constant dense<0.000000e+00> : vector<2x32xf32>
    %262 = tpu.matmul %244, %261, %cst_78 {dimension_numbers = #tpu.dot_dimension_numbers<[1], [0], [0], [1], [0, 0, 1, 1], [], []>} : vector<2x32xf32>, vector<32x32xf32>, vector<2x32xf32> -> vector<2x32xf32>
    %263 = arith.addf %259, %262 : vector<2x32xf32>
    %264 = vector.extract_strided_slice %17 {offsets = [0, 0, 0], sizes = [1, 1, 32], strides = [1, 1, 1]} : vector<3x1x32xf32> to vector<1x1x32xf32>
    %265 = vector.shape_cast %264 : vector<1x1x32xf32> to vector<1x32xf32>
    %266 = vector.broadcast %265 : vector<1x32xf32> to vector<2x32xf32>
    %267 = arith.addf %263, %266 : vector<2x32xf32>
    %268 = arith.negf %267 : vector<2x32xf32>
    %269 = math.exp %268 : vector<2x32xf32>
    %cst_79 = arith.constant 1.000000e+00 : f32
    %270 = vector.broadcast %cst_79 : f32 to vector<2x32xf32>
    %271 = arith.addf %270, %269 : vector<2x32xf32>
    %272 = arith.divf %270, %271 : vector<2x32xf32>
    %273 = vector.extract_strided_slice %11 {offsets = [1, 0, 0], sizes = [1, 32, 32], strides = [1, 1, 1]} : vector<3x32x32xf32> to vector<1x32x32xf32>
    %274 = vector.shape_cast %273 : vector<1x32x32xf32> to vector<32x32xf32>
    %cst_80 = arith.constant dense<0.000000e+00> : vector<2x32xf32>
    %275 = tpu.matmul %250, %274, %cst_80 {dimension_numbers = #tpu.dot_dimension_numbers<[1], [0], [0], [1], [0, 0, 1, 1], [], []>} : vector<2x32xf32>, vector<32x32xf32>, vector<2x32xf32> -> vector<2x32xf32>
    %276 = vector.extract_strided_slice %15 {offsets = [1, 0, 0], sizes = [1, 1, 32], strides = [1, 1, 1]} : vector<3x1x32xf32> to vector<1x1x32xf32>
    %277 = vector.shape_cast %276 : vector<1x1x32xf32> to vector<1x32xf32>
    %278 = vector.broadcast %277 : vector<1x32xf32> to vector<2x32xf32>
    %279 = arith.addf %275, %278 : vector<2x32xf32>
    %280 = vector.extract_strided_slice %13 {offsets = [1, 0, 0], sizes = [1, 32, 32], strides = [1, 1, 1]} : vector<3x32x32xf32> to vector<1x32x32xf32>
    %281 = vector.shape_cast %280 : vector<1x32x32xf32> to vector<32x32xf32>
    %cst_81 = arith.constant dense<0.000000e+00> : vector<2x32xf32>
    %282 = tpu.matmul %244, %281, %cst_81 {dimension_numbers = #tpu.dot_dimension_numbers<[1], [0], [0], [1], [0, 0, 1, 1], [], []>} : vector<2x32xf32>, vector<32x32xf32>, vector<2x32xf32> -> vector<2x32xf32>
    %283 = arith.addf %279, %282 : vector<2x32xf32>
    %284 = vector.extract_strided_slice %17 {offsets = [1, 0, 0], sizes = [1, 1, 32], strides = [1, 1, 1]} : vector<3x1x32xf32> to vector<1x1x32xf32>
    %285 = vector.shape_cast %284 : vector<1x1x32xf32> to vector<1x32xf32>
    %286 = vector.broadcast %285 : vector<1x32xf32> to vector<2x32xf32>
    %287 = arith.addf %283, %286 : vector<2x32xf32>
    %288 = arith.negf %287 : vector<2x32xf32>
    %289 = math.exp %288 : vector<2x32xf32>
    %cst_82 = arith.constant 1.000000e+00 : f32
    %290 = vector.broadcast %cst_82 : f32 to vector<2x32xf32>
    %291 = arith.addf %290, %289 : vector<2x32xf32>
    %292 = arith.divf %290, %291 : vector<2x32xf32>
    %293 = vector.extract_strided_slice %11 {offsets = [2, 0, 0], sizes = [1, 32, 32], strides = [1, 1, 1]} : vector<3x32x32xf32> to vector<1x32x32xf32>
    %294 = vector.shape_cast %293 : vector<1x32x32xf32> to vector<32x32xf32>
    %cst_83 = arith.constant dense<0.000000e+00> : vector<2x32xf32>
    %295 = tpu.matmul %250, %294, %cst_83 {dimension_numbers = #tpu.dot_dimension_numbers<[1], [0], [0], [1], [0, 0, 1, 1], [], []>} : vector<2x32xf32>, vector<32x32xf32>, vector<2x32xf32> -> vector<2x32xf32>
    %296 = vector.extract_strided_slice %15 {offsets = [2, 0, 0], sizes = [1, 1, 32], strides = [1, 1, 1]} : vector<3x1x32xf32> to vector<1x1x32xf32>
    %297 = vector.shape_cast %296 : vector<1x1x32xf32> to vector<1x32xf32>
    %298 = vector.broadcast %297 : vector<1x32xf32> to vector<2x32xf32>
    %299 = arith.addf %295, %298 : vector<2x32xf32>
    %300 = vector.extract_strided_slice %13 {offsets = [2, 0, 0], sizes = [1, 32, 32], strides = [1, 1, 1]} : vector<3x32x32xf32> to vector<1x32x32xf32>
    %301 = vector.shape_cast %300 : vector<1x32x32xf32> to vector<32x32xf32>
    %cst_84 = arith.constant dense<0.000000e+00> : vector<2x32xf32>
    %302 = tpu.matmul %244, %301, %cst_84 {dimension_numbers = #tpu.dot_dimension_numbers<[1], [0], [0], [1], [0, 0, 1, 1], [], []>} : vector<2x32xf32>, vector<32x32xf32>, vector<2x32xf32> -> vector<2x32xf32>
    %303 = vector.extract_strided_slice %17 {offsets = [2, 0, 0], sizes = [1, 1, 32], strides = [1, 1, 1]} : vector<3x1x32xf32> to vector<1x1x32xf32>
    %304 = vector.shape_cast %303 : vector<1x1x32xf32> to vector<1x32xf32>
    %305 = vector.broadcast %304 : vector<1x32xf32> to vector<2x32xf32>
    %306 = arith.addf %302, %305 : vector<2x32xf32>
    %307 = arith.mulf %272, %306 : vector<2x32xf32>
    %308 = arith.addf %299, %307 : vector<2x32xf32>
    %309 = math.tanh %308 : vector<2x32xf32>
    %cst_85 = arith.constant 1.000000e+00 : f32
    %310 = vector.broadcast %cst_85 : f32 to vector<2x32xf32>
    %311 = arith.subf %310, %292 : vector<2x32xf32>
    %312 = arith.mulf %311, %309 : vector<2x32xf32>
    %313 = arith.mulf %292, %244 : vector<2x32xf32>
    %314 = arith.addf %312, %313 : vector<2x32xf32>
    %315 = vector.broadcast %252 : vector<2x1xf32> to vector<2x32xf32>
    %316 = arith.mulf %315, %314 : vector<2x32xf32>
    %cst_86 = arith.constant 1.000000e+00 : f32
    %317 = vector.broadcast %cst_86 : f32 to vector<2x1xf32>
    %318 = arith.subf %317, %252 : vector<2x1xf32>
    %319 = vector.broadcast %318 : vector<2x1xf32> to vector<2x32xf32>
    %320 = arith.mulf %319, %244 : vector<2x32xf32>
    %321 = arith.addf %316, %320 : vector<2x32xf32>
    %322 = vector.broadcast %252 : vector<2x1xf32> to vector<2x32xf32>
    %323 = arith.mulf %322, %321 : vector<2x32xf32>
    %c0_87 = arith.constant 0 : index
    %c0_88 = arith.constant 0 : index
    %c3_89 = arith.constant 3 : index
    %c0_90 = arith.constant 0 : index
    %324 = vector.load %arg8[%c0_87, %c0_88, %c3_89, %c0_90] : memref<1x2x8x32xf32, #tpu.memory_space<vmem>>, vector<1x2x1x32xf32>
    %325 = vector.shape_cast %324 : vector<1x2x1x32xf32> to vector<2x32xf32>
    %326 = vector.shape_cast %323 : vector<2x32xf32> to vector<1x2x1x32xf32>
    tpu.vector_store %arg8[%c0_87, %c0_88, %c3_89, %c0_90], %326 {strides = array<i32>} : memref<1x2x8x32xf32, #tpu.memory_space<vmem>>, vector<1x2x1x32xf32>,
    %327 = vector.extract_strided_slice %9 {offsets = [8, 0], sizes = [2, 32], strides = [1, 1]} : vector<16x32xf32> to vector<2x32xf32>
    %c0_91 = arith.constant 0 : index
    %c4 = arith.constant 4 : index
    %c0_92 = arith.constant 0 : index
    %c0_93 = arith.constant 0 : index
    %328 = vector.load %arg2[%c0_91, %c4, %c0_92, %c0_93] : memref<1x8x2x1xf32, #tpu.memory_space<vmem>>, vector<1x1x2x1xf32>
    %329 = vector.shape_cast %328 : vector<1x1x2x1xf32> to vector<2x1xf32>
    %330 = vector.extract_strided_slice %11 {offsets = [0, 0, 0], sizes = [1, 32, 32], strides = [1, 1, 1]} : vector<3x32x32xf32> to vector<1x32x32xf32>
    %331 = vector.shape_cast %330 : vector<1x32x32xf32> to vector<32x32xf32>
    %cst_94 = arith.constant dense<0.000000e+00> : vector<2x32xf32>
    %332 = tpu.matmul %327, %331, %cst_94 {dimension_numbers = #tpu.dot_dimension_numbers<[1], [0], [0], [1], [0, 0, 1, 1], [], []>} : vector<2x32xf32>, vector<32x32xf32>, vector<2x32xf32> -> vector<2x32xf32>
    %333 = vector.extract_strided_slice %15 {offsets = [0, 0, 0], sizes = [1, 1, 32], strides = [1, 1, 1]} : vector<3x1x32xf32> to vector<1x1x32xf32>
    %334 = vector.shape_cast %333 : vector<1x1x32xf32> to vector<1x32xf32>
    %335 = vector.broadcast %334 : vector<1x32xf32> to vector<2x32xf32>
    %336 = arith.addf %332, %335 : vector<2x32xf32>
    %337 = vector.extract_strided_slice %13 {offsets = [0, 0, 0], sizes = [1, 32, 32], strides = [1, 1, 1]} : vector<3x32x32xf32> to vector<1x32x32xf32>
    %338 = vector.shape_cast %337 : vector<1x32x32xf32> to vector<32x32xf32>
    %cst_95 = arith.constant dense<0.000000e+00> : vector<2x32xf32>
    %339 = tpu.matmul %321, %338, %cst_95 {dimension_numbers = #tpu.dot_dimension_numbers<[1], [0], [0], [1], [0, 0, 1, 1], [], []>} : vector<2x32xf32>, vector<32x32xf32>, vector<2x32xf32> -> vector<2x32xf32>
    %340 = arith.addf %336, %339 : vector<2x32xf32>
    %341 = vector.extract_strided_slice %17 {offsets = [0, 0, 0], sizes = [1, 1, 32], strides = [1, 1, 1]} : vector<3x1x32xf32> to vector<1x1x32xf32>
    %342 = vector.shape_cast %341 : vector<1x1x32xf32> to vector<1x32xf32>
    %343 = vector.broadcast %342 : vector<1x32xf32> to vector<2x32xf32>
    %344 = arith.addf %340, %343 : vector<2x32xf32>
    %345 = arith.negf %344 : vector<2x32xf32>
    %346 = math.exp %345 : vector<2x32xf32>
    %cst_96 = arith.constant 1.000000e+00 : f32
    %347 = vector.broadcast %cst_96 : f32 to vector<2x32xf32>
    %348 = arith.addf %347, %346 : vector<2x32xf32>
    %349 = arith.divf %347, %348 : vector<2x32xf32>
    %350 = vector.extract_strided_slice %11 {offsets = [1, 0, 0], sizes = [1, 32, 32], strides = [1, 1, 1]} : vector<3x32x32xf32> to vector<1x32x32xf32>
    %351 = vector.shape_cast %350 : vector<1x32x32xf32> to vector<32x32xf32>
    %cst_97 = arith.constant dense<0.000000e+00> : vector<2x32xf32>
    %352 = tpu.matmul %327, %351, %cst_97 {dimension_numbers = #tpu.dot_dimension_numbers<[1], [0], [0], [1], [0, 0, 1, 1], [], []>} : vector<2x32xf32>, vector<32x32xf32>, vector<2x32xf32> -> vector<2x32xf32>
    %353 = vector.extract_strided_slice %15 {offsets = [1, 0, 0], sizes = [1, 1, 32], strides = [1, 1, 1]} : vector<3x1x32xf32> to vector<1x1x32xf32>
    %354 = vector.shape_cast %353 : vector<1x1x32xf32> to vector<1x32xf32>
    %355 = vector.broadcast %354 : vector<1x32xf32> to vector<2x32xf32>
    %356 = arith.addf %352, %355 : vector<2x32xf32>
    %357 = vector.extract_strided_slice %13 {offsets = [1, 0, 0], sizes = [1, 32, 32], strides = [1, 1, 1]} : vector<3x32x32xf32> to vector<1x32x32xf32>
    %358 = vector.shape_cast %357 : vector<1x32x32xf32> to vector<32x32xf32>
    %cst_98 = arith.constant dense<0.000000e+00> : vector<2x32xf32>
    %359 = tpu.matmul %321, %358, %cst_98 {dimension_numbers = #tpu.dot_dimension_numbers<[1], [0], [0], [1], [0, 0, 1, 1], [], []>} : vector<2x32xf32>, vector<32x32xf32>, vector<2x32xf32> -> vector<2x32xf32>
    %360 = arith.addf %356, %359 : vector<2x32xf32>
    %361 = vector.extract_strided_slice %17 {offsets = [1, 0, 0], sizes = [1, 1, 32], strides = [1, 1, 1]} : vector<3x1x32xf32> to vector<1x1x32xf32>
    %362 = vector.shape_cast %361 : vector<1x1x32xf32> to vector<1x32xf32>
    %363 = vector.broadcast %362 : vector<1x32xf32> to vector<2x32xf32>
    %364 = arith.addf %360, %363 : vector<2x32xf32>
    %365 = arith.negf %364 : vector<2x32xf32>
    %366 = math.exp %365 : vector<2x32xf32>
    %cst_99 = arith.constant 1.000000e+00 : f32
    %367 = vector.broadcast %cst_99 : f32 to vector<2x32xf32>
    %368 = arith.addf %367, %366 : vector<2x32xf32>
    %369 = arith.divf %367, %368 : vector<2x32xf32>
    %370 = vector.extract_strided_slice %11 {offsets = [2, 0, 0], sizes = [1, 32, 32], strides = [1, 1, 1]} : vector<3x32x32xf32> to vector<1x32x32xf32>
    %371 = vector.shape_cast %370 : vector<1x32x32xf32> to vector<32x32xf32>
    %cst_100 = arith.constant dense<0.000000e+00> : vector<2x32xf32>
    %372 = tpu.matmul %327, %371, %cst_100 {dimension_numbers = #tpu.dot_dimension_numbers<[1], [0], [0], [1], [0, 0, 1, 1], [], []>} : vector<2x32xf32>, vector<32x32xf32>, vector<2x32xf32> -> vector<2x32xf32>
    %373 = vector.extract_strided_slice %15 {offsets = [2, 0, 0], sizes = [1, 1, 32], strides = [1, 1, 1]} : vector<3x1x32xf32> to vector<1x1x32xf32>
    %374 = vector.shape_cast %373 : vector<1x1x32xf32> to vector<1x32xf32>
    %375 = vector.broadcast %374 : vector<1x32xf32> to vector<2x32xf32>
    %376 = arith.addf %372, %375 : vector<2x32xf32>
    %377 = vector.extract_strided_slice %13 {offsets = [2, 0, 0], sizes = [1, 32, 32], strides = [1, 1, 1]} : vector<3x32x32xf32> to vector<1x32x32xf32>
    %378 = vector.shape_cast %377 : vector<1x32x32xf32> to vector<32x32xf32>
    %cst_101 = arith.constant dense<0.000000e+00> : vector<2x32xf32>
    %379 = tpu.matmul %321, %378, %cst_101 {dimension_numbers = #tpu.dot_dimension_numbers<[1], [0], [0], [1], [0, 0, 1, 1], [], []>} : vector<2x32xf32>, vector<32x32xf32>, vector<2x32xf32> -> vector<2x32xf32>
    %380 = vector.extract_strided_slice %17 {offsets = [2, 0, 0], sizes = [1, 1, 32], strides = [1, 1, 1]} : vector<3x1x32xf32> to vector<1x1x32xf32>
    %381 = vector.shape_cast %380 : vector<1x1x32xf32> to vector<1x32xf32>
    %382 = vector.broadcast %381 : vector<1x32xf32> to vector<2x32xf32>
    %383 = arith.addf %379, %382 : vector<2x32xf32>
    %384 = arith.mulf %349, %383 : vector<2x32xf32>
    %385 = arith.addf %376, %384 : vector<2x32xf32>
    %386 = math.tanh %385 : vector<2x32xf32>
    %cst_102 = arith.constant 1.000000e+00 : f32
    %387 = vector.broadcast %cst_102 : f32 to vector<2x32xf32>
    %388 = arith.subf %387, %369 : vector<2x32xf32>
    %389 = arith.mulf %388, %386 : vector<2x32xf32>
    %390 = arith.mulf %369, %321 : vector<2x32xf32>
    %391 = arith.addf %389, %390 : vector<2x32xf32>
    %392 = vector.broadcast %329 : vector<2x1xf32> to vector<2x32xf32>
    %393 = arith.mulf %392, %391 : vector<2x32xf32>
    %cst_103 = arith.constant 1.000000e+00 : f32
    %394 = vector.broadcast %cst_103 : f32 to vector<2x1xf32>
    %395 = arith.subf %394, %329 : vector<2x1xf32>
    %396 = vector.broadcast %395 : vector<2x1xf32> to vector<2x32xf32>
    %397 = arith.mulf %396, %321 : vector<2x32xf32>
    %398 = arith.addf %393, %397 : vector<2x32xf32>
    %399 = vector.broadcast %329 : vector<2x1xf32> to vector<2x32xf32>
    %400 = arith.mulf %399, %398 : vector<2x32xf32>
    %c0_104 = arith.constant 0 : index
    %c0_105 = arith.constant 0 : index
    %c4_106 = arith.constant 4 : index
    %c0_107 = arith.constant 0 : index
    %401 = vector.load %arg8[%c0_104, %c0_105, %c4_106, %c0_107] : memref<1x2x8x32xf32, #tpu.memory_space<vmem>>, vector<1x2x1x32xf32>
    %402 = vector.shape_cast %401 : vector<1x2x1x32xf32> to vector<2x32xf32>
    %403 = vector.shape_cast %400 : vector<2x32xf32> to vector<1x2x1x32xf32>
    tpu.vector_store %arg8[%c0_104, %c0_105, %c4_106, %c0_107], %403 {strides = array<i32>} : memref<1x2x8x32xf32, #tpu.memory_space<vmem>>, vector<1x2x1x32xf32>,
    %404 = vector.extract_strided_slice %9 {offsets = [10, 0], sizes = [2, 32], strides = [1, 1]} : vector<16x32xf32> to vector<2x32xf32>
    %c0_108 = arith.constant 0 : index
    %c5 = arith.constant 5 : index
    %c0_109 = arith.constant 0 : index
    %c0_110 = arith.constant 0 : index
    %405 = vector.load %arg2[%c0_108, %c5, %c0_109, %c0_110] : memref<1x8x2x1xf32, #tpu.memory_space<vmem>>, vector<1x1x2x1xf32>
    %406 = vector.shape_cast %405 : vector<1x1x2x1xf32> to vector<2x1xf32>
    %407 = vector.extract_strided_slice %11 {offsets = [0, 0, 0], sizes = [1, 32, 32], strides = [1, 1, 1]} : vector<3x32x32xf32> to vector<1x32x32xf32>
    %408 = vector.shape_cast %407 : vector<1x32x32xf32> to vector<32x32xf32>
    %cst_111 = arith.constant dense<0.000000e+00> : vector<2x32xf32>
    %409 = tpu.matmul %404, %408, %cst_111 {dimension_numbers = #tpu.dot_dimension_numbers<[1], [0], [0], [1], [0, 0, 1, 1], [], []>} : vector<2x32xf32>, vector<32x32xf32>, vector<2x32xf32> -> vector<2x32xf32>
    %410 = vector.extract_strided_slice %15 {offsets = [0, 0, 0], sizes = [1, 1, 32], strides = [1, 1, 1]} : vector<3x1x32xf32> to vector<1x1x32xf32>
    %411 = vector.shape_cast %410 : vector<1x1x32xf32> to vector<1x32xf32>
    %412 = vector.broadcast %411 : vector<1x32xf32> to vector<2x32xf32>
    %413 = arith.addf %409, %412 : vector<2x32xf32>
    %414 = vector.extract_strided_slice %13 {offsets = [0, 0, 0], sizes = [1, 32, 32], strides = [1, 1, 1]} : vector<3x32x32xf32> to vector<1x32x32xf32>
    %415 = vector.shape_cast %414 : vector<1x32x32xf32> to vector<32x32xf32>
    %cst_112 = arith.constant dense<0.000000e+00> : vector<2x32xf32>
    %416 = tpu.matmul %398, %415, %cst_112 {dimension_numbers = #tpu.dot_dimension_numbers<[1], [0], [0], [1], [0, 0, 1, 1], [], []>} : vector<2x32xf32>, vector<32x32xf32>, vector<2x32xf32> -> vector<2x32xf32>
    %417 = arith.addf %413, %416 : vector<2x32xf32>
    %418 = vector.extract_strided_slice %17 {offsets = [0, 0, 0], sizes = [1, 1, 32], strides = [1, 1, 1]} : vector<3x1x32xf32> to vector<1x1x32xf32>
    %419 = vector.shape_cast %418 : vector<1x1x32xf32> to vector<1x32xf32>
    %420 = vector.broadcast %419 : vector<1x32xf32> to vector<2x32xf32>
    %421 = arith.addf %417, %420 : vector<2x32xf32>
    %422 = arith.negf %421 : vector<2x32xf32>
    %423 = math.exp %422 : vector<2x32xf32>
    %cst_113 = arith.constant 1.000000e+00 : f32
    %424 = vector.broadcast %cst_113 : f32 to vector<2x32xf32>
    %425 = arith.addf %424, %423 : vector<2x32xf32>
    %426 = arith.divf %424, %425 : vector<2x32xf32>
    %427 = vector.extract_strided_slice %11 {offsets = [1, 0, 0], sizes = [1, 32, 32], strides = [1, 1, 1]} : vector<3x32x32xf32> to vector<1x32x32xf32>
    %428 = vector.shape_cast %427 : vector<1x32x32xf32> to vector<32x32xf32>
    %cst_114 = arith.constant dense<0.000000e+00> : vector<2x32xf32>
    %429 = tpu.matmul %404, %428, %cst_114 {dimension_numbers = #tpu.dot_dimension_numbers<[1], [0], [0], [1], [0, 0, 1, 1], [], []>} : vector<2x32xf32>, vector<32x32xf32>, vector<2x32xf32> -> vector<2x32xf32>
    %430 = vector.extract_strided_slice %15 {offsets = [1, 0, 0], sizes = [1, 1, 32], strides = [1, 1, 1]} : vector<3x1x32xf32> to vector<1x1x32xf32>
    %431 = vector.shape_cast %430 : vector<1x1x32xf32> to vector<1x32xf32>
    %432 = vector.broadcast %431 : vector<1x32xf32> to vector<2x32xf32>
    %433 = arith.addf %429, %432 : vector<2x32xf32>
    %434 = vector.extract_strided_slice %13 {offsets = [1, 0, 0], sizes = [1, 32, 32], strides = [1, 1, 1]} : vector<3x32x32xf32> to vector<1x32x32xf32>
    %435 = vector.shape_cast %434 : vector<1x32x32xf32> to vector<32x32xf32>
    %cst_115 = arith.constant dense<0.000000e+00> : vector<2x32xf32>
    %436 = tpu.matmul %398, %435, %cst_115 {dimension_numbers = #tpu.dot_dimension_numbers<[1], [0], [0], [1], [0, 0, 1, 1], [], []>} : vector<2x32xf32>, vector<32x32xf32>, vector<2x32xf32> -> vector<2x32xf32>
    %437 = arith.addf %433, %436 : vector<2x32xf32>
    %438 = vector.extract_strided_slice %17 {offsets = [1, 0, 0], sizes = [1, 1, 32], strides = [1, 1, 1]} : vector<3x1x32xf32> to vector<1x1x32xf32>
    %439 = vector.shape_cast %438 : vector<1x1x32xf32> to vector<1x32xf32>
    %440 = vector.broadcast %439 : vector<1x32xf32> to vector<2x32xf32>
    %441 = arith.addf %437, %440 : vector<2x32xf32>
    %442 = arith.negf %441 : vector<2x32xf32>
    %443 = math.exp %442 : vector<2x32xf32>
    %cst_116 = arith.constant 1.000000e+00 : f32
    %444 = vector.broadcast %cst_116 : f32 to vector<2x32xf32>
    %445 = arith.addf %444, %443 : vector<2x32xf32>
    %446 = arith.divf %444, %445 : vector<2x32xf32>
    %447 = vector.extract_strided_slice %11 {offsets = [2, 0, 0], sizes = [1, 32, 32], strides = [1, 1, 1]} : vector<3x32x32xf32> to vector<1x32x32xf32>
    %448 = vector.shape_cast %447 : vector<1x32x32xf32> to vector<32x32xf32>
    %cst_117 = arith.constant dense<0.000000e+00> : vector<2x32xf32>
    %449 = tpu.matmul %404, %448, %cst_117 {dimension_numbers = #tpu.dot_dimension_numbers<[1], [0], [0], [1], [0, 0, 1, 1], [], []>} : vector<2x32xf32>, vector<32x32xf32>, vector<2x32xf32> -> vector<2x32xf32>
    %450 = vector.extract_strided_slice %15 {offsets = [2, 0, 0], sizes = [1, 1, 32], strides = [1, 1, 1]} : vector<3x1x32xf32> to vector<1x1x32xf32>
    %451 = vector.shape_cast %450 : vector<1x1x32xf32> to vector<1x32xf32>
    %452 = vector.broadcast %451 : vector<1x32xf32> to vector<2x32xf32>
    %453 = arith.addf %449, %452 : vector<2x32xf32>
    %454 = vector.extract_strided_slice %13 {offsets = [2, 0, 0], sizes = [1, 32, 32], strides = [1, 1, 1]} : vector<3x32x32xf32> to vector<1x32x32xf32>
    %455 = vector.shape_cast %454 : vector<1x32x32xf32> to vector<32x32xf32>
    %cst_118 = arith.constant dense<0.000000e+00> : vector<2x32xf32>
    %456 = tpu.matmul %398, %455, %cst_118 {dimension_numbers = #tpu.dot_dimension_numbers<[1], [0], [0], [1], [0, 0, 1, 1], [], []>} : vector<2x32xf32>, vector<32x32xf32>, vector<2x32xf32> -> vector<2x32xf32>
    %457 = vector.extract_strided_slice %17 {offsets = [2, 0, 0], sizes = [1, 1, 32], strides = [1, 1, 1]} : vector<3x1x32xf32> to vector<1x1x32xf32>
    %458 = vector.shape_cast %457 : vector<1x1x32xf32> to vector<1x32xf32>
    %459 = vector.broadcast %458 : vector<1x32xf32> to vector<2x32xf32>
    %460 = arith.addf %456, %459 : vector<2x32xf32>
    %461 = arith.mulf %426, %460 : vector<2x32xf32>
    %462 = arith.addf %453, %461 : vector<2x32xf32>
    %463 = math.tanh %462 : vector<2x32xf32>
    %cst_119 = arith.constant 1.000000e+00 : f32
    %464 = vector.broadcast %cst_119 : f32 to vector<2x32xf32>
    %465 = arith.subf %464, %446 : vector<2x32xf32>
    %466 = arith.mulf %465, %463 : vector<2x32xf32>
    %467 = arith.mulf %446, %398 : vector<2x32xf32>
    %468 = arith.addf %466, %467 : vector<2x32xf32>
    %469 = vector.broadcast %406 : vector<2x1xf32> to vector<2x32xf32>
    %470 = arith.mulf %469, %468 : vector<2x32xf32>
    %cst_120 = arith.constant 1.000000e+00 : f32
    %471 = vector.broadcast %cst_120 : f32 to vector<2x1xf32>
    %472 = arith.subf %471, %406 : vector<2x1xf32>
    %473 = vector.broadcast %472 : vector<2x1xf32> to vector<2x32xf32>
    %474 = arith.mulf %473, %398 : vector<2x32xf32>
    %475 = arith.addf %470, %474 : vector<2x32xf32>
    %476 = vector.broadcast %406 : vector<2x1xf32> to vector<2x32xf32>
    %477 = arith.mulf %476, %475 : vector<2x32xf32>
    %c0_121 = arith.constant 0 : index
    %c0_122 = arith.constant 0 : index
    %c5_123 = arith.constant 5 : index
    %c0_124 = arith.constant 0 : index
    %478 = vector.load %arg8[%c0_121, %c0_122, %c5_123, %c0_124] : memref<1x2x8x32xf32, #tpu.memory_space<vmem>>, vector<1x2x1x32xf32>
    %479 = vector.shape_cast %478 : vector<1x2x1x32xf32> to vector<2x32xf32>
    %480 = vector.shape_cast %477 : vector<2x32xf32> to vector<1x2x1x32xf32>
    tpu.vector_store %arg8[%c0_121, %c0_122, %c5_123, %c0_124], %480 {strides = array<i32>} : memref<1x2x8x32xf32, #tpu.memory_space<vmem>>, vector<1x2x1x32xf32>,
    %481 = vector.extract_strided_slice %9 {offsets = [12, 0], sizes = [2, 32], strides = [1, 1]} : vector<16x32xf32> to vector<2x32xf32>
    %c0_125 = arith.constant 0 : index
    %c6 = arith.constant 6 : index
    %c0_126 = arith.constant 0 : index
    %c0_127 = arith.constant 0 : index
    %482 = vector.load %arg2[%c0_125, %c6, %c0_126, %c0_127] : memref<1x8x2x1xf32, #tpu.memory_space<vmem>>, vector<1x1x2x1xf32>
    %483 = vector.shape_cast %482 : vector<1x1x2x1xf32> to vector<2x1xf32>
    %484 = vector.extract_strided_slice %11 {offsets = [0, 0, 0], sizes = [1, 32, 32], strides = [1, 1, 1]} : vector<3x32x32xf32> to vector<1x32x32xf32>
    %485 = vector.shape_cast %484 : vector<1x32x32xf32> to vector<32x32xf32>
    %cst_128 = arith.constant dense<0.000000e+00> : vector<2x32xf32>
    %486 = tpu.matmul %481, %485, %cst_128 {dimension_numbers = #tpu.dot_dimension_numbers<[1], [0], [0], [1], [0, 0, 1, 1], [], []>} : vector<2x32xf32>, vector<32x32xf32>, vector<2x32xf32> -> vector<2x32xf32>
    %487 = vector.extract_strided_slice %15 {offsets = [0, 0, 0], sizes = [1, 1, 32], strides = [1, 1, 1]} : vector<3x1x32xf32> to vector<1x1x32xf32>
    %488 = vector.shape_cast %487 : vector<1x1x32xf32> to vector<1x32xf32>
    %489 = vector.broadcast %488 : vector<1x32xf32> to vector<2x32xf32>
    %490 = arith.addf %486, %489 : vector<2x32xf32>
    %491 = vector.extract_strided_slice %13 {offsets = [0, 0, 0], sizes = [1, 32, 32], strides = [1, 1, 1]} : vector<3x32x32xf32> to vector<1x32x32xf32>
    %492 = vector.shape_cast %491 : vector<1x32x32xf32> to vector<32x32xf32>
    %cst_129 = arith.constant dense<0.000000e+00> : vector<2x32xf32>
    %493 = tpu.matmul %475, %492, %cst_129 {dimension_numbers = #tpu.dot_dimension_numbers<[1], [0], [0], [1], [0, 0, 1, 1], [], []>} : vector<2x32xf32>, vector<32x32xf32>, vector<2x32xf32> -> vector<2x32xf32>
    %494 = arith.addf %490, %493 : vector<2x32xf32>
    %495 = vector.extract_strided_slice %17 {offsets = [0, 0, 0], sizes = [1, 1, 32], strides = [1, 1, 1]} : vector<3x1x32xf32> to vector<1x1x32xf32>
    %496 = vector.shape_cast %495 : vector<1x1x32xf32> to vector<1x32xf32>
    %497 = vector.broadcast %496 : vector<1x32xf32> to vector<2x32xf32>
    %498 = arith.addf %494, %497 : vector<2x32xf32>
    %499 = arith.negf %498 : vector<2x32xf32>
    %500 = math.exp %499 : vector<2x32xf32>
    %cst_130 = arith.constant 1.000000e+00 : f32
    %501 = vector.broadcast %cst_130 : f32 to vector<2x32xf32>
    %502 = arith.addf %501, %500 : vector<2x32xf32>
    %503 = arith.divf %501, %502 : vector<2x32xf32>
    %504 = vector.extract_strided_slice %11 {offsets = [1, 0, 0], sizes = [1, 32, 32], strides = [1, 1, 1]} : vector<3x32x32xf32> to vector<1x32x32xf32>
    %505 = vector.shape_cast %504 : vector<1x32x32xf32> to vector<32x32xf32>
    %cst_131 = arith.constant dense<0.000000e+00> : vector<2x32xf32>
    %506 = tpu.matmul %481, %505, %cst_131 {dimension_numbers = #tpu.dot_dimension_numbers<[1], [0], [0], [1], [0, 0, 1, 1], [], []>} : vector<2x32xf32>, vector<32x32xf32>, vector<2x32xf32> -> vector<2x32xf32>
    %507 = vector.extract_strided_slice %15 {offsets = [1, 0, 0], sizes = [1, 1, 32], strides = [1, 1, 1]} : vector<3x1x32xf32> to vector<1x1x32xf32>
    %508 = vector.shape_cast %507 : vector<1x1x32xf32> to vector<1x32xf32>
    %509 = vector.broadcast %508 : vector<1x32xf32> to vector<2x32xf32>
    %510 = arith.addf %506, %509 : vector<2x32xf32>
    %511 = vector.extract_strided_slice %13 {offsets = [1, 0, 0], sizes = [1, 32, 32], strides = [1, 1, 1]} : vector<3x32x32xf32> to vector<1x32x32xf32>
    %512 = vector.shape_cast %511 : vector<1x32x32xf32> to vector<32x32xf32>
    %cst_132 = arith.constant dense<0.000000e+00> : vector<2x32xf32>
    %513 = tpu.matmul %475, %512, %cst_132 {dimension_numbers = #tpu.dot_dimension_numbers<[1], [0], [0], [1], [0, 0, 1, 1], [], []>} : vector<2x32xf32>, vector<32x32xf32>, vector<2x32xf32> -> vector<2x32xf32>
    %514 = arith.addf %510, %513 : vector<2x32xf32>
    %515 = vector.extract_strided_slice %17 {offsets = [1, 0, 0], sizes = [1, 1, 32], strides = [1, 1, 1]} : vector<3x1x32xf32> to vector<1x1x32xf32>
    %516 = vector.shape_cast %515 : vector<1x1x32xf32> to vector<1x32xf32>
    %517 = vector.broadcast %516 : vector<1x32xf32> to vector<2x32xf32>
    %518 = arith.addf %514, %517 : vector<2x32xf32>
    %519 = arith.negf %518 : vector<2x32xf32>
    %520 = math.exp %519 : vector<2x32xf32>
    %cst_133 = arith.constant 1.000000e+00 : f32
    %521 = vector.broadcast %cst_133 : f32 to vector<2x32xf32>
    %522 = arith.addf %521, %520 : vector<2x32xf32>
    %523 = arith.divf %521, %522 : vector<2x32xf32>
    %524 = vector.extract_strided_slice %11 {offsets = [2, 0, 0], sizes = [1, 32, 32], strides = [1, 1, 1]} : vector<3x32x32xf32> to vector<1x32x32xf32>
    %525 = vector.shape_cast %524 : vector<1x32x32xf32> to vector<32x32xf32>
    %cst_134 = arith.constant dense<0.000000e+00> : vector<2x32xf32>
    %526 = tpu.matmul %481, %525, %cst_134 {dimension_numbers = #tpu.dot_dimension_numbers<[1], [0], [0], [1], [0, 0, 1, 1], [], []>} : vector<2x32xf32>, vector<32x32xf32>, vector<2x32xf32> -> vector<2x32xf32>
    %527 = vector.extract_strided_slice %15 {offsets = [2, 0, 0], sizes = [1, 1, 32], strides = [1, 1, 1]} : vector<3x1x32xf32> to vector<1x1x32xf32>
    %528 = vector.shape_cast %527 : vector<1x1x32xf32> to vector<1x32xf32>
    %529 = vector.broadcast %528 : vector<1x32xf32> to vector<2x32xf32>
    %530 = arith.addf %526, %529 : vector<2x32xf32>
    %531 = vector.extract_strided_slice %13 {offsets = [2, 0, 0], sizes = [1, 32, 32], strides = [1, 1, 1]} : vector<3x32x32xf32> to vector<1x32x32xf32>
    %532 = vector.shape_cast %531 : vector<1x32x32xf32> to vector<32x32xf32>
    %cst_135 = arith.constant dense<0.000000e+00> : vector<2x32xf32>
    %533 = tpu.matmul %475, %532, %cst_135 {dimension_numbers = #tpu.dot_dimension_numbers<[1], [0], [0], [1], [0, 0, 1, 1], [], []>} : vector<2x32xf32>, vector<32x32xf32>, vector<2x32xf32> -> vector<2x32xf32>
    %534 = vector.extract_strided_slice %17 {offsets = [2, 0, 0], sizes = [1, 1, 32], strides = [1, 1, 1]} : vector<3x1x32xf32> to vector<1x1x32xf32>
    %535 = vector.shape_cast %534 : vector<1x1x32xf32> to vector<1x32xf32>
    %536 = vector.broadcast %535 : vector<1x32xf32> to vector<2x32xf32>
    %537 = arith.addf %533, %536 : vector<2x32xf32>
    %538 = arith.mulf %503, %537 : vector<2x32xf32>
    %539 = arith.addf %530, %538 : vector<2x32xf32>
    %540 = math.tanh %539 : vector<2x32xf32>
    %cst_136 = arith.constant 1.000000e+00 : f32
    %541 = vector.broadcast %cst_136 : f32 to vector<2x32xf32>
    %542 = arith.subf %541, %523 : vector<2x32xf32>
    %543 = arith.mulf %542, %540 : vector<2x32xf32>
    %544 = arith.mulf %523, %475 : vector<2x32xf32>
    %545 = arith.addf %543, %544 : vector<2x32xf32>
    %546 = vector.broadcast %483 : vector<2x1xf32> to vector<2x32xf32>
    %547 = arith.mulf %546, %545 : vector<2x32xf32>
    %cst_137 = arith.constant 1.000000e+00 : f32
    %548 = vector.broadcast %cst_137 : f32 to vector<2x1xf32>
    %549 = arith.subf %548, %483 : vector<2x1xf32>
    %550 = vector.broadcast %549 : vector<2x1xf32> to vector<2x32xf32>
    %551 = arith.mulf %550, %475 : vector<2x32xf32>
    %552 = arith.addf %547, %551 : vector<2x32xf32>
    %553 = vector.broadcast %483 : vector<2x1xf32> to vector<2x32xf32>
    %554 = arith.mulf %553, %552 : vector<2x32xf32>
    %c0_138 = arith.constant 0 : index
    %c0_139 = arith.constant 0 : index
    %c6_140 = arith.constant 6 : index
    %c0_141 = arith.constant 0 : index
    %555 = vector.load %arg8[%c0_138, %c0_139, %c6_140, %c0_141] : memref<1x2x8x32xf32, #tpu.memory_space<vmem>>, vector<1x2x1x32xf32>
    %556 = vector.shape_cast %555 : vector<1x2x1x32xf32> to vector<2x32xf32>
    %557 = vector.shape_cast %554 : vector<2x32xf32> to vector<1x2x1x32xf32>
    tpu.vector_store %arg8[%c0_138, %c0_139, %c6_140, %c0_141], %557 {strides = array<i32>} : memref<1x2x8x32xf32, #tpu.memory_space<vmem>>, vector<1x2x1x32xf32>,
    %558 = vector.extract_strided_slice %9 {offsets = [14, 0], sizes = [2, 32], strides = [1, 1]} : vector<16x32xf32> to vector<2x32xf32>
    %c0_142 = arith.constant 0 : index
    %c7 = arith.constant 7 : index
    %c0_143 = arith.constant 0 : index
    %c0_144 = arith.constant 0 : index
    %559 = vector.load %arg2[%c0_142, %c7, %c0_143, %c0_144] : memref<1x8x2x1xf32, #tpu.memory_space<vmem>>, vector<1x1x2x1xf32>
    %560 = vector.shape_cast %559 : vector<1x1x2x1xf32> to vector<2x1xf32>
    %561 = vector.extract_strided_slice %11 {offsets = [0, 0, 0], sizes = [1, 32, 32], strides = [1, 1, 1]} : vector<3x32x32xf32> to vector<1x32x32xf32>
    %562 = vector.shape_cast %561 : vector<1x32x32xf32> to vector<32x32xf32>
    %cst_145 = arith.constant dense<0.000000e+00> : vector<2x32xf32>
    %563 = tpu.matmul %558, %562, %cst_145 {dimension_numbers = #tpu.dot_dimension_numbers<[1], [0], [0], [1], [0, 0, 1, 1], [], []>} : vector<2x32xf32>, vector<32x32xf32>, vector<2x32xf32> -> vector<2x32xf32>
    %564 = vector.extract_strided_slice %15 {offsets = [0, 0, 0], sizes = [1, 1, 32], strides = [1, 1, 1]} : vector<3x1x32xf32> to vector<1x1x32xf32>
    %565 = vector.shape_cast %564 : vector<1x1x32xf32> to vector<1x32xf32>
    %566 = vector.broadcast %565 : vector<1x32xf32> to vector<2x32xf32>
    %567 = arith.addf %563, %566 : vector<2x32xf32>
    %568 = vector.extract_strided_slice %13 {offsets = [0, 0, 0], sizes = [1, 32, 32], strides = [1, 1, 1]} : vector<3x32x32xf32> to vector<1x32x32xf32>
    %569 = vector.shape_cast %568 : vector<1x32x32xf32> to vector<32x32xf32>
    %cst_146 = arith.constant dense<0.000000e+00> : vector<2x32xf32>
    %570 = tpu.matmul %552, %569, %cst_146 {dimension_numbers = #tpu.dot_dimension_numbers<[1], [0], [0], [1], [0, 0, 1, 1], [], []>} : vector<2x32xf32>, vector<32x32xf32>, vector<2x32xf32> -> vector<2x32xf32>
    %571 = arith.addf %567, %570 : vector<2x32xf32>
    %572 = vector.extract_strided_slice %17 {offsets = [0, 0, 0], sizes = [1, 1, 32], strides = [1, 1, 1]} : vector<3x1x32xf32> to vector<1x1x32xf32>
    %573 = vector.shape_cast %572 : vector<1x1x32xf32> to vector<1x32xf32>
    %574 = vector.broadcast %573 : vector<1x32xf32> to vector<2x32xf32>
    %575 = arith.addf %571, %574 : vector<2x32xf32>
    %576 = arith.negf %575 : vector<2x32xf32>
    %577 = math.exp %576 : vector<2x32xf32>
    %cst_147 = arith.constant 1.000000e+00 : f32
    %578 = vector.broadcast %cst_147 : f32 to vector<2x32xf32>
    %579 = arith.addf %578, %577 : vector<2x32xf32>
    %580 = arith.divf %578, %579 : vector<2x32xf32>
    %581 = vector.extract_strided_slice %11 {offsets = [1, 0, 0], sizes = [1, 32, 32], strides = [1, 1, 1]} : vector<3x32x32xf32> to vector<1x32x32xf32>
    %582 = vector.shape_cast %581 : vector<1x32x32xf32> to vector<32x32xf32>
    %cst_148 = arith.constant dense<0.000000e+00> : vector<2x32xf32>
    %583 = tpu.matmul %558, %582, %cst_148 {dimension_numbers = #tpu.dot_dimension_numbers<[1], [0], [0], [1], [0, 0, 1, 1], [], []>} : vector<2x32xf32>, vector<32x32xf32>, vector<2x32xf32> -> vector<2x32xf32>
    %584 = vector.extract_strided_slice %15 {offsets = [1, 0, 0], sizes = [1, 1, 32], strides = [1, 1, 1]} : vector<3x1x32xf32> to vector<1x1x32xf32>
    %585 = vector.shape_cast %584 : vector<1x1x32xf32> to vector<1x32xf32>
    %586 = vector.broadcast %585 : vector<1x32xf32> to vector<2x32xf32>
    %587 = arith.addf %583, %586 : vector<2x32xf32>
    %588 = vector.extract_strided_slice %13 {offsets = [1, 0, 0], sizes = [1, 32, 32], strides = [1, 1, 1]} : vector<3x32x32xf32> to vector<1x32x32xf32>
    %589 = vector.shape_cast %588 : vector<1x32x32xf32> to vector<32x32xf32>
    %cst_149 = arith.constant dense<0.000000e+00> : vector<2x32xf32>
    %590 = tpu.matmul %552, %589, %cst_149 {dimension_numbers = #tpu.dot_dimension_numbers<[1], [0], [0], [1], [0, 0, 1, 1], [], []>} : vector<2x32xf32>, vector<32x32xf32>, vector<2x32xf32> -> vector<2x32xf32>
    %591 = arith.addf %587, %590 : vector<2x32xf32>
    %592 = vector.extract_strided_slice %17 {offsets = [1, 0, 0], sizes = [1, 1, 32], strides = [1, 1, 1]} : vector<3x1x32xf32> to vector<1x1x32xf32>
    %593 = vector.shape_cast %592 : vector<1x1x32xf32> to vector<1x32xf32>
    %594 = vector.broadcast %593 : vector<1x32xf32> to vector<2x32xf32>
    %595 = arith.addf %591, %594 : vector<2x32xf32>
    %596 = arith.negf %595 : vector<2x32xf32>
    %597 = math.exp %596 : vector<2x32xf32>
    %cst_150 = arith.constant 1.000000e+00 : f32
    %598 = vector.broadcast %cst_150 : f32 to vector<2x32xf32>
    %599 = arith.addf %598, %597 : vector<2x32xf32>
    %600 = arith.divf %598, %599 : vector<2x32xf32>
    %601 = vector.extract_strided_slice %11 {offsets = [2, 0, 0], sizes = [1, 32, 32], strides = [1, 1, 1]} : vector<3x32x32xf32> to vector<1x32x32xf32>
    %602 = vector.shape_cast %601 : vector<1x32x32xf32> to vector<32x32xf32>
    %cst_151 = arith.constant dense<0.000000e+00> : vector<2x32xf32>
    %603 = tpu.matmul %558, %602, %cst_151 {dimension_numbers = #tpu.dot_dimension_numbers<[1], [0], [0], [1], [0, 0, 1, 1], [], []>} : vector<2x32xf32>, vector<32x32xf32>, vector<2x32xf32> -> vector<2x32xf32>
    %604 = vector.extract_strided_slice %15 {offsets = [2, 0, 0], sizes = [1, 1, 32], strides = [1, 1, 1]} : vector<3x1x32xf32> to vector<1x1x32xf32>
    %605 = vector.shape_cast %604 : vector<1x1x32xf32> to vector<1x32xf32>
    %606 = vector.broadcast %605 : vector<1x32xf32> to vector<2x32xf32>
    %607 = arith.addf %603, %606 : vector<2x32xf32>
    %608 = vector.extract_strided_slice %13 {offsets = [2, 0, 0], sizes = [1, 32, 32], strides = [1, 1, 1]} : vector<3x32x32xf32> to vector<1x32x32xf32>
    %609 = vector.shape_cast %608 : vector<1x32x32xf32> to vector<32x32xf32>
    %cst_152 = arith.constant dense<0.000000e+00> : vector<2x32xf32>
    %610 = tpu.matmul %552, %609, %cst_152 {dimension_numbers = #tpu.dot_dimension_numbers<[1], [0], [0], [1], [0, 0, 1, 1], [], []>} : vector<2x32xf32>, vector<32x32xf32>, vector<2x32xf32> -> vector<2x32xf32>
    %611 = vector.extract_strided_slice %17 {offsets = [2, 0, 0], sizes = [1, 1, 32], strides = [1, 1, 1]} : vector<3x1x32xf32> to vector<1x1x32xf32>
    %612 = vector.shape_cast %611 : vector<1x1x32xf32> to vector<1x32xf32>
    %613 = vector.broadcast %612 : vector<1x32xf32> to vector<2x32xf32>
    %614 = arith.addf %610, %613 : vector<2x32xf32>
    %615 = arith.mulf %580, %614 : vector<2x32xf32>
    %616 = arith.addf %607, %615 : vector<2x32xf32>
    %617 = math.tanh %616 : vector<2x32xf32>
    %cst_153 = arith.constant 1.000000e+00 : f32
    %618 = vector.broadcast %cst_153 : f32 to vector<2x32xf32>
    %619 = arith.subf %618, %600 : vector<2x32xf32>
    %620 = arith.mulf %619, %617 : vector<2x32xf32>
    %621 = arith.mulf %600, %552 : vector<2x32xf32>
    %622 = arith.addf %620, %621 : vector<2x32xf32>
    %623 = vector.broadcast %560 : vector<2x1xf32> to vector<2x32xf32>
    %624 = arith.mulf %623, %622 : vector<2x32xf32>
    %cst_154 = arith.constant 1.000000e+00 : f32
    %625 = vector.broadcast %cst_154 : f32 to vector<2x1xf32>
    %626 = arith.subf %625, %560 : vector<2x1xf32>
    %627 = vector.broadcast %626 : vector<2x1xf32> to vector<2x32xf32>
    %628 = arith.mulf %627, %552 : vector<2x32xf32>
    %629 = arith.addf %624, %628 : vector<2x32xf32>
    %630 = vector.broadcast %560 : vector<2x1xf32> to vector<2x32xf32>
    %631 = arith.mulf %630, %629 : vector<2x32xf32>
    %c0_155 = arith.constant 0 : index
    %c0_156 = arith.constant 0 : index
    %c7_157 = arith.constant 7 : index
    %c0_158 = arith.constant 0 : index
    %632 = vector.load %arg8[%c0_155, %c0_156, %c7_157, %c0_158] : memref<1x2x8x32xf32, #tpu.memory_space<vmem>>, vector<1x2x1x32xf32>
    %633 = vector.shape_cast %632 : vector<1x2x1x32xf32> to vector<2x32xf32>
    %634 = vector.shape_cast %631 : vector<2x32xf32> to vector<1x2x1x32xf32>
    tpu.vector_store %arg8[%c0_155, %c0_156, %c7_157, %c0_158], %634 {strides = array<i32>} : memref<1x2x8x32xf32, #tpu.memory_space<vmem>>, vector<1x2x1x32xf32>,
    %c0_159 = arith.constant 0 : index
    %c0_160 = arith.constant 0 : index
    %c0_161 = arith.constant 0 : index
    %635 = vector.load %arg9[%c0_159, %c0_160, %c0_161] : memref<1x2x32xf32, #tpu.memory_space<vmem>>, vector<1x2x32xf32>
    %636 = vector.shape_cast %635 : vector<1x2x32xf32> to vector<2x32xf32>
    %637 = vector.shape_cast %629 : vector<2x32xf32> to vector<1x2x32xf32>
    tpu.vector_store %arg9[%c0_159, %c0_160, %c0_161], %637 {strides = array<i32>} : memref<1x2x32xf32, #tpu.memory_space<vmem>>, vector<1x2x32xf32>,
    return
  }
  func.func @transform_0(%arg0: i32) -> (i32, i32, i32) {
    %c0_i32 = arith.constant 0 : i32
    %c0_i32_0 = arith.constant 0 : i32
    %c0_i32_1 = arith.constant 0 : i32
    return %arg0, %c0_i32, %c0_i32_0 : i32, i32, i32
  }
  func.func @transform_1(%arg0: i32) -> (i32, i32, i32, i32) {
    %c0_i32 = arith.constant 0 : i32
    %c0_i32_0 = arith.constant 0 : i32
    %c0_i32_1 = arith.constant 0 : i32
    %c0_i32_2 = arith.constant 0 : i32
    return %arg0, %c0_i32, %c0_i32_0, %c0_i32_1 : i32, i32, i32, i32
  }
  func.func @transform_2(%arg0: i32) -> (i32, i32, i32) {
    %c0_i32 = arith.constant 0 : i32
    %c0_i32_0 = arith.constant 0 : i32
    %c0_i32_1 = arith.constant 0 : i32
    return %arg0, %c0_i32, %c0_i32_0 : i32, i32, i32
  }
  func.func @transform_3(%arg0: i32) -> (i32, i32, i32, i32) {
    %c0_i32 = arith.constant 0 : i32
    %c0_i32_0 = arith.constant 0 : i32
    %c0_i32_1 = arith.constant 0 : i32
    %c0_i32_2 = arith.constant 0 : i32
    return %arg0, %c0_i32, %c0_i32_0, %c0_i32_1 : i32, i32, i32, i32
  }
  func.func @transform_4(%arg0: i32) -> (i32, i32, i32, i32) {
    %c0_i32 = arith.constant 0 : i32
    %c0_i32_0 = arith.constant 0 : i32
    %c0_i32_1 = arith.constant 0 : i32
    %c0_i32_2 = arith.constant 0 : i32
    return %arg0, %c0_i32, %c0_i32_0, %c0_i32_1 : i32, i32, i32, i32
  }
  func.func @transform_5(%arg0: i32) -> (i32, i32, i32, i32) {
    %c0_i32 = arith.constant 0 : i32
    %c0_i32_0 = arith.constant 0 : i32
    %c0_i32_1 = arith.constant 0 : i32
    %c0_i32_2 = arith.constant 0 : i32
    return %arg0, %c0_i32, %c0_i32_0, %c0_i32_1 : i32, i32, i32, i32
  }
  func.func @transform_6(%arg0: i32) -> (i32, i32, i32, i32) {
    %c0_i32 = arith.constant 0 : i32
    %c0_i32_0 = arith.constant 0 : i32
    %c0_i32_1 = arith.constant 0 : i32
    %c0_i32_2 = arith.constant 0 : i32
    return %arg0, %c0_i32, %c0_i32_0, %c0_i32_1 : i32, i32, i32, i32
  }
  func.func @transform_7(%arg0: i32) -> (i32, i32, i32, i32) {
    %c0_i32 = arith.constant 0 : i32
    %c0_i32_0 = arith.constant 0 : i32
    %c0_i32_1 = arith.constant 0 : i32
    %c0_i32_2 = arith.constant 0 : i32
    return %arg0, %c0_i32, %c0_i32_0, %c0_i32_1 : i32, i32, i32, i32
  }
  func.func @transform_8(%arg0: i32) -> (i32, i32, i32) {
    %c0_i32 = arith.constant 0 : i32
    %c0_i32_0 = arith.constant 0 : i32
    %c0_i32_1 = arith.constant 0 : i32
    return %arg0, %c0_i32, %c0_i32_0 : i32, i32, i32
  }
}

</mosaic_0001>

<llo_original>
// kernel: tpu_custom_call.1
$region0: #{tpu_custom_call.1}
  #allocation0 [shape = 'u32[]', space=smem, size = 0x4, offset = 0x4, fixed_abs, tag = 'smem constant byte address 0x4 - core index']
  #allocation1 [shape = 'u32[72,128]{1,0:T(1,128)}', space=vmem, size = 0x9000, scoped, tag = 'internal scratch']
  %s0 = inlined_call_operand.vmem [shape: s32[2,16,1], index: 0, kind: input, shape index: {}]
  %s1 = inlined_call_operand.vmem [shape: f32[2,8,2,1], index: 1, kind: input, shape index: {}]
  %s2 = inlined_call_operand.vmem [shape: f32[2,128,32], index: 2, kind: input, shape index: {}]
  %s3 = inlined_call_operand.vmem [shape: f32[2,3,32,32], index: 3, kind: input, shape index: {}]
  %s4 = inlined_call_operand.hbm [shape: f32[2,3,32,32], index: 4, kind: input, shape index: {}]
  %s5 = inlined_call_operand.vmem [shape: f32[2,3,1,32], index: 5, kind: input, shape index: {}]
  %s6 = inlined_call_operand.vmem [shape: f32[2,3,1,32], index: 6, kind: input, shape index: {}]
  %s7 = inlined_call_operand.hbm [shape: f32[2,2,8,32], index: 7, kind: output, shape index: {0}]
  %s8 = inlined_call_operand.hbm [shape: f32[2,2,32], index: 8, kind: output, shape index: {1}]
  %9 = xla_tuple %s7, %s8
  %s10 = sld [smem:[#allocation0]]
  $region73: #{tpu_custom_call.1} parent=0
    _
  %s12 = ssub.s32 1, %s10
  %s13 = scalar_select 0, %s12, %s10
  $region1: #{tpu_custom_call.1} parent=0
    #allocation2 [shape = 'u8[98304]{0}', space=vmem, size = 0x18000, scoped, tag = 'input window, operand 4']
    #allocation3 [shape = 's32[2]{0}', space=sflag, size = 0x8, scoped, tag = 'scoped memory for tpu_custom_call.1']
    #allocation4 [shape = 's32[2]{0}', space=sflag, size = 0x8, scoped, tag = 'scoped memory for tpu_custom_call.1']
    #allocation5 [shape = 'u8[16384]{0}', space=vmem, size = 0x4000, scoped, tag = 'output window, operand 0']
    #allocation6 [shape = 'u8[2048]{0}', space=vmem, size = 0x800, scoped, tag = 'output window, operand 1']
    #allocation7 [shape = 's32[2]{0}', space=sflag, size = 0x8, scoped, tag = 'scoped memory for tpu_custom_call.1']
    %14 = vsyncpa [#allocation3], 0
    %s15 = scalar_lea.sflag [#allocation3], 1
    %16 = vsyncpa %s15, 0
    %17 = vsyncpa [#allocation4], 0
    %s18 = scalar_lea.sflag [#allocation4], 1
    %19 = vsyncpa %s18, 0
    %20 = vsyncpa [#allocation7], 0
    %s21 = scalar_lea.sflag [#allocation7], 1
    %22 = vsyncpa %s21, 0
    loop: start=0, step=1, limit=4
    $region2: #{tpu_custom_call.1} parent=1 // loop_pre_header
      _
    $region3: #{tpu_custom_call.1} parent=1 // loop_header
      %s24 = sphi 0, %s28
      %p25 = scmp.ge.s32.totalorder %s24, 4
      %s34 = sphi 0, %s36
      %s37 = sphi 0, %s34
      %s38 = sphi 0, %s37
      %s54 = sphi 0, %s38
      %s60 = sphi 0, %s62
      %s63 = sphi 0, %s60
      %s64 = sphi 0, %s63
      %s80 = sphi 0, %s64
      %s86 = sphi 0, %s88
      %s89 = sphi 0, %s86
      %s90 = sphi 0, %s89
      %s106 = sphi 0, %s90
      %s112 = sphi 0, %s114
      %s115 = sphi 0, %s112
      %s116 = sphi 0, %s115
      %s132 = sphi 0, %s116
      %s138 = sphi 0, %s140
      %s141 = sphi 0, %s138
      %s142 = sphi 0, %s141
      %s158 = sphi 0, %s142
      %s164 = sphi 0, %s166
      %s167 = sphi 0, %s164
      %s168 = sphi 0, %s167
      %s184 = sphi 0, %s168
      %s190 = sphi 0, %s192
      %s193 = sphi 0, %s190
      %s194 = sphi 0, %s193
      %s210 = sphi 0, %s194
      %s216 = sphi 0, %s218
      %s219 = sphi 0, %s216
      %s220 = sphi 0, %s219
      %s236 = sphi 0, %s220
      %s242 = sphi 0, %s244
      %s245 = sphi 0, %s242
      %s246 = sphi 0, %s245
      %s262 = sphi 0, %s246
    $region4: #{tpu_custom_call.1} parent=1 // loop_header_branch
      %27 = sbr.rel (%p25) target = $region8
    $region5: #{tpu_custom_call.1} parent=1 // loop_body
      %s29 = ssub.s32 %s24, 1
      %s30 = ssub.s32 %s24, 2
      %s31 = sadd.s32 %s24, 1
      %s32 = ssub.s32 %s24, %s31
      %p33 = scmp.eq.s32.totalorder %s32, 0
      %s35 = sadd.s32 %s34, 1
      %s36 = scalar_select %p33, %s34, %s35
      %p39 = pneg %p33
      %p40 = scmp.eq.s32.totalorder %s24, 1
      %p41 = por %p39, %p40
      %p42 = scmp.ne.s32.totalorder %s34, %s37
      %p43 = scmp.eq.s32.totalorder %s24, 0
      %p44 = por %p42, %p43
      %p45 = scmp.ne.s32.totalorder %s34, %s37
      %p46 = scmp.eq.s32.totalorder %s29, 1
      %p47 = por %p45, %p46
      %p48 = scmp.ne.s32.totalorder %s37, %s38
      %p49 = scmp.eq.s32.totalorder %s29, 0
      %p50 = por %p48, %p49
      %p51 = scmp.ne.s32.totalorder %s37, %s38
      %p52 = scmp.eq.s32.totalorder %s30, 1
      %p53 = por %p51, %p52
      %p55 = scmp.ne.s32.totalorder %s38, %s54
      %p56 = scmp.eq.s32.totalorder %s30, 0
      %p57 = por %p55, %p56
      %s58 = ssub.s32 %s24, %s31
      %p59 = scmp.eq.s32.totalorder %s58, 0
      %s61 = sadd.s32 %s60, 1
      %s62 = scalar_select %p59, %s60, %s61
      %p65 = pneg %p59
      %p66 = scmp.eq.s32.totalorder %s24, 1
      %p67 = por %p65, %p66
      %p68 = scmp.ne.s32.totalorder %s60, %s63
      %p69 = scmp.eq.s32.totalorder %s24, 0
      %p70 = por %p68, %p69
      %p71 = scmp.ne.s32.totalorder %s60, %s63
      %p72 = scmp.eq.s32.totalorder %s29, 1
      %p73 = por %p71, %p72
      %p74 = scmp.ne.s32.totalorder %s63, %s64
      %p75 = scmp.eq.s32.totalorder %s29, 0
      %p76 = por %p74, %p75
      %p77 = scmp.ne.s32.totalorder %s63, %s64
      %p78 = scmp.eq.s32.totalorder %s30, 1
      %p79 = por %p77, %p78
      %p81 = scmp.ne.s32.totalorder %s64, %s80
      %p82 = scmp.eq.s32.totalorder %s30, 0
      %p83 = por %p81, %p82
      %s84 = ssub.s32 %s24, %s31
      %p85 = scmp.eq.s32.totalorder %s84, 0
      %s87 = sadd.s32 %s86, 1
      %s88 = scalar_select %p85, %s86, %s87
      %p91 = pneg %p85
      %p92 = scmp.eq.s32.totalorder %s24, 1
      %p93 = por %p91, %p92
      %p94 = scmp.ne.s32.totalorder %s86, %s89
      %p95 = scmp.eq.s32.totalorder %s24, 0
      %p96 = por %p94, %p95
      %p97 = scmp.ne.s32.totalorder %s86, %s89
      %p98 = scmp.eq.s32.totalorder %s29, 1
      %p99 = por %p97, %p98
      %p100 = scmp.ne.s32.totalorder %s89, %s90
      %p101 = scmp.eq.s32.totalorder %s29, 0
      %p102 = por %p100, %p101
      %p103 = scmp.ne.s32.totalorder %s89, %s90
      %p104 = scmp.eq.s32.totalorder %s30, 1
      %p105 = por %p103, %p104
      %p107 = scmp.ne.s32.totalorder %s90, %s106
      %p108 = scmp.eq.s32.totalorder %s30, 0
      %p109 = por %p107, %p108
      %s110 = ssub.s32 %s24, %s31
      %p111 = scmp.eq.s32.totalorder %s110, 0
      %s113 = sadd.s32 %s112, 1
      %s114 = scalar_select %p111, %s112, %s113
      %p117 = pneg %p111
      %p118 = scmp.eq.s32.totalorder %s24, 1
      %p119 = por %p117, %p118
      %p120 = scmp.ne.s32.totalorder %s112, %s115
      %p121 = scmp.eq.s32.totalorder %s24, 0
      %p122 = por %p120, %p121
      %p123 = scmp.ne.s32.totalorder %s112, %s115
      %p124 = scmp.eq.s32.totalorder %s29, 1
      %p125 = por %p123, %p124
      %p126 = scmp.ne.s32.totalorder %s115, %s116
      %p127 = scmp.eq.s32.totalorder %s29, 0
      %p128 = por %p126, %p127
      %p129 = scmp.ne.s32.totalorder %s115, %s116
      %p130 = scmp.eq.s32.totalorder %s30, 1
      %p131 = por %p129, %p130
      %p133 = scmp.ne.s32.totalorder %s116, %s132
      %p134 = scmp.eq.s32.totalorder %s30, 0
      %p135 = por %p133, %p134
      %s136 = ssub.s32 %s24, %s31
      %p137 = scmp.eq.s32.totalorder %s136, 0
      %s139 = sadd.s32 %s138, 1
      %s140 = scalar_select %p137, %s138, %s139
      %p143 = pneg %p137
      %p144 = scmp.eq.s32.totalorder %s24, 1
      %p145 = por %p143, %p144
      %p146 = scmp.ne.s32.totalorder %s138, %s141
      %p147 = scmp.eq.s32.totalorder %s24, 0
      %p148 = por %p146, %p147
      %p149 = scmp.ne.s32.totalorder %s138, %s141
      %p150 = scmp.eq.s32.totalorder %s29, 1
      %p151 = por %p149, %p150
      %p152 = scmp.ne.s32.totalorder %s141, %s142
      %p153 = scmp.eq.s32.totalorder %s29, 0
      %p154 = por %p152, %p153
      %p155 = scmp.ne.s32.totalorder %s141, %s142
      %p156 = scmp.eq.s32.totalorder %s30, 1
      %p157 = por %p155, %p156
      %p159 = scmp.ne.s32.totalorder %s142, %s158
      %p160 = scmp.eq.s32.totalorder %s30, 0
      %p161 = por %p159, %p160
      %s162 = ssub.s32 %s24, %s31
      %p163 = scmp.eq.s32.totalorder %s162, 0
      %s165 = sadd.s32 %s164, 1
      %s166 = scalar_select %p163, %s164, %s165
      %p169 = pneg %p163
      %p170 = scmp.eq.s32.totalorder %s24, 1
      %p171 = por %p169, %p170
      %p172 = scmp.ne.s32.totalorder %s164, %s167
      %p173 = scmp.eq.s32.totalorder %s24, 0
      %p174 = por %p172, %p173
      %p175 = scmp.ne.s32.totalorder %s164, %s167
      %p176 = scmp.eq.s32.totalorder %s29, 1
      %p177 = por %p175, %p176
      %p178 = scmp.ne.s32.totalorder %s167, %s168
      %p179 = scmp.eq.s32.totalorder %s29, 0
      %p180 = por %p178, %p179
      %p181 = scmp.ne.s32.totalorder %s167, %s168
      %p182 = scmp.eq.s32.totalorder %s30, 1
      %p183 = por %p181, %p182
      %p185 = scmp.ne.s32.totalorder %s168, %s184
      %p186 = scmp.eq.s32.totalorder %s30, 0
      %p187 = por %p185, %p186
      %s188 = ssub.s32 %s24, %s31
      %p189 = scmp.eq.s32.totalorder %s188, 0
      %s191 = sadd.s32 %s190, 1
      %s192 = scalar_select %p189, %s190, %s191
      %p195 = pneg %p189
      %p196 = scmp.eq.s32.totalorder %s24, 1
      %p197 = por %p195, %p196
      %p198 = scmp.ne.s32.totalorder %s190, %s193
      %p199 = scmp.eq.s32.totalorder %s24, 0
      %p200 = por %p198, %p199
      %p201 = scmp.ne.s32.totalorder %s190, %s193
      %p202 = scmp.eq.s32.totalorder %s29, 1
      %p203 = por %p201, %p202
      %p204 = scmp.ne.s32.totalorder %s193, %s194
      %p205 = scmp.eq.s32.totalorder %s29, 0
      %p206 = por %p204, %p205
      %p207 = scmp.ne.s32.totalorder %s193, %s194
      %p208 = scmp.eq.s32.totalorder %s30, 1
      %p209 = por %p207, %p208
      %p211 = scmp.ne.s32.totalorder %s194, %s210
      %p212 = scmp.eq.s32.totalorder %s30, 0
      %p213 = por %p211, %p212
      %s214 = ssub.s32 %s24, %s31
      %p215 = scmp.eq.s32.totalorder %s214, 0
      %s217 = sadd.s32 %s216, 1
      %s218 = scalar_select %p215, %s216, %s217
      %p221 = pneg %p215
      %p222 = scmp.eq.s32.totalorder %s24, 1
      %p223 = por %p221, %p222
      %p224 = scmp.ne.s32.totalorder %s216, %s219
      %p225 = scmp.eq.s32.totalorder %s24, 0
      %p226 = por %p224, %p225
      %p227 = scmp.ne.s32.totalorder %s216, %s219
      %p228 = scmp.eq.s32.totalorder %s29, 1
      %p229 = por %p227, %p228
      %p230 = scmp.ne.s32.totalorder %s219, %s220
      %p231 = scmp.eq.s32.totalorder %s29, 0
      %p232 = por %p230, %p231
      %p233 = scmp.ne.s32.totalorder %s219, %s220
      %p234 = scmp.eq.s32.totalorder %s30, 1
      %p235 = por %p233, %p234
      %p237 = scmp.ne.s32.totalorder %s220, %s236
      %p238 = scmp.eq.s32.totalorder %s30, 0
      %p239 = por %p237, %p238
      %s240 = ssub.s32 %s24, %s31
      %p241 = scmp.eq.s32.totalorder %s240, 0
      %s243 = sadd.s32 %s242, 1
      %s244 = scalar_select %p241, %s242, %s243
      %p247 = pneg %p241
      %p248 = scmp.eq.s32.totalorder %s24, 1
      %p249 = por %p247, %p248
      %p250 = scmp.ne.s32.totalorder %s242, %s245
      %p251 = scmp.eq.s32.totalorder %s24, 0
      %p252 = por %p250, %p251
      %p253 = scmp.ne.s32.totalorder %s242, %s245
      %p254 = scmp.eq.s32.totalorder %s29, 1
      %p255 = por %p253, %p254
      %p256 = scmp.ne.s32.totalorder %s245, %s246
      %p257 = scmp.eq.s32.totalorder %s29, 0
      %p258 = por %p256, %p257
      %p259 = scmp.ne.s32.totalorder %s245, %s246
      %p260 = scmp.eq.s32.totalorder %s30, 1
      %p261 = por %p259, %p260
      %p263 = scmp.ne.s32.totalorder %s246, %s262
      %p264 = scmp.eq.s32.totalorder %s30, 0
      %p265 = por %p263, %p264
      %p266 = scmp.le.s32.totalorder 1, %s24
      %p267 = scmp.lt.s32.totalorder %s24, 3
      %p268 = pnand %p266, %p267
      %p269 = pneg %p268
      // Predicated region
      $region9: #{tpu_custom_call.1} parent=5 // pred_check
        _
      $region10: #{tpu_custom_call.1} parent=5 // pred_check_branch
        %271 = sbr.rel (%p268) target = $region12
      $region11: #{tpu_custom_call.1} parent=5 // pred_region
        %s272 = ssub.s32 %s24, 1
      $region12: #{tpu_custom_call.1} parent=5 // pred_fallthru
        _
      %p273 = scmp.lt.s32.totalorder %s24, 2
      // Predicated region
      $region13: #{tpu_custom_call.1} parent=5 // pred_check
        %p274 = pneg %p273
      $region14: #{tpu_custom_call.1} parent=5 // pred_check_branch
        %276 = sbr.rel (%p274) target = $region16
      $region15: #{tpu_custom_call.1} parent=5 // pred_region
        // Predicated region
        $region17: #{tpu_custom_call.1} parent=15 // pred_check
          %p277 = pneg %p44
        $region18: #{tpu_custom_call.1} parent=15 // pred_check_branch
          %279 = sbr.rel (%p277) target = $region20
        $region19: #{tpu_custom_call.1} parent=15 // pred_region
          %p280 = scmp.lt.s32.totalorder %s24, 1
          %s281 = scalar_select %p280, %s24, 1
          %s282 = smul.addr %s281, 2
          %s283 = smul.addr %s282, 8
          %s284 = scalar_lea.vmem %s0, %s283
        $region20: #{tpu_custom_call.1} parent=15 // pred_fallthru
          _
        // Predicated region
        $region21: #{tpu_custom_call.1} parent=15 // pred_check
          %p285 = pneg %p70
        $region22: #{tpu_custom_call.1} parent=15 // pred_check_branch
          %287 = sbr.rel (%p285) target = $region24
        $region23: #{tpu_custom_call.1} parent=15 // pred_region
          %p288 = scmp.lt.s32.totalorder %s24, 1
          %s289 = scalar_select %p288, %s24, 1
          %s290 = smul.addr %s289, 8
          %s291 = smul.addr %s290, 2
          %s292 = scalar_lea.vmem %s1, %s291
        $region24: #{tpu_custom_call.1} parent=15 // pred_fallthru
          _
        // Predicated region
        $region25: #{tpu_custom_call.1} parent=15 // pred_check
          %p293 = pneg %p96
        $region26: #{tpu_custom_call.1} parent=15 // pred_check_branch
          %295 = sbr.rel (%p293) target = $region28
        $region27: #{tpu_custom_call.1} parent=15 // pred_region
          %p296 = scmp.lt.s32.totalorder %s24, 1
          %s297 = scalar_select %p296, %s24, 1
          %s298 = smul.addr %s297, 16
          %s299 = smul.addr %s298, 8
          %s300 = scalar_lea.vmem %s2, %s299
        $region28: #{tpu_custom_call.1} parent=15 // pred_fallthru
          _
        // Predicated region
        $region29: #{tpu_custom_call.1} parent=15 // pred_check
          %p301 = pneg %p122
        $region30: #{tpu_custom_call.1} parent=15 // pred_check_branch
          %303 = sbr.rel (%p301) target = $region32
        $region31: #{tpu_custom_call.1} parent=15 // pred_region
          %p304 = scmp.lt.s32.totalorder %s24, 1
          %s305 = scalar_select %p304, %s24, 1
          %s306 = smul.addr %s305, 12
          %s307 = smul.addr %s306, 8
          %s308 = scalar_lea.vmem %s3, %s307
        $region32: #{tpu_custom_call.1} parent=15 // pred_fallthru
          _
        // Predicated region
        $region33: #{tpu_custom_call.1} parent=15 // pred_check
          %p309 = pneg %p148
        $region34: #{tpu_custom_call.1} parent=15 // pred_check_branch
          %311 = sbr.rel (%p309) target = $region36
        $region35: #{tpu_custom_call.1} parent=15 // pred_region
          %s312 = sand.u32 %s138, 1
          %s313 = scalar_lea.sflag [#allocation3], %s312
          %s314 = sand.u32 %s138, 1
          %s315 = smul.addr %s314, 96
          %s316 = scalar_lea.vmem [#allocation2], %s315
          %318 = vsyncadd %s313, 0
          %s319 = smul.addr %s24, 12
          %s320 = smul.addr %s319, 8
          %s321 = scalar_lea.hbm %s4, %s320
          %s322 = sshll.u32 %s321, 4
          %s323 = int_to_ptr.hbm [resolvable:$true] %s322
          %s324 = sshll.u32 %s316, 4
          %s325 = int_to_ptr.vmem [resolvable:$true] %s324
          %330 = dma.hbm_to_vmem [thread:$0]  %s323, 1536, %s325, %s313, 128, 128, 8
        $region36: #{tpu_custom_call.1} parent=15 // pred_fallthru
          _
        // Predicated region
        $region37: #{tpu_custom_call.1} parent=15 // pred_check
          %p331 = pneg %p174
        $region38: #{tpu_custom_call.1} parent=15 // pred_check_branch
          %333 = sbr.rel (%p331) target = $region40
        $region39: #{tpu_custom_call.1} parent=15 // pred_region
          %p334 = scmp.lt.s32.totalorder %s24, 1
          %s335 = scalar_select %p334, %s24, 1
          %s336 = smul.addr %s335, 3
          %s337 = scalar_lea.vmem %s5, %s336
        $region40: #{tpu_custom_call.1} parent=15 // pred_fallthru
          _
        // Predicated region
        $region41: #{tpu_custom_call.1} parent=15 // pred_check
          %p338 = pneg %p200
        $region42: #{tpu_custom_call.1} parent=15 // pred_check_branch
          %340 = sbr.rel (%p338) target = $region44
        $region43: #{tpu_custom_call.1} parent=15 // pred_region
          %p341 = scmp.lt.s32.totalorder %s24, 1
          %s342 = scalar_select %p341, %s24, 1
          %s343 = smul.addr %s342, 3
          %s344 = scalar_lea.vmem %s6, %s343
        $region44: #{tpu_custom_call.1} parent=15 // pred_fallthru
          _
      $region16: #{tpu_custom_call.1} parent=5 // pred_fallthru
        _
      %p345 = scmp.le.s32.totalorder 1, %s24
      %p346 = scmp.lt.s32.totalorder %s24, 3
      %p347 = pnand %p345, %p346
      %p348 = pneg %p347
      // Predicated region
      $region45: #{tpu_custom_call.1} parent=5 // pred_check
        _
      $region46: #{tpu_custom_call.1} parent=5 // pred_check_branch
        %350 = sbr.rel (%p347) target = $region48
      $region47: #{tpu_custom_call.1} parent=5 // pred_region
        %s351 = ssub.s32 %s24, 1
        %s352 = sand.u32 %s141, 1
        %s353 = scalar_lea.sflag [#allocation3], %s352
        %s354 = sand.u32 %s141, 1
        %s355 = smul.addr %s354, 96
        %s356 = scalar_lea.vmem [#allocation2], %s355
        // Predicated region
        $region49: #{tpu_custom_call.1} parent=47 // pred_check
          %p357 = pneg %p154
        $region50: #{tpu_custom_call.1} parent=47 // pred_check_branch
          %359 = sbr.rel (%p357) target = $region52
        $region51: #{tpu_custom_call.1} parent=47 // pred_region
          %361 = dma.done %s353, 1536
        $region52: #{tpu_custom_call.1} parent=47 // pred_fallthru
          _
        %p362 = scmp.lt.s32.totalorder %s29, 1
        %s363 = scalar_select %p362, %s29, 1
        %s364 = smul.addr %s363, 2
        %s365 = smul.addr %s364, 8
        %s366 = scalar_lea.vmem %s0, %s365
        %p367 = pneg %p50
        %p368 = pneg %p47
        %p369 = scmp.lt.s32.totalorder %s29, 1
        %s370 = scalar_select %p369, %s29, 1
        %s371 = smul.addr %s370, 8
        %s372 = smul.addr %s371, 2
        %s373 = scalar_lea.vmem %s1, %s372
        %p374 = pneg %p76
        %p375 = pneg %p73
        %p376 = scmp.lt.s32.totalorder %s29, 1
        %s377 = scalar_select %p376, %s29, 1
        %s378 = smul.addr %s377, 16
        %s379 = smul.addr %s378, 8
        %s380 = scalar_lea.vmem %s2, %s379
        %p381 = pneg %p102
        %p382 = pneg %p99
        %p383 = scmp.lt.s32.totalorder %s29, 1
        %s384 = scalar_select %p383, %s29, 1
        %s385 = smul.addr %s384, 12
        %s386 = smul.addr %s385, 8
        %s387 = scalar_lea.vmem %s3, %s386
        %p388 = pneg %p128
        %p389 = pneg %p125
        %s390 = sand.u32 %s141, 1
        %s391 = scalar_lea.sflag [#allocation3], %s390
        %s392 = sand.u32 %s141, 1
        %s393 = smul.addr %s392, 96
        %s394 = scalar_lea.vmem [#allocation2], %s393
        %p395 = pneg %p154
        %p396 = pneg %p151
        %p397 = scmp.lt.s32.totalorder %s29, 1
        %s398 = scalar_select %p397, %s29, 1
        %s399 = smul.addr %s398, 3
        %s400 = scalar_lea.vmem %s5, %s399
        %p401 = pneg %p180
        %p402 = pneg %p177
        %p403 = scmp.lt.s32.totalorder %s29, 1
        %s404 = scalar_select %p403, %s29, 1
        %s405 = smul.addr %s404, 3
        %s406 = scalar_lea.vmem %s6, %s405
        %p407 = pneg %p206
        %p408 = pneg %p203
        %p409 = pneg %p232
        %p410 = pneg %p229
        %s411 = sand.u32 %s219, 1
        %s412 = scalar_lea.sflag [#allocation4], %s411
        %s413 = sand.u32 %s219, 1
        %s414 = smul.addr %s413, 16
        %s415 = scalar_lea.vmem [#allocation5], %s414
        %p416 = pneg %p258
        %p417 = pneg %p255
        %s418 = sand.u32 %s245, 1
        %s419 = scalar_lea.sflag [#allocation7], %s418
        %s420 = sand.u32 %s245, 1
        %s421 = smul.addr %s420, 2
        %s422 = scalar_lea.vmem [#allocation6], %s421
        %p423 = scmp.lt.s32.totalorder %s29, 1
        %s424 = scalar_select %p423, %s29, 1
        %s425 = smul.addr %s424, 2
        %s426 = smul.addr %s425, 8
        %s427 = scalar_lea.vmem %s0, %s426
        %p428 = scmp.lt.s32.totalorder %s29, 1
        %s429 = scalar_select %p428, %s29, 1
        %s430 = smul.addr %s429, 8
        %s431 = smul.addr %s430, 2
        %s432 = scalar_lea.vmem %s1, %s431
        %p433 = scmp.lt.s32.totalorder %s29, 1
        %s434 = scalar_select %p433, %s29, 1
        %s435 = smul.addr %s434, 16
        %s436 = smul.addr %s435, 8
        %s437 = scalar_lea.vmem %s2, %s436
        %p438 = scmp.lt.s32.totalorder %s29, 1
        %s439 = scalar_select %p438, %s29, 1
        %s440 = smul.addr %s439, 12
        %s441 = smul.addr %s440, 8
        %s442 = scalar_lea.vmem %s3, %s441
        %p443 = scmp.lt.s32.totalorder %s29, 1
        %s444 = scalar_select %p443, %s29, 1
        %s445 = smul.addr %s444, 3
        %s446 = scalar_lea.vmem %s5, %s445
        %p447 = scmp.lt.s32.totalorder %s29, 1
        %s448 = scalar_select %p447, %s29, 1
        %s449 = smul.addr %s448, 3
        %s450 = scalar_lea.vmem %s6, %s449
        %v451 = vld [vmem:[%s427] sm:$0xff]
        %v452 = vld [vmem:[%s427 + $0x8] sm:$0xff]
        %v453 = vld [vmem:[%s437] sm:$0xff]
        %v454 = vld [vmem:[%s437 + $0x8] sm:$0xff]
        %v455 = vld [vmem:[%s437 + $0x10] sm:$0xff]
        %v456 = vld [vmem:[%s437 + $0x18] sm:$0xff]
        %v457 = vld [vmem:[%s437 + $0x20] sm:$0xff]
        %v458 = vld [vmem:[%s437 + $0x28] sm:$0xff]
        %v459 = vld [vmem:[%s437 + $0x30] sm:$0xff]
        %v460 = vld [vmem:[%s437 + $0x38] sm:$0xff]
        %v461 = vld [vmem:[%s437 + $0x40] sm:$0xff]
        %v462 = vld [vmem:[%s437 + $0x48] sm:$0xff]
        %v463 = vld [vmem:[%s437 + $0x50] sm:$0xff]
        %v464 = vld [vmem:[%s437 + $0x58] sm:$0xff]
        %v465 = vld [vmem:[%s437 + $0x60] sm:$0xff]
        %v466 = vld [vmem:[%s437 + $0x68] sm:$0xff]
        %v467 = vld [vmem:[%s437 + $0x70] sm:$0xff]
        %v468 = vld [vmem:[%s437 + $0x78] sm:$0xff]
        %v469 = vlaneseq
        %v470 = vand.u32 %v469, 127
        %471 = vset.pattern.permute.xlu0 0
        %472 = vperm.xlu0 %471, %v451
        %v473 = vpop.permute.xlu0 %472
        %474 = vset.pattern.permute.xlu0 0
        %475 = vperm.xlu0 %474, %v452
        %v476 = vpop.permute.xlu0 %475
        %vm477 = vcmp.eq.s32.totalorder %v470, %v473
        %vm478 = vcmp.eq.s32.totalorder %v470, %v476
        %v479 = vsel %vm477, 1, 0
        %v480 = vsel %vm478, 1, 0
        %v481 = vcvt.s32.f32 %v479
        %v482 = vcvt.s32.f32 %v480
        %483 = vmatpush.msra.mxu0 %v468
        %484 = vmatpush.msra.mxu0 %v467
        %485 = vmatpush.msra.mxu0 %v466
        %486 = vmatpush.msra.mxu0 %v465
        %487 = vmatpush.msra.mxu0 %v464
        %488 = vmatpush.msra.mxu0 %v463
        %489 = vmatpush.msra.mxu0 %v462
        %490 = vmatpush.msra.mxu0 %v461
        %491 = vmatpush.msra.mxu0 %v460
        %492 = vmatpush.msra.mxu0 %v459
        %493 = vmatpush.msra.mxu0 %v458
        %494 = vmatpush.msra.mxu0 %v457
        %495 = vmatpush.msra.mxu0 %v456
        %496 = vmatpush.msra.mxu0 %v455
        %497 = vmatpush.msra.mxu0 %v454
        %498 = vmatpush.msra.mxu0 %v453
        %499 = vmatmul.f32.gmra.mxu0 %v481
        %v500 = vpop.f32.mrf.mxu0
        %v501 = vadd.f32 0.0, %v500
        %502 = vmatmul.f32.gmra.mxu0 %v482
        %v503 = vpop.f32.mrf.mxu0
        %v504 = vadd.f32 0.0, %v503
        %505 = vdwg.mxu0
        %v506 = vld [vmem:[%s442] sm:$0xff]
        %v507 = vld [vmem:[%s442 + $0x8] sm:$0xff]
        %v508 = vld [vmem:[%s442 + $0x10] sm:$0xff]
        %v509 = vld [vmem:[%s442 + $0x18] sm:$0xff]
        %v510 = vld [vmem:[%s442 + $0x20] sm:$0xff]
        %v511 = vld [vmem:[%s442 + $0x28] sm:$0xff]
        %v512 = vld [vmem:[%s442 + $0x30] sm:$0xff]
        %v513 = vld [vmem:[%s442 + $0x38] sm:$0xff]
        %v514 = vld [vmem:[%s442 + $0x40] sm:$0xff]
        %v515 = vld [vmem:[%s442 + $0x48] sm:$0xff]
        %v516 = vld [vmem:[%s442 + $0x50] sm:$0xff]
        %v517 = vld [vmem:[%s442 + $0x58] sm:$0xff]
        %v518 = vld [vmem:[%s356] sm:$0xff]
        %v519 = vld [vmem:[%s356 + $0x8] sm:$0xff]
        %v520 = vld [vmem:[%s356 + $0x10] sm:$0xff]
        %v521 = vld [vmem:[%s356 + $0x18] sm:$0xff]
        %v522 = vld [vmem:[%s356 + $0x20] sm:$0xff]
        %v523 = vld [vmem:[%s356 + $0x28] sm:$0xff]
        %v524 = vld [vmem:[%s356 + $0x30] sm:$0xff]
        %v525 = vld [vmem:[%s356 + $0x38] sm:$0xff]
        %v526 = vld [vmem:[%s356 + $0x40] sm:$0xff]
        %v527 = vld [vmem:[%s356 + $0x48] sm:$0xff]
        %v528 = vld [vmem:[%s356 + $0x50] sm:$0xff]
        %v529 = vld [vmem:[%s356 + $0x58] sm:$0xff]
        %v530 = vld [vmem:[%s446] sm:$0x1]
        %v531 = vld [vmem:[%s446 + $0x1] sm:$0x1]
        %v532 = vld [vmem:[%s446 + $0x2] sm:$0x1]
        %v533 = vld [vmem:[%s450] sm:$0x1]
        %v534 = vld [vmem:[%s450 + $0x1] sm:$0x1]
        %v535 = vld [vmem:[%s450 + $0x2] sm:$0x1]
        %v536 = vld [vmem:[%s432] sm:$0x3]
        %v538 = vperm.slane %v530, 0
        %vm540 = vcmask 261120
        %v542 = vsel %vm540, %v501, 0
        %544 = vmatpush.msra.mxu0 0.0
        %545 = vmatpush.msra.mxu0 0.0
        %546 = vmatpush.msra.mxu0 0.0
        %547 = vmatpush.msra.mxu0 0.0
        %548 = vmatpush.msra.mxu0 0.0
        %549 = vmatpush.msra.mxu0 0.0
        %550 = vmatpush.msra.mxu0 0.0
        %551 = vmatpush.msra.mxu0 0.0
        %552 = vmatpush.msra.mxu0 0.0
        %553 = vmatpush.msra.mxu0 0.0
        %554 = vmatpush.msra.mxu0 0.0
        %555 = vmatpush.msra.mxu0 0.0
        %556 = vmatpush.msra.mxu0 %v509
        %557 = vmatpush.msra.mxu0 %v508
        %558 = vmatpush.msra.mxu0 %v507
        %559 = vmatpush.msra.mxu0 %v506
        %560 = vmatmul.f32.gmra.mxu0 %v542
        %v561 = vpop.f32.mrf.mxu0
        %v562 = vadd.f32 %v538, %v561
        %563 = vdwg.mxu0
        %v565 = vsel %vm540, 0.0, 0
        %567 = vmatpush.msra.mxu0 0.0
        %568 = vmatpush.msra.mxu0 0.0
        %569 = vmatpush.msra.mxu0 0.0
        %570 = vmatpush.msra.mxu0 0.0
        %571 = vmatpush.msra.mxu0 0.0
        %572 = vmatpush.msra.mxu0 0.0
        %573 = vmatpush.msra.mxu0 0.0
        %574 = vmatpush.msra.mxu0 0.0
        %575 = vmatpush.msra.mxu0 0.0
        %576 = vmatpush.msra.mxu0 0.0
        %577 = vmatpush.msra.mxu0 0.0
        %578 = vmatpush.msra.mxu0 0.0
        %579 = vmatpush.msra.mxu0 %v521
        %580 = vmatpush.msra.mxu0 %v520
        %581 = vmatpush.msra.mxu0 %v519
        %582 = vmatpush.msra.mxu0 %v518
        %583 = vmatmul.f32.gmra.mxu0 %v565
        %v584 = vpop.f32.mrf.mxu0
        %v585 = vadd.f32 0.0, %v584
        %586 = vdwg.mxu0
        %v587 = vadd.f32 %v562, %v585
        %v589 = vperm.slane %v533, 0
        %v591 = vadd.f32 %v587, %v589
        %v592 = vxor.u32 %v591, 2147483648
        %v593 = vmul.f32 %v592, 1.442695
        %v594 = vpow.pop %v593
        %v595 = vadd.f32 %v594, 1.0
        %v596 = vrcp.pop %v595
        %v597 = vmul.f32 %v595, %v596
        %v598 = vsub.f32 1.0, %v597
        %v599 = vmul.f32 %v596, %v598
        %v600 = vadd.f32 %v596, %v599
        %vm601 = vweird.f32 %v595
        %vm602 = vweird.f32 %v596
        %vm603 = vmor %vm601, %vm602
        %v604 = vsel %vm603, %v596, %v600
        %v605 = vand.u32 2147483647, %v595
        %vm606 = vcmp.eq.f32.partialorder %v605, 8.507059e+37
        %v607 = vand.u32 %v595, 2147483648
        %v608 = vor.u32 1.1754944e-38, %v607
        %v609 = vsel %vm606, %v608, %v604
        %v610 = vmul.f32 1.0, %v609
        %v612 = vperm.slane %v531, 0
        %614 = vmatpush.msra.mxu0 0.0
        %615 = vmatpush.msra.mxu0 0.0
        %616 = vmatpush.msra.mxu0 0.0
        %617 = vmatpush.msra.mxu0 0.0
        %618 = vmatpush.msra.mxu0 0.0
        %619 = vmatpush.msra.mxu0 0.0
        %620 = vmatpush.msra.mxu0 0.0
        %621 = vmatpush.msra.mxu0 0.0
        %622 = vmatpush.msra.mxu0 0.0
        %623 = vmatpush.msra.mxu0 0.0
        %624 = vmatpush.msra.mxu0 0.0
        %625 = vmatpush.msra.mxu0 0.0
        %626 = vmatpush.msra.mxu0 %v513
        %627 = vmatpush.msra.mxu0 %v512
        %628 = vmatpush.msra.mxu0 %v511
        %629 = vmatpush.msra.mxu0 %v510
        %630 = vmatmul.f32.gmra.mxu0 %v542
        %v631 = vpop.f32.mrf.mxu0
        %v632 = vadd.f32 %v612, %v631
        %633 = vdwg.mxu0
        %634 = vmatpush.msra.mxu0 0.0
        %635 = vmatpush.msra.mxu0 0.0
        %636 = vmatpush.msra.mxu0 0.0
        %637 = vmatpush.msra.mxu0 0.0
        %638 = vmatpush.msra.mxu0 0.0
        %639 = vmatpush.msra.mxu0 0.0
        %640 = vmatpush.msra.mxu0 0.0
        %641 = vmatpush.msra.mxu0 0.0
        %642 = vmatpush.msra.mxu0 0.0
        %643 = vmatpush.msra.mxu0 0.0
        %644 = vmatpush.msra.mxu0 0.0
        %645 = vmatpush.msra.mxu0 0.0
        %646 = vmatpush.msra.mxu0 %v525
        %647 = vmatpush.msra.mxu0 %v524
        %648 = vmatpush.msra.mxu0 %v523
        %649 = vmatpush.msra.mxu0 %v522
        %650 = vmatmul.f32.gmra.mxu0 %v565
        %v651 = vpop.f32.mrf.mxu0
        %v652 = vadd.f32 0.0, %v651
        %653 = vdwg.mxu0
        %v654 = vadd.f32 %v632, %v652
        %v656 = vperm.slane %v534, 0
        %v658 = vadd.f32 %v654, %v656
        %v659 = vxor.u32 %v658, 2147483648
        %v660 = vmul.f32 %v659, 1.442695
        %v661 = vpow.pop %v660
        %v662 = vadd.f32 %v661, 1.0
        %v663 = vrcp.pop %v662
        %v664 = vmul.f32 %v662, %v663
        %v665 = vsub.f32 1.0, %v664
        %v666 = vmul.f32 %v663, %v665
        %v667 = vadd.f32 %v663, %v666
        %vm668 = vweird.f32 %v662
        %vm669 = vweird.f32 %v663
        %vm670 = vmor %vm668, %vm669
        %v671 = vsel %vm670, %v663, %v667
        %v672 = vand.u32 2147483647, %v662
        %vm673 = vcmp.eq.f32.partialorder %v672, 8.507059e+37
        %v674 = vand.u32 %v662, 2147483648
        %v675 = vor.u32 1.1754944e-38, %v674
        %v676 = vsel %vm673, %v675, %v671
        %v677 = vmul.f32 1.0, %v676
        %v679 = vperm.slane %v532, 0
        %681 = vmatpush.msra.mxu0 0.0
        %682 = vmatpush.msra.mxu0 0.0
        %683 = vmatpush.msra.mxu0 0.0
        %684 = vmatpush.msra.mxu0 0.0
        %685 = vmatpush.msra.mxu0 0.0
        %686 = vmatpush.msra.mxu0 0.0
        %687 = vmatpush.msra.mxu0 0.0
        %688 = vmatpush.msra.mxu0 0.0
        %689 = vmatpush.msra.mxu0 0.0
        %690 = vmatpush.msra.mxu0 0.0
        %691 = vmatpush.msra.mxu0 0.0
        %692 = vmatpush.msra.mxu0 0.0
        %693 = vmatpush.msra.mxu0 %v517
        %694 = vmatpush.msra.mxu0 %v516
        %695 = vmatpush.msra.mxu0 %v515
        %696 = vmatpush.msra.mxu0 %v514
        %697 = vmatmul.f32.gmra.mxu0 %v542
        %v698 = vpop.f32.mrf.mxu0
        %v699 = vadd.f32 %v679, %v698
        %700 = vdwg.mxu0
        %v702 = vperm.slane %v535, 0
        %704 = vmatpush.msra.mxu0 0.0
        %705 = vmatpush.msra.mxu0 0.0
        %706 = vmatpush.msra.mxu0 0.0
        %707 = vmatpush.msra.mxu0 0.0
        %708 = vmatpush.msra.mxu0 0.0
        %709 = vmatpush.msra.mxu0 0.0
        %710 = vmatpush.msra.mxu0 0.0
        %711 = vmatpush.msra.mxu0 0.0
        %712 = vmatpush.msra.mxu0 0.0
        %713 = vmatpush.msra.mxu0 0.0
        %714 = vmatpush.msra.mxu0 0.0
        %715 = vmatpush.msra.mxu0 0.0
        %716 = vmatpush.msra.mxu0 %v529
        %717 = vmatpush.msra.mxu0 %v528
        %718 = vmatpush.msra.mxu0 %v527
        %719 = vmatpush.msra.mxu0 %v526
        %720 = vmatmul.f32.gmra.mxu0 %v565
        %v721 = vpop.f32.mrf.mxu0
        %v722 = vadd.f32 %v702, %v721
        %723 = vdwg.mxu0
        %v724 = vmul.f32 %v610, %v722
        %v725 = vadd.f32 %v699, %v724
        %v726 = vtanh.pop %v725
        %v727 = vsub.f32 1.0, %v677
        %v728 = vmul.f32 %v727, %v726
        %v729 = vmul.f32 %v677, 0.0
        %v730 = vadd.f32 %v728, %v729
        %732 = vset.pattern.permute.xlu0 0
        %733 = vperm.xlu0 %732, %v536
        %v734 = vpop.permute.xlu0 %733
        %v736 = vmul.f32 %v734, %v730
        %v737 = vsub.f32 1.0, %v536
        %739 = vset.pattern.permute.xlu0 0
        %740 = vperm.xlu0 %739, %v737
        %v741 = vpop.permute.xlu0 %740
        %v743 = vmul.f32 %v741, 0.0
        %v744 = vadd.f32 %v736, %v743
        %v745 = vmul.f32 %v734, %v744
        %v747 = vrot.slane %v745, 1
        %vm749 = vcmask 253952
        %750 = vst.msk [vmem:[%s415] sm:$0x1] %vm749, %v745
        %751 = vst.msk [vmem:[%s415 + $0x8] sm:$0x1] %vm749, %v747
        %s752 = scalar_lea.vmem %s432, 2
        %v753 = vld [vmem:[%s752] sm:$0x3]
        %v754 = vrot.slane %v501, 2
        %v755 = vsel %vm540, %v754, 0
        %757 = vmatpush.msra.mxu0 0.0
        %758 = vmatpush.msra.mxu0 0.0
        %759 = vmatpush.msra.mxu0 0.0
        %760 = vmatpush.msra.mxu0 0.0
        %761 = vmatpush.msra.mxu0 0.0
        %762 = vmatpush.msra.mxu0 0.0
        %763 = vmatpush.msra.mxu0 0.0
        %764 = vmatpush.msra.mxu0 0.0
        %765 = vmatpush.msra.mxu0 0.0
        %766 = vmatpush.msra.mxu0 0.0
        %767 = vmatpush.msra.mxu0 0.0
        %768 = vmatpush.msra.mxu0 0.0
        %769 = vmatpush.msra.mxu0 %v509
        %770 = vmatpush.msra.mxu0 %v508
        %771 = vmatpush.msra.mxu0 %v507
        %772 = vmatpush.msra.mxu0 %v506
        %773 = vmatmul.f32.gmra.mxu0 %v755
        %v774 = vpop.f32.mrf.mxu0
        %v775 = vadd.f32 %v538, %v774
        %776 = vdwg.mxu0
        %v778 = vsel %vm540, %v744, 0
        %780 = vmatpush.msra.mxu0 0.0
        %781 = vmatpush.msra.mxu0 0.0
        %782 = vmatpush.msra.mxu0 0.0
        %783 = vmatpush.msra.mxu0 0.0
        %784 = vmatpush.msra.mxu0 0.0
        %785 = vmatpush.msra.mxu0 0.0
        %786 = vmatpush.msra.mxu0 0.0
        %787 = vmatpush.msra.mxu0 0.0
        %788 = vmatpush.msra.mxu0 0.0
        %789 = vmatpush.msra.mxu0 0.0
        %790 = vmatpush.msra.mxu0 0.0
        %791 = vmatpush.msra.mxu0 0.0
        %792 = vmatpush.msra.mxu0 %v521
        %793 = vmatpush.msra.mxu0 %v520
        %794 = vmatpush.msra.mxu0 %v519
        %795 = vmatpush.msra.mxu0 %v518
        %796 = vmatmul.f32.gmra.mxu0 %v778
        %v797 = vpop.f32.mrf.mxu0
        %v798 = vadd.f32 0.0, %v797
        %799 = vdwg.mxu0
        %v800 = vadd.f32 %v775, %v798
        %v801 = vadd.f32 %v800, %v589
        %v802 = vxor.u32 %v801, 2147483648
        %v803 = vmul.f32 %v802, 1.442695
        %v804 = vpow.pop %v803
        %v805 = vadd.f32 %v804, 1.0
        %v806 = vrcp.pop %v805
        %v807 = vmul.f32 %v805, %v806
        %v808 = vsub.f32 1.0, %v807
        %v809 = vmul.f32 %v806, %v808
        %v810 = vadd.f32 %v806, %v809
        %vm811 = vweird.f32 %v805
        %vm812 = vweird.f32 %v806
        %vm813 = vmor %vm811, %vm812
        %v814 = vsel %vm813, %v806, %v810
        %v815 = vand.u32 2147483647, %v805
        %vm816 = vcmp.eq.f32.partialorder %v815, 8.507059e+37
        %v817 = vand.u32 %v805, 2147483648
        %v818 = vor.u32 1.1754944e-38, %v817
        %v819 = vsel %vm816, %v818, %v814
        %v820 = vmul.f32 1.0, %v819
        %821 = vmatpush.msra.mxu0 0.0
        %822 = vmatpush.msra.mxu0 0.0
        %823 = vmatpush.msra.mxu0 0.0
        %824 = vmatpush.msra.mxu0 0.0
        %825 = vmatpush.msra.mxu0 0.0
        %826 = vmatpush.msra.mxu0 0.0
        %827 = vmatpush.msra.mxu0 0.0
        %828 = vmatpush.msra.mxu0 0.0
        %829 = vmatpush.msra.mxu0 0.0
        %830 = vmatpush.msra.mxu0 0.0
        %831 = vmatpush.msra.mxu0 0.0
        %832 = vmatpush.msra.mxu0 0.0
        %833 = vmatpush.msra.mxu0 %v513
        %834 = vmatpush.msra.mxu0 %v512
        %835 = vmatpush.msra.mxu0 %v511
        %836 = vmatpush.msra.mxu0 %v510
        %837 = vmatmul.f32.gmra.mxu0 %v755
        %v838 = vpop.f32.mrf.mxu0
        %v839 = vadd.f32 %v612, %v838
        %840 = vdwg.mxu0
        %841 = vmatpush.msra.mxu0 0.0
        %842 = vmatpush.msra.mxu0 0.0
        %843 = vmatpush.msra.mxu0 0.0
        %844 = vmatpush.msra.mxu0 0.0
        %845 = vmatpush.msra.mxu0 0.0
        %846 = vmatpush.msra.mxu0 0.0
        %847 = vmatpush.msra.mxu0 0.0
        %848 = vmatpush.msra.mxu0 0.0
        %849 = vmatpush.msra.mxu0 0.0
        %850 = vmatpush.msra.mxu0 0.0
        %851 = vmatpush.msra.mxu0 0.0
        %852 = vmatpush.msra.mxu0 0.0
        %853 = vmatpush.msra.mxu0 %v525
        %854 = vmatpush.msra.mxu0 %v524
        %855 = vmatpush.msra.mxu0 %v523
        %856 = vmatpush.msra.mxu0 %v522
        %857 = vmatmul.f32.gmra.mxu0 %v778
        %v858 = vpop.f32.mrf.mxu0
        %v859 = vadd.f32 0.0, %v858
        %860 = vdwg.mxu0
        %v861 = vadd.f32 %v839, %v859
        %v862 = vadd.f32 %v861, %v656
        %v863 = vxor.u32 %v862, 2147483648
        %v864 = vmul.f32 %v863, 1.442695
        %v865 = vpow.pop %v864
        %v866 = vadd.f32 %v865, 1.0
        %v867 = vrcp.pop %v866
        %v868 = vmul.f32 %v866, %v867
        %v869 = vsub.f32 1.0, %v868
        %v870 = vmul.f32 %v867, %v869
        %v871 = vadd.f32 %v867, %v870
        %vm872 = vweird.f32 %v866
        %vm873 = vweird.f32 %v867
        %vm874 = vmor %vm872, %vm873
        %v875 = vsel %vm874, %v867, %v871
        %v876 = vand.u32 2147483647, %v866
        %vm877 = vcmp.eq.f32.partialorder %v876, 8.507059e+37
        %v878 = vand.u32 %v866, 2147483648
        %v879 = vor.u32 1.1754944e-38, %v878
        %v880 = vsel %vm877, %v879, %v875
        %v881 = vmul.f32 1.0, %v880
        %882 = vmatpush.msra.mxu0 0.0
        %883 = vmatpush.msra.mxu0 0.0
        %884 = vmatpush.msra.mxu0 0.0
        %885 = vmatpush.msra.mxu0 0.0
        %886 = vmatpush.msra.mxu0 0.0
        %887 = vmatpush.msra.mxu0 0.0
        %888 = vmatpush.msra.mxu0 0.0
        %889 = vmatpush.msra.mxu0 0.0
        %890 = vmatpush.msra.mxu0 0.0
        %891 = vmatpush.msra.mxu0 0.0
        %892 = vmatpush.msra.mxu0 0.0
        %893 = vmatpush.msra.mxu0 0.0
        %894 = vmatpush.msra.mxu0 %v517
        %895 = vmatpush.msra.mxu0 %v516
        %896 = vmatpush.msra.mxu0 %v515
        %897 = vmatpush.msra.mxu0 %v514
        %898 = vmatmul.f32.gmra.mxu0 %v755
        %v899 = vpop.f32.mrf.mxu0
        %v900 = vadd.f32 %v679, %v899
        %901 = vdwg.mxu0
        %902 = vmatpush.msra.mxu0 0.0
        %903 = vmatpush.msra.mxu0 0.0
        %904 = vmatpush.msra.mxu0 0.0
        %905 = vmatpush.msra.mxu0 0.0
        %906 = vmatpush.msra.mxu0 0.0
        %907 = vmatpush.msra.mxu0 0.0
        %908 = vmatpush.msra.mxu0 0.0
        %909 = vmatpush.msra.mxu0 0.0
        %910 = vmatpush.msra.mxu0 0.0
        %911 = vmatpush.msra.mxu0 0.0
        %912 = vmatpush.msra.mxu0 0.0
        %913 = vmatpush.msra.mxu0 0.0
        %914 = vmatpush.msra.mxu0 %v529
        %915 = vmatpush.msra.mxu0 %v528
        %916 = vmatpush.msra.mxu0 %v527
        %917 = vmatpush.msra.mxu0 %v526
        %918 = vmatmul.f32.gmra.mxu0 %v778
        %v919 = vpop.f32.mrf.mxu0
        %v920 = vadd.f32 %v702, %v919
        %921 = vdwg.mxu0
        %v922 = vmul.f32 %v820, %v920
        %v923 = vadd.f32 %v900, %v922
        %v924 = vtanh.pop %v923
        %v925 = vsub.f32 1.0, %v881
        %v926 = vmul.f32 %v925, %v924
        %v927 = vmul.f32 %v881, %v744
        %v928 = vadd.f32 %v926, %v927
        %930 = vset.pattern.permute.xlu0 0
        %931 = vperm.xlu0 %930, %v753
        %v932 = vpop.permute.xlu0 %931
        %v934 = vmul.f32 %v932, %v928
        %v935 = vsub.f32 1.0, %v753
        %937 = vset.pattern.permute.xlu0 0
        %938 = vperm.xlu0 %937, %v935
        %v939 = vpop.permute.xlu0 %938
        %v941 = vmul.f32 %v939, %v744
        %v942 = vadd.f32 %v934, %v941
        %v943 = vmul.f32 %v932, %v942
        %v945 = vrot.slane %v943, 1
        %947 = vst.msk [vmem:[%s415 + $0x1] sm:$0x1] %vm749, %v943
        %948 = vst.msk [vmem:[%s415 + $0x9] sm:$0x1] %vm749, %v945
        %s949 = scalar_lea.vmem %s432, 4
        %v950 = vld [vmem:[%s949] sm:$0x3]
        %v951 = vrot.slane %v501, 4
        %v952 = vsel %vm540, %v951, 0
        %954 = vmatpush.msra.mxu0 0.0
        %955 = vmatpush.msra.mxu0 0.0
        %956 = vmatpush.msra.mxu0 0.0
        %957 = vmatpush.msra.mxu0 0.0
        %958 = vmatpush.msra.mxu0 0.0
        %959 = vmatpush.msra.mxu0 0.0
        %960 = vmatpush.msra.mxu0 0.0
        %961 = vmatpush.msra.mxu0 0.0
        %962 = vmatpush.msra.mxu0 0.0
        %963 = vmatpush.msra.mxu0 0.0
        %964 = vmatpush.msra.mxu0 0.0
        %965 = vmatpush.msra.mxu0 0.0
        %966 = vmatpush.msra.mxu0 %v509
        %967 = vmatpush.msra.mxu0 %v508
        %968 = vmatpush.msra.mxu0 %v507
        %969 = vmatpush.msra.mxu0 %v506
        %970 = vmatmul.f32.gmra.mxu0 %v952
        %v971 = vpop.f32.mrf.mxu0
        %v972 = vadd.f32 %v538, %v971
        %973 = vdwg.mxu0
        %v975 = vsel %vm540, %v942, 0
        %977 = vmatpush.msra.mxu0 0.0
        %978 = vmatpush.msra.mxu0 0.0
        %979 = vmatpush.msra.mxu0 0.0
        %980 = vmatpush.msra.mxu0 0.0
        %981 = vmatpush.msra.mxu0 0.0
        %982 = vmatpush.msra.mxu0 0.0
        %983 = vmatpush.msra.mxu0 0.0
        %984 = vmatpush.msra.mxu0 0.0
        %985 = vmatpush.msra.mxu0 0.0
        %986 = vmatpush.msra.mxu0 0.0
        %987 = vmatpush.msra.mxu0 0.0
        %988 = vmatpush.msra.mxu0 0.0
        %989 = vmatpush.msra.mxu0 %v521
        %990 = vmatpush.msra.mxu0 %v520
        %991 = vmatpush.msra.mxu0 %v519
        %992 = vmatpush.msra.mxu0 %v518
        %993 = vmatmul.f32.gmra.mxu0 %v975
        %v994 = vpop.f32.mrf.mxu0
        %v995 = vadd.f32 0.0, %v994
        %996 = vdwg.mxu0
        %v997 = vadd.f32 %v972, %v995
        %v998 = vadd.f32 %v997, %v589
        %v999 = vxor.u32 %v998, 2147483648
        %v1000 = vmul.f32 %v999, 1.442695
        %v1001 = vpow.pop %v1000
        %v1002 = vadd.f32 %v1001, 1.0
        %v1003 = vrcp.pop %v1002
        %v1004 = vmul.f32 %v1002, %v1003
        %v1005 = vsub.f32 1.0, %v1004
        %v1006 = vmul.f32 %v1003, %v1005
        %v1007 = vadd.f32 %v1003, %v1006
        %vm1008 = vweird.f32 %v1002
        %vm1009 = vweird.f32 %v1003
        %vm1010 = vmor %vm1008, %vm1009
        %v1011 = vsel %vm1010, %v1003, %v1007
        %v1012 = vand.u32 2147483647, %v1002
        %vm1013 = vcmp.eq.f32.partialorder %v1012, 8.507059e+37
        %v1014 = vand.u32 %v1002, 2147483648
        %v1015 = vor.u32 1.1754944e-38, %v1014
        %v1016 = vsel %vm1013, %v1015, %v1011
        %v1017 = vmul.f32 1.0, %v1016
        %1018 = vmatpush.msra.mxu0 0.0
        %1019 = vmatpush.msra.mxu0 0.0
        %1020 = vmatpush.msra.mxu0 0.0
        %1021 = vmatpush.msra.mxu0 0.0
        %1022 = vmatpush.msra.mxu0 0.0
        %1023 = vmatpush.msra.mxu0 0.0
        %1024 = vmatpush.msra.mxu0 0.0
        %1025 = vmatpush.msra.mxu0 0.0
        %1026 = vmatpush.msra.mxu0 0.0
        %1027 = vmatpush.msra.mxu0 0.0
        %1028 = vmatpush.msra.mxu0 0.0
        %1029 = vmatpush.msra.mxu0 0.0
        %1030 = vmatpush.msra.mxu0 %v513
        %1031 = vmatpush.msra.mxu0 %v512
        %1032 = vmatpush.msra.mxu0 %v511
        %1033 = vmatpush.msra.mxu0 %v510
        %1034 = vmatmul.f32.gmra.mxu0 %v952
        %v1035 = vpop.f32.mrf.mxu0
        %v1036 = vadd.f32 %v612, %v1035
        %1037 = vdwg.mxu0
        %1038 = vmatpush.msra.mxu0 0.0
        %1039 = vmatpush.msra.mxu0 0.0
        %1040 = vmatpush.msra.mxu0 0.0
        %1041 = vmatpush.msra.mxu0 0.0
        %1042 = vmatpush.msra.mxu0 0.0
        %1043 = vmatpush.msra.mxu0 0.0
        %1044 = vmatpush.msra.mxu0 0.0
        %1045 = vmatpush.msra.mxu0 0.0
        %1046 = vmatpush.msra.mxu0 0.0
        %1047 = vmatpush.msra.mxu0 0.0
        %1048 = vmatpush.msra.mxu0 0.0
        %1049 = vmatpush.msra.mxu0 0.0
        %1050 = vmatpush.msra.mxu0 %v525
        %1051 = vmatpush.msra.mxu0 %v524
        %1052 = vmatpush.msra.mxu0 %v523
        %1053 = vmatpush.msra.mxu0 %v522
        %1054 = vmatmul.f32.gmra.mxu0 %v975
        %v1055 = vpop.f32.mrf.mxu0
        %v1056 = vadd.f32 0.0, %v1055
        %1057 = vdwg.mxu0
        %v1058 = vadd.f32 %v1036, %v1056
        %v1059 = vadd.f32 %v1058, %v656
        %v1060 = vxor.u32 %v1059, 2147483648
        %v1061 = vmul.f32 %v1060, 1.442695
        %v1062 = vpow.pop %v1061
        %v1063 = vadd.f32 %v1062, 1.0
        %v1064 = vrcp.pop %v1063
        %v1065 = vmul.f32 %v1063, %v1064
        %v1066 = vsub.f32 1.0, %v1065
        %v1067 = vmul.f32 %v1064, %v1066
        %v1068 = vadd.f32 %v1064, %v1067
        %vm1069 = vweird.f32 %v1063
        %vm1070 = vweird.f32 %v1064
        %vm1071 = vmor %vm1069, %vm1070
        %v1072 = vsel %vm1071, %v1064, %v1068
        %v1073 = vand.u32 2147483647, %v1063
        %vm1074 = vcmp.eq.f32.partialorder %v1073, 8.507059e+37
        %v1075 = vand.u32 %v1063, 2147483648
        %v1076 = vor.u32 1.1754944e-38, %v1075
        %v1077 = vsel %vm1074, %v1076, %v1072
        %v1078 = vmul.f32 1.0, %v1077
        %1079 = vmatpush.msra.mxu0 0.0
        %1080 = vmatpush.msra.mxu0 0.0
        %1081 = vmatpush.msra.mxu0 0.0
        %1082 = vmatpush.msra.mxu0 0.0
        %1083 = vmatpush.msra.mxu0 0.0
        %1084 = vmatpush.msra.mxu0 0.0
        %1085 = vmatpush.msra.mxu0 0.0
        %1086 = vmatpush.msra.mxu0 0.0
        %1087 = vmatpush.msra.mxu0 0.0
        %1088 = vmatpush.msra.mxu0 0.0
        %1089 = vmatpush.msra.mxu0 0.0
        %1090 = vmatpush.msra.mxu0 0.0
        %1091 = vmatpush.msra.mxu0 %v517
        %1092 = vmatpush.msra.mxu0 %v516
        %1093 = vmatpush.msra.mxu0 %v515
        %1094 = vmatpush.msra.mxu0 %v514
        %1095 = vmatmul.f32.gmra.mxu0 %v952
        %v1096 = vpop.f32.mrf.mxu0
        %v1097 = vadd.f32 %v679, %v1096
        %1098 = vdwg.mxu0
        %1099 = vmatpush.msra.mxu0 0.0
        %1100 = vmatpush.msra.mxu0 0.0
        %1101 = vmatpush.msra.mxu0 0.0
        %1102 = vmatpush.msra.mxu0 0.0
        %1103 = vmatpush.msra.mxu0 0.0
        %1104 = vmatpush.msra.mxu0 0.0
        %1105 = vmatpush.msra.mxu0 0.0
        %1106 = vmatpush.msra.mxu0 0.0
        %1107 = vmatpush.msra.mxu0 0.0
        %1108 = vmatpush.msra.mxu0 0.0
        %1109 = vmatpush.msra.mxu0 0.0
        %1110 = vmatpush.msra.mxu0 0.0
        %1111 = vmatpush.msra.mxu0 %v529
        %1112 = vmatpush.msra.mxu0 %v528
        %1113 = vmatpush.msra.mxu0 %v527
        %1114 = vmatpush.msra.mxu0 %v526
        %1115 = vmatmul.f32.gmra.mxu0 %v975
        %v1116 = vpop.f32.mrf.mxu0
        %v1117 = vadd.f32 %v702, %v1116
        %1118 = vdwg.mxu0
        %v1119 = vmul.f32 %v1017, %v1117
        %v1120 = vadd.f32 %v1097, %v1119
        %v1121 = vtanh.pop %v1120
        %v1122 = vsub.f32 1.0, %v1078
        %v1123 = vmul.f32 %v1122, %v1121
        %v1124 = vmul.f32 %v1078, %v942
        %v1125 = vadd.f32 %v1123, %v1124
        %1127 = vset.pattern.permute.xlu0 0
        %1128 = vperm.xlu0 %1127, %v950
        %v1129 = vpop.permute.xlu0 %1128
        %v1131 = vmul.f32 %v1129, %v1125
        %v1132 = vsub.f32 1.0, %v950
        %1134 = vset.pattern.permute.xlu0 0
        %1135 = vperm.xlu0 %1134, %v1132
        %v1136 = vpop.permute.xlu0 %1135
        %v1138 = vmul.f32 %v1136, %v942
        %v1139 = vadd.f32 %v1131, %v1138
        %v1140 = vmul.f32 %v1129, %v1139
        %v1142 = vrot.slane %v1140, 1
        %1144 = vst.msk [vmem:[%s415 + $0x2] sm:$0x1] %vm749, %v1140
        %1145 = vst.msk [vmem:[%s415 + $0xa] sm:$0x1] %vm749, %v1142
        %s1146 = scalar_lea.vmem %s432, 6
        %v1147 = vld [vmem:[%s1146] sm:$0x3]
        %v1148 = vrot.slane %v501, 6
        %v1149 = vsel %vm540, %v1148, 0
        %1151 = vmatpush.msra.mxu0 0.0
        %1152 = vmatpush.msra.mxu0 0.0
        %1153 = vmatpush.msra.mxu0 0.0
        %1154 = vmatpush.msra.mxu0 0.0
        %1155 = vmatpush.msra.mxu0 0.0
        %1156 = vmatpush.msra.mxu0 0.0
        %1157 = vmatpush.msra.mxu0 0.0
        %1158 = vmatpush.msra.mxu0 0.0
        %1159 = vmatpush.msra.mxu0 0.0
        %1160 = vmatpush.msra.mxu0 0.0
        %1161 = vmatpush.msra.mxu0 0.0
        %1162 = vmatpush.msra.mxu0 0.0
        %1163 = vmatpush.msra.mxu0 %v509
        %1164 = vmatpush.msra.mxu0 %v508
        %1165 = vmatpush.msra.mxu0 %v507
        %1166 = vmatpush.msra.mxu0 %v506
        %1167 = vmatmul.f32.gmra.mxu0 %v1149
        %v1168 = vpop.f32.mrf.mxu0
        %v1169 = vadd.f32 %v538, %v1168
        %1170 = vdwg.mxu0
        %v1172 = vsel %vm540, %v1139, 0
        %1174 = vmatpush.msra.mxu0 0.0
        %1175 = vmatpush.msra.mxu0 0.0
        %1176 = vmatpush.msra.mxu0 0.0
        %1177 = vmatpush.msra.mxu0 0.0
        %1178 = vmatpush.msra.mxu0 0.0
        %1179 = vmatpush.msra.mxu0 0.0
        %1180 = vmatpush.msra.mxu0 0.0
        %1181 = vmatpush.msra.mxu0 0.0
        %1182 = vmatpush.msra.mxu0 0.0
        %1183 = vmatpush.msra.mxu0 0.0
        %1184 = vmatpush.msra.mxu0 0.0
        %1185 = vmatpush.msra.mxu0 0.0
        %1186 = vmatpush.msra.mxu0 %v521
        %1187 = vmatpush.msra.mxu0 %v520
        %1188 = vmatpush.msra.mxu0 %v519
        %1189 = vmatpush.msra.mxu0 %v518
        %1190 = vmatmul.f32.gmra.mxu0 %v1172
        %v1191 = vpop.f32.mrf.mxu0
        %v1192 = vadd.f32 0.0, %v1191
        %1193 = vdwg.mxu0
        %v1194 = vadd.f32 %v1169, %v1192
        %v1195 = vadd.f32 %v1194, %v589
        %v1196 = vxor.u32 %v1195, 2147483648
        %v1197 = vmul.f32 %v1196, 1.442695
        %v1198 = vpow.pop %v1197
        %v1199 = vadd.f32 %v1198, 1.0
        %v1200 = vrcp.pop %v1199
        %v1201 = vmul.f32 %v1199, %v1200
        %v1202 = vsub.f32 1.0, %v1201
        %v1203 = vmul.f32 %v1200, %v1202
        %v1204 = vadd.f32 %v1200, %v1203
        %vm1205 = vweird.f32 %v1199
        %vm1206 = vweird.f32 %v1200
        %vm1207 = vmor %vm1205, %vm1206
        %v1208 = vsel %vm1207, %v1200, %v1204
        %v1209 = vand.u32 2147483647, %v1199
        %vm1210 = vcmp.eq.f32.partialorder %v1209, 8.507059e+37
        %v1211 = vand.u32 %v1199, 2147483648
        %v1212 = vor.u32 1.1754944e-38, %v1211
        %v1213 = vsel %vm1210, %v1212, %v1208
        %v1214 = vmul.f32 1.0, %v1213
        %1215 = vmatpush.msra.mxu0 0.0
        %1216 = vmatpush.msra.mxu0 0.0
        %1217 = vmatpush.msra.mxu0 0.0
        %1218 = vmatpush.msra.mxu0 0.0
        %1219 = vmatpush.msra.mxu0 0.0
        %1220 = vmatpush.msra.mxu0 0.0
        %1221 = vmatpush.msra.mxu0 0.0
        %1222 = vmatpush.msra.mxu0 0.0
        %1223 = vmatpush.msra.mxu0 0.0
        %1224 = vmatpush.msra.mxu0 0.0
        %1225 = vmatpush.msra.mxu0 0.0
        %1226 = vmatpush.msra.mxu0 0.0
        %1227 = vmatpush.msra.mxu0 %v513
        %1228 = vmatpush.msra.mxu0 %v512
        %1229 = vmatpush.msra.mxu0 %v511
        %1230 = vmatpush.msra.mxu0 %v510
        %1231 = vmatmul.f32.gmra.mxu0 %v1149
        %v1232 = vpop.f32.mrf.mxu0
        %v1233 = vadd.f32 %v612, %v1232
        %1234 = vdwg.mxu0
        %1235 = vmatpush.msra.mxu0 0.0
        %1236 = vmatpush.msra.mxu0 0.0
        %1237 = vmatpush.msra.mxu0 0.0
        %1238 = vmatpush.msra.mxu0 0.0
        %1239 = vmatpush.msra.mxu0 0.0
        %1240 = vmatpush.msra.mxu0 0.0
        %1241 = vmatpush.msra.mxu0 0.0
        %1242 = vmatpush.msra.mxu0 0.0
        %1243 = vmatpush.msra.mxu0 0.0
        %1244 = vmatpush.msra.mxu0 0.0
        %1245 = vmatpush.msra.mxu0 0.0
        %1246 = vmatpush.msra.mxu0 0.0
        %1247 = vmatpush.msra.mxu0 %v525
        %1248 = vmatpush.msra.mxu0 %v524
        %1249 = vmatpush.msra.mxu0 %v523
        %1250 = vmatpush.msra.mxu0 %v522
        %1251 = vmatmul.f32.gmra.mxu0 %v1172
        %v1252 = vpop.f32.mrf.mxu0
        %v1253 = vadd.f32 0.0, %v1252
        %1254 = vdwg.mxu0
        %v1255 = vadd.f32 %v1233, %v1253
        %v1256 = vadd.f32 %v1255, %v656
        %v1257 = vxor.u32 %v1256, 2147483648
        %v1258 = vmul.f32 %v1257, 1.442695
        %v1259 = vpow.pop %v1258
        %v1260 = vadd.f32 %v1259, 1.0
        %v1261 = vrcp.pop %v1260
        %v1262 = vmul.f32 %v1260, %v1261
        %v1263 = vsub.f32 1.0, %v1262
        %v1264 = vmul.f32 %v1261, %v1263
        %v1265 = vadd.f32 %v1261, %v1264
        %vm1266 = vweird.f32 %v1260
        %vm1267 = vweird.f32 %v1261
        %vm1268 = vmor %vm1266, %vm1267
        %v1269 = vsel %vm1268, %v1261, %v1265
        %v1270 = vand.u32 2147483647, %v1260
        %vm1271 = vcmp.eq.f32.partialorder %v1270, 8.507059e+37
        %v1272 = vand.u32 %v1260, 2147483648
        %v1273 = vor.u32 1.1754944e-38, %v1272
        %v1274 = vsel %vm1271, %v1273, %v1269
        %v1275 = vmul.f32 1.0, %v1274
        %1276 = vmatpush.msra.mxu0 0.0
        %1277 = vmatpush.msra.mxu0 0.0
        %1278 = vmatpush.msra.mxu0 0.0
        %1279 = vmatpush.msra.mxu0 0.0
        %1280 = vmatpush.msra.mxu0 0.0
        %1281 = vmatpush.msra.mxu0 0.0
        %1282 = vmatpush.msra.mxu0 0.0
        %1283 = vmatpush.msra.mxu0 0.0
        %1284 = vmatpush.msra.mxu0 0.0
        %1285 = vmatpush.msra.mxu0 0.0
        %1286 = vmatpush.msra.mxu0 0.0
        %1287 = vmatpush.msra.mxu0 0.0
        %1288 = vmatpush.msra.mxu0 %v517
        %1289 = vmatpush.msra.mxu0 %v516
        %1290 = vmatpush.msra.mxu0 %v515
        %1291 = vmatpush.msra.mxu0 %v514
        %1292 = vmatmul.f32.gmra.mxu0 %v1149
        %v1293 = vpop.f32.mrf.mxu0
        %v1294 = vadd.f32 %v679, %v1293
        %1295 = vdwg.mxu0
        %1296 = vmatpush.msra.mxu0 0.0
        %1297 = vmatpush.msra.mxu0 0.0
        %1298 = vmatpush.msra.mxu0 0.0
        %1299 = vmatpush.msra.mxu0 0.0
        %1300 = vmatpush.msra.mxu0 0.0
        %1301 = vmatpush.msra.mxu0 0.0
        %1302 = vmatpush.msra.mxu0 0.0
        %1303 = vmatpush.msra.mxu0 0.0
        %1304 = vmatpush.msra.mxu0 0.0
        %1305 = vmatpush.msra.mxu0 0.0
        %1306 = vmatpush.msra.mxu0 0.0
        %1307 = vmatpush.msra.mxu0 0.0
        %1308 = vmatpush.msra.mxu0 %v529
        %1309 = vmatpush.msra.mxu0 %v528
        %1310 = vmatpush.msra.mxu0 %v527
        %1311 = vmatpush.msra.mxu0 %v526
        %1312 = vmatmul.f32.gmra.mxu0 %v1172
        %v1313 = vpop.f32.mrf.mxu0
        %v1314 = vadd.f32 %v702, %v1313
        %1315 = vdwg.mxu0
        %v1316 = vmul.f32 %v1214, %v1314
        %v1317 = vadd.f32 %v1294, %v1316
        %v1318 = vtanh.pop %v1317
        %v1319 = vsub.f32 1.0, %v1275
        %v1320 = vmul.f32 %v1319, %v1318
        %v1321 = vmul.f32 %v1275, %v1139
        %v1322 = vadd.f32 %v1320, %v1321
        %1324 = vset.pattern.permute.xlu0 0
        %1325 = vperm.xlu0 %1324, %v1147
        %v1326 = vpop.permute.xlu0 %1325
        %v1328 = vmul.f32 %v1326, %v1322
        %v1329 = vsub.f32 1.0, %v1147
        %1331 = vset.pattern.permute.xlu0 0
        %1332 = vperm.xlu0 %1331, %v1329
        %v1333 = vpop.permute.xlu0 %1332
        %v1335 = vmul.f32 %v1333, %v1139
        %v1336 = vadd.f32 %v1328, %v1335
        %v1337 = vmul.f32 %v1326, %v1336
        %v1339 = vrot.slane %v1337, 1
        %1341 = vst.msk [vmem:[%s415 + $0x3] sm:$0x1] %vm749, %v1337
        %1342 = vst.msk [vmem:[%s415 + $0xb] sm:$0x1] %vm749, %v1339
        %s1343 = scalar_lea.vmem %s432, 8
        %v1344 = vld [vmem:[%s1343] sm:$0x3]
        %v1346 = vsel %vm540, %v504, 0
        %1348 = vmatpush.msra.mxu0 0.0
        %1349 = vmatpush.msra.mxu0 0.0
        %1350 = vmatpush.msra.mxu0 0.0
        %1351 = vmatpush.msra.mxu0 0.0
        %1352 = vmatpush.msra.mxu0 0.0
        %1353 = vmatpush.msra.mxu0 0.0
        %1354 = vmatpush.msra.mxu0 0.0
        %1355 = vmatpush.msra.mxu0 0.0
        %1356 = vmatpush.msra.mxu0 0.0
        %1357 = vmatpush.msra.mxu0 0.0
        %1358 = vmatpush.msra.mxu0 0.0
        %1359 = vmatpush.msra.mxu0 0.0
        %1360 = vmatpush.msra.mxu0 %v509
        %1361 = vmatpush.msra.mxu0 %v508
        %1362 = vmatpush.msra.mxu0 %v507
        %1363 = vmatpush.msra.mxu0 %v506
        %1364 = vmatmul.f32.gmra.mxu0 %v1346
        %v1365 = vpop.f32.mrf.mxu0
        %v1366 = vadd.f32 %v538, %v1365
        %1367 = vdwg.mxu0
        %v1369 = vsel %vm540, %v1336, 0
        %1371 = vmatpush.msra.mxu0 0.0
        %1372 = vmatpush.msra.mxu0 0.0
        %1373 = vmatpush.msra.mxu0 0.0
        %1374 = vmatpush.msra.mxu0 0.0
        %1375 = vmatpush.msra.mxu0 0.0
        %1376 = vmatpush.msra.mxu0 0.0
        %1377 = vmatpush.msra.mxu0 0.0
        %1378 = vmatpush.msra.mxu0 0.0
        %1379 = vmatpush.msra.mxu0 0.0
        %1380 = vmatpush.msra.mxu0 0.0
        %1381 = vmatpush.msra.mxu0 0.0
        %1382 = vmatpush.msra.mxu0 0.0
        %1383 = vmatpush.msra.mxu0 %v521
        %1384 = vmatpush.msra.mxu0 %v520
        %1385 = vmatpush.msra.mxu0 %v519
        %1386 = vmatpush.msra.mxu0 %v518
        %1387 = vmatmul.f32.gmra.mxu0 %v1369
        %v1388 = vpop.f32.mrf.mxu0
        %v1389 = vadd.f32 0.0, %v1388
        %1390 = vdwg.mxu0
        %v1391 = vadd.f32 %v1366, %v1389
        %v1392 = vadd.f32 %v1391, %v589
        %v1393 = vxor.u32 %v1392, 2147483648
        %v1394 = vmul.f32 %v1393, 1.442695
        %v1395 = vpow.pop %v1394
        %v1396 = vadd.f32 %v1395, 1.0
        %v1397 = vrcp.pop %v1396
        %v1398 = vmul.f32 %v1396, %v1397
        %v1399 = vsub.f32 1.0, %v1398
        %v1400 = vmul.f32 %v1397, %v1399
        %v1401 = vadd.f32 %v1397, %v1400
        %vm1402 = vweird.f32 %v1396
        %vm1403 = vweird.f32 %v1397
        %vm1404 = vmor %vm1402, %vm1403
        %v1405 = vsel %vm1404, %v1397, %v1401
        %v1406 = vand.u32 2147483647, %v1396
        %vm1407 = vcmp.eq.f32.partialorder %v1406, 8.507059e+37
        %v1408 = vand.u32 %v1396, 2147483648
        %v1409 = vor.u32 1.1754944e-38, %v1408
        %v1410 = vsel %vm1407, %v1409, %v1405
        %v1411 = vmul.f32 1.0, %v1410
        %1412 = vmatpush.msra.mxu0 0.0
        %1413 = vmatpush.msra.mxu0 0.0
        %1414 = vmatpush.msra.mxu0 0.0
        %1415 = vmatpush.msra.mxu0 0.0
        %1416 = vmatpush.msra.mxu0 0.0
        %1417 = vmatpush.msra.mxu0 0.0
        %1418 = vmatpush.msra.mxu0 0.0
        %1419 = vmatpush.msra.mxu0 0.0
        %1420 = vmatpush.msra.mxu0 0.0
        %1421 = vmatpush.msra.mxu0 0.0
        %1422 = vmatpush.msra.mxu0 0.0
        %1423 = vmatpush.msra.mxu0 0.0
        %1424 = vmatpush.msra.mxu0 %v513
        %1425 = vmatpush.msra.mxu0 %v512
        %1426 = vmatpush.msra.mxu0 %v511
        %1427 = vmatpush.msra.mxu0 %v510
        %1428 = vmatmul.f32.gmra.mxu0 %v1346
        %v1429 = vpop.f32.mrf.mxu0
        %v1430 = vadd.f32 %v612, %v1429
        %1431 = vdwg.mxu0
        %1432 = vmatpush.msra.mxu0 0.0
        %1433 = vmatpush.msra.mxu0 0.0
        %1434 = vmatpush.msra.mxu0 0.0
        %1435 = vmatpush.msra.mxu0 0.0
        %1436 = vmatpush.msra.mxu0 0.0
        %1437 = vmatpush.msra.mxu0 0.0
        %1438 = vmatpush.msra.mxu0 0.0
        %1439 = vmatpush.msra.mxu0 0.0
        %1440 = vmatpush.msra.mxu0 0.0
        %1441 = vmatpush.msra.mxu0 0.0
        %1442 = vmatpush.msra.mxu0 0.0
        %1443 = vmatpush.msra.mxu0 0.0
        %1444 = vmatpush.msra.mxu0 %v525
        %1445 = vmatpush.msra.mxu0 %v524
        %1446 = vmatpush.msra.mxu0 %v523
        %1447 = vmatpush.msra.mxu0 %v522
        %1448 = vmatmul.f32.gmra.mxu0 %v1369
        %v1449 = vpop.f32.mrf.mxu0
        %v1450 = vadd.f32 0.0, %v1449
        %1451 = vdwg.mxu0
        %v1452 = vadd.f32 %v1430, %v1450
        %v1453 = vadd.f32 %v1452, %v656
        %v1454 = vxor.u32 %v1453, 2147483648
        %v1455 = vmul.f32 %v1454, 1.442695
        %v1456 = vpow.pop %v1455
        %v1457 = vadd.f32 %v1456, 1.0
        %v1458 = vrcp.pop %v1457
        %v1459 = vmul.f32 %v1457, %v1458
        %v1460 = vsub.f32 1.0, %v1459
        %v1461 = vmul.f32 %v1458, %v1460
        %v1462 = vadd.f32 %v1458, %v1461
        %vm1463 = vweird.f32 %v1457
        %vm1464 = vweird.f32 %v1458
        %vm1465 = vmor %vm1463, %vm1464
        %v1466 = vsel %vm1465, %v1458, %v1462
        %v1467 = vand.u32 2147483647, %v1457
        %vm1468 = vcmp.eq.f32.partialorder %v1467, 8.507059e+37
        %v1469 = vand.u32 %v1457, 2147483648
        %v1470 = vor.u32 1.1754944e-38, %v1469
        %v1471 = vsel %vm1468, %v1470, %v1466
        %v1472 = vmul.f32 1.0, %v1471
        %1473 = vmatpush.msra.mxu0 0.0
        %1474 = vmatpush.msra.mxu0 0.0
        %1475 = vmatpush.msra.mxu0 0.0
        %1476 = vmatpush.msra.mxu0 0.0
        %1477 = vmatpush.msra.mxu0 0.0
        %1478 = vmatpush.msra.mxu0 0.0
        %1479 = vmatpush.msra.mxu0 0.0
        %1480 = vmatpush.msra.mxu0 0.0
        %1481 = vmatpush.msra.mxu0 0.0
        %1482 = vmatpush.msra.mxu0 0.0
        %1483 = vmatpush.msra.mxu0 0.0
        %1484 = vmatpush.msra.mxu0 0.0
        %1485 = vmatpush.msra.mxu0 %v517
        %1486 = vmatpush.msra.mxu0 %v516
        %1487 = vmatpush.msra.mxu0 %v515
        %1488 = vmatpush.msra.mxu0 %v514
        %1489 = vmatmul.f32.gmra.mxu0 %v1346
        %v1490 = vpop.f32.mrf.mxu0
        %v1491 = vadd.f32 %v679, %v1490
        %1492 = vdwg.mxu0
        %1493 = vmatpush.msra.mxu0 0.0
        %1494 = vmatpush.msra.mxu0 0.0
        %1495 = vmatpush.msra.mxu0 0.0
        %1496 = vmatpush.msra.mxu0 0.0
        %1497 = vmatpush.msra.mxu0 0.0
        %1498 = vmatpush.msra.mxu0 0.0
        %1499 = vmatpush.msra.mxu0 0.0
        %1500 = vmatpush.msra.mxu0 0.0
        %1501 = vmatpush.msra.mxu0 0.0
        %1502 = vmatpush.msra.mxu0 0.0
        %1503 = vmatpush.msra.mxu0 0.0
        %1504 = vmatpush.msra.mxu0 0.0
        %1505 = vmatpush.msra.mxu0 %v529
        %1506 = vmatpush.msra.mxu0 %v528
        %1507 = vmatpush.msra.mxu0 %v527
        %1508 = vmatpush.msra.mxu0 %v526
        %1509 = vmatmul.f32.gmra.mxu0 %v1369
        %v1510 = vpop.f32.mrf.mxu0
        %v1511 = vadd.f32 %v702, %v1510
        %1512 = vdwg.mxu0
        %v1513 = vmul.f32 %v1411, %v1511
        %v1514 = vadd.f32 %v1491, %v1513
        %v1515 = vtanh.pop %v1514
        %v1516 = vsub.f32 1.0, %v1472
        %v1517 = vmul.f32 %v1516, %v1515
        %v1518 = vmul.f32 %v1472, %v1336
        %v1519 = vadd.f32 %v1517, %v1518
        %1521 = vset.pattern.permute.xlu0 0
        %1522 = vperm.xlu0 %1521, %v1344
        %v1523 = vpop.permute.xlu0 %1522
        %v1525 = vmul.f32 %v1523, %v1519
        %v1526 = vsub.f32 1.0, %v1344
        %1528 = vset.pattern.permute.xlu0 0
        %1529 = vperm.xlu0 %1528, %v1526
        %v1530 = vpop.permute.xlu0 %1529
        %v1532 = vmul.f32 %v1530, %v1336
        %v1533 = vadd.f32 %v1525, %v1532
        %v1534 = vmul.f32 %v1523, %v1533
        %v1536 = vrot.slane %v1534, 1
        %1538 = vst.msk [vmem:[%s415 + $0x4] sm:$0x1] %vm749, %v1534
        %1539 = vst.msk [vmem:[%s415 + $0xc] sm:$0x1] %vm749, %v1536
        %s1540 = scalar_lea.vmem %s432, 10
        %v1541 = vld [vmem:[%s1540] sm:$0x3]
        %v1542 = vrot.slane %v504, 2
        %v1543 = vsel %vm540, %v1542, 0
        %1545 = vmatpush.msra.mxu0 0.0
        %1546 = vmatpush.msra.mxu0 0.0
        %1547 = vmatpush.msra.mxu0 0.0
        %1548 = vmatpush.msra.mxu0 0.0
        %1549 = vmatpush.msra.mxu0 0.0
        %1550 = vmatpush.msra.mxu0 0.0
        %1551 = vmatpush.msra.mxu0 0.0
        %1552 = vmatpush.msra.mxu0 0.0
        %1553 = vmatpush.msra.mxu0 0.0
        %1554 = vmatpush.msra.mxu0 0.0
        %1555 = vmatpush.msra.mxu0 0.0
        %1556 = vmatpush.msra.mxu0 0.0
        %1557 = vmatpush.msra.mxu0 %v509
        %1558 = vmatpush.msra.mxu0 %v508
        %1559 = vmatpush.msra.mxu0 %v507
        %1560 = vmatpush.msra.mxu0 %v506
        %1561 = vmatmul.f32.gmra.mxu0 %v1543
        %v1562 = vpop.f32.mrf.mxu0
        %v1563 = vadd.f32 %v538, %v1562
        %1564 = vdwg.mxu0
        %v1566 = vsel %vm540, %v1533, 0
        %1568 = vmatpush.msra.mxu0 0.0
        %1569 = vmatpush.msra.mxu0 0.0
        %1570 = vmatpush.msra.mxu0 0.0
        %1571 = vmatpush.msra.mxu0 0.0
        %1572 = vmatpush.msra.mxu0 0.0
        %1573 = vmatpush.msra.mxu0 0.0
        %1574 = vmatpush.msra.mxu0 0.0
        %1575 = vmatpush.msra.mxu0 0.0
        %1576 = vmatpush.msra.mxu0 0.0
        %1577 = vmatpush.msra.mxu0 0.0
        %1578 = vmatpush.msra.mxu0 0.0
        %1579 = vmatpush.msra.mxu0 0.0
        %1580 = vmatpush.msra.mxu0 %v521
        %1581 = vmatpush.msra.mxu0 %v520
        %1582 = vmatpush.msra.mxu0 %v519
        %1583 = vmatpush.msra.mxu0 %v518
        %1584 = vmatmul.f32.gmra.mxu0 %v1566
        %v1585 = vpop.f32.mrf.mxu0
        %v1586 = vadd.f32 0.0, %v1585
        %1587 = vdwg.mxu0
        %v1588 = vadd.f32 %v1563, %v1586
        %v1589 = vadd.f32 %v1588, %v589
        %v1590 = vxor.u32 %v1589, 2147483648
        %v1591 = vmul.f32 %v1590, 1.442695
        %v1592 = vpow.pop %v1591
        %v1593 = vadd.f32 %v1592, 1.0
        %v1594 = vrcp.pop %v1593
        %v1595 = vmul.f32 %v1593, %v1594
        %v1596 = vsub.f32 1.0, %v1595
        %v1597 = vmul.f32 %v1594, %v1596
        %v1598 = vadd.f32 %v1594, %v1597
        %vm1599 = vweird.f32 %v1593
        %vm1600 = vweird.f32 %v1594
        %vm1601 = vmor %vm1599, %vm1600
        %v1602 = vsel %vm1601, %v1594, %v1598
        %v1603 = vand.u32 2147483647, %v1593
        %vm1604 = vcmp.eq.f32.partialorder %v1603, 8.507059e+37
        %v1605 = vand.u32 %v1593, 2147483648
        %v1606 = vor.u32 1.1754944e-38, %v1605
        %v1607 = vsel %vm1604, %v1606, %v1602
        %v1608 = vmul.f32 1.0, %v1607
        %1609 = vmatpush.msra.mxu0 0.0
        %1610 = vmatpush.msra.mxu0 0.0
        %1611 = vmatpush.msra.mxu0 0.0
        %1612 = vmatpush.msra.mxu0 0.0
        %1613 = vmatpush.msra.mxu0 0.0
        %1614 = vmatpush.msra.mxu0 0.0
        %1615 = vmatpush.msra.mxu0 0.0
        %1616 = vmatpush.msra.mxu0 0.0
        %1617 = vmatpush.msra.mxu0 0.0
        %1618 = vmatpush.msra.mxu0 0.0
        %1619 = vmatpush.msra.mxu0 0.0
        %1620 = vmatpush.msra.mxu0 0.0
        %1621 = vmatpush.msra.mxu0 %v513
        %1622 = vmatpush.msra.mxu0 %v512
        %1623 = vmatpush.msra.mxu0 %v511
        %1624 = vmatpush.msra.mxu0 %v510
        %1625 = vmatmul.f32.gmra.mxu0 %v1543
        %v1626 = vpop.f32.mrf.mxu0
        %v1627 = vadd.f32 %v612, %v1626
        %1628 = vdwg.mxu0
        %1629 = vmatpush.msra.mxu0 0.0
        %1630 = vmatpush.msra.mxu0 0.0
        %1631 = vmatpush.msra.mxu0 0.0
        %1632 = vmatpush.msra.mxu0 0.0
        %1633 = vmatpush.msra.mxu0 0.0
        %1634 = vmatpush.msra.mxu0 0.0
        %1635 = vmatpush.msra.mxu0 0.0
        %1636 = vmatpush.msra.mxu0 0.0
        %1637 = vmatpush.msra.mxu0 0.0
        %1638 = vmatpush.msra.mxu0 0.0
        %1639 = vmatpush.msra.mxu0 0.0
        %1640 = vmatpush.msra.mxu0 0.0
        %1641 = vmatpush.msra.mxu0 %v525
        %1642 = vmatpush.msra.mxu0 %v524
        %1643 = vmatpush.msra.mxu0 %v523
        %1644 = vmatpush.msra.mxu0 %v522
        %1645 = vmatmul.f32.gmra.mxu0 %v1566
        %v1646 = vpop.f32.mrf.mxu0
        %v1647 = vadd.f32 0.0, %v1646
        %1648 = vdwg.mxu0
        %v1649 = vadd.f32 %v1627, %v1647
        %v1650 = vadd.f32 %v1649, %v656
        %v1651 = vxor.u32 %v1650, 2147483648
        %v1652 = vmul.f32 %v1651, 1.442695
        %v1653 = vpow.pop %v1652
        %v1654 = vadd.f32 %v1653, 1.0
        %v1655 = vrcp.pop %v1654
        %v1656 = vmul.f32 %v1654, %v1655
        %v1657 = vsub.f32 1.0, %v1656
        %v1658 = vmul.f32 %v1655, %v1657
        %v1659 = vadd.f32 %v1655, %v1658
        %vm1660 = vweird.f32 %v1654
        %vm1661 = vweird.f32 %v1655
        %vm1662 = vmor %vm1660, %vm1661
        %v1663 = vsel %vm1662, %v1655, %v1659
        %v1664 = vand.u32 2147483647, %v1654
        %vm1665 = vcmp.eq.f32.partialorder %v1664, 8.507059e+37
        %v1666 = vand.u32 %v1654, 2147483648
        %v1667 = vor.u32 1.1754944e-38, %v1666
        %v1668 = vsel %vm1665, %v1667, %v1663
        %v1669 = vmul.f32 1.0, %v1668
        %1670 = vmatpush.msra.mxu0 0.0
        %1671 = vmatpush.msra.mxu0 0.0
        %1672 = vmatpush.msra.mxu0 0.0
        %1673 = vmatpush.msra.mxu0 0.0
        %1674 = vmatpush.msra.mxu0 0.0
        %1675 = vmatpush.msra.mxu0 0.0
        %1676 = vmatpush.msra.mxu0 0.0
        %1677 = vmatpush.msra.mxu0 0.0
        %1678 = vmatpush.msra.mxu0 0.0
        %1679 = vmatpush.msra.mxu0 0.0
        %1680 = vmatpush.msra.mxu0 0.0
        %1681 = vmatpush.msra.mxu0 0.0
        %1682 = vmatpush.msra.mxu0 %v517
        %1683 = vmatpush.msra.mxu0 %v516
        %1684 = vmatpush.msra.mxu0 %v515
        %1685 = vmatpush.msra.mxu0 %v514
        %1686 = vmatmul.f32.gmra.mxu0 %v1543
        %v1687 = vpop.f32.mrf.mxu0
        %v1688 = vadd.f32 %v679, %v1687
        %1689 = vdwg.mxu0
        %1690 = vmatpush.msra.mxu0 0.0
        %1691 = vmatpush.msra.mxu0 0.0
        %1692 = vmatpush.msra.mxu0 0.0
        %1693 = vmatpush.msra.mxu0 0.0
        %1694 = vmatpush.msra.mxu0 0.0
        %1695 = vmatpush.msra.mxu0 0.0
        %1696 = vmatpush.msra.mxu0 0.0
        %1697 = vmatpush.msra.mxu0 0.0
        %1698 = vmatpush.msra.mxu0 0.0
        %1699 = vmatpush.msra.mxu0 0.0
        %1700 = vmatpush.msra.mxu0 0.0
        %1701 = vmatpush.msra.mxu0 0.0
        %1702 = vmatpush.msra.mxu0 %v529
        %1703 = vmatpush.msra.mxu0 %v528
        %1704 = vmatpush.msra.mxu0 %v527
        %1705 = vmatpush.msra.mxu0 %v526
        %1706 = vmatmul.f32.gmra.mxu0 %v1566
        %v1707 = vpop.f32.mrf.mxu0
        %v1708 = vadd.f32 %v702, %v1707
        %1709 = vdwg.mxu0
        %v1710 = vmul.f32 %v1608, %v1708
        %v1711 = vadd.f32 %v1688, %v1710
        %v1712 = vtanh.pop %v1711
        %v1713 = vsub.f32 1.0, %v1669
        %v1714 = vmul.f32 %v1713, %v1712
        %v1715 = vmul.f32 %v1669, %v1533
        %v1716 = vadd.f32 %v1714, %v1715
        %1718 = vset.pattern.permute.xlu0 0
        %1719 = vperm.xlu0 %1718, %v1541
        %v1720 = vpop.permute.xlu0 %1719
        %v1722 = vmul.f32 %v1720, %v1716
        %v1723 = vsub.f32 1.0, %v1541
        %1725 = vset.pattern.permute.xlu0 0
        %1726 = vperm.xlu0 %1725, %v1723
        %v1727 = vpop.permute.xlu0 %1726
        %v1729 = vmul.f32 %v1727, %v1533
        %v1730 = vadd.f32 %v1722, %v1729
        %v1731 = vmul.f32 %v1720, %v1730
        %v1733 = vrot.slane %v1731, 1
        %1735 = vst.msk [vmem:[%s415 + $0x5] sm:$0x1] %vm749, %v1731
        %1736 = vst.msk [vmem:[%s415 + $0xd] sm:$0x1] %vm749, %v1733
        %s1737 = scalar_lea.vmem %s432, 12
        %v1738 = vld [vmem:[%s1737] sm:$0x3]
        %v1739 = vrot.slane %v504, 4
        %v1740 = vsel %vm540, %v1739, 0
        %1742 = vmatpush.msra.mxu0 0.0
        %1743 = vmatpush.msra.mxu0 0.0
        %1744 = vmatpush.msra.mxu0 0.0
        %1745 = vmatpush.msra.mxu0 0.0
        %1746 = vmatpush.msra.mxu0 0.0
        %1747 = vmatpush.msra.mxu0 0.0
        %1748 = vmatpush.msra.mxu0 0.0
        %1749 = vmatpush.msra.mxu0 0.0
        %1750 = vmatpush.msra.mxu0 0.0
        %1751 = vmatpush.msra.mxu0 0.0
        %1752 = vmatpush.msra.mxu0 0.0
        %1753 = vmatpush.msra.mxu0 0.0
        %1754 = vmatpush.msra.mxu0 %v509
        %1755 = vmatpush.msra.mxu0 %v508
        %1756 = vmatpush.msra.mxu0 %v507
        %1757 = vmatpush.msra.mxu0 %v506
        %1758 = vmatmul.f32.gmra.mxu0 %v1740
        %v1759 = vpop.f32.mrf.mxu0
        %v1760 = vadd.f32 %v538, %v1759
        %1761 = vdwg.mxu0
        %v1763 = vsel %vm540, %v1730, 0
        %1765 = vmatpush.msra.mxu0 0.0
        %1766 = vmatpush.msra.mxu0 0.0
        %1767 = vmatpush.msra.mxu0 0.0
        %1768 = vmatpush.msra.mxu0 0.0
        %1769 = vmatpush.msra.mxu0 0.0
        %1770 = vmatpush.msra.mxu0 0.0
        %1771 = vmatpush.msra.mxu0 0.0
        %1772 = vmatpush.msra.mxu0 0.0
        %1773 = vmatpush.msra.mxu0 0.0
        %1774 = vmatpush.msra.mxu0 0.0
        %1775 = vmatpush.msra.mxu0 0.0
        %1776 = vmatpush.msra.mxu0 0.0
        %1777 = vmatpush.msra.mxu0 %v521
        %1778 = vmatpush.msra.mxu0 %v520
        %1779 = vmatpush.msra.mxu0 %v519
        %1780 = vmatpush.msra.mxu0 %v518
        %1781 = vmatmul.f32.gmra.mxu0 %v1763
        %v1782 = vpop.f32.mrf.mxu0
        %v1783 = vadd.f32 0.0, %v1782
        %1784 = vdwg.mxu0
        %v1785 = vadd.f32 %v1760, %v1783
        %v1786 = vadd.f32 %v1785, %v589
        %v1787 = vxor.u32 %v1786, 2147483648
        %v1788 = vmul.f32 %v1787, 1.442695
        %v1789 = vpow.pop %v1788
        %v1790 = vadd.f32 %v1789, 1.0
        %v1791 = vrcp.pop %v1790
        %v1792 = vmul.f32 %v1790, %v1791
        %v1793 = vsub.f32 1.0, %v1792
        %v1794 = vmul.f32 %v1791, %v1793
        %v1795 = vadd.f32 %v1791, %v1794
        %vm1796 = vweird.f32 %v1790
        %vm1797 = vweird.f32 %v1791
        %vm1798 = vmor %vm1796, %vm1797
        %v1799 = vsel %vm1798, %v1791, %v1795
        %v1800 = vand.u32 2147483647, %v1790
        %vm1801 = vcmp.eq.f32.partialorder %v1800, 8.507059e+37
        %v1802 = vand.u32 %v1790, 2147483648
        %v1803 = vor.u32 1.1754944e-38, %v1802
        %v1804 = vsel %vm1801, %v1803, %v1799
        %v1805 = vmul.f32 1.0, %v1804
        %1806 = vmatpush.msra.mxu0 0.0
        %1807 = vmatpush.msra.mxu0 0.0
        %1808 = vmatpush.msra.mxu0 0.0
        %1809 = vmatpush.msra.mxu0 0.0
        %1810 = vmatpush.msra.mxu0 0.0
        %1811 = vmatpush.msra.mxu0 0.0
        %1812 = vmatpush.msra.mxu0 0.0
        %1813 = vmatpush.msra.mxu0 0.0
        %1814 = vmatpush.msra.mxu0 0.0
        %1815 = vmatpush.msra.mxu0 0.0
        %1816 = vmatpush.msra.mxu0 0.0
        %1817 = vmatpush.msra.mxu0 0.0
        %1818 = vmatpush.msra.mxu0 %v513
        %1819 = vmatpush.msra.mxu0 %v512
        %1820 = vmatpush.msra.mxu0 %v511
        %1821 = vmatpush.msra.mxu0 %v510
        %1822 = vmatmul.f32.gmra.mxu0 %v1740
        %v1823 = vpop.f32.mrf.mxu0
        %v1824 = vadd.f32 %v612, %v1823
        %1825 = vdwg.mxu0
        %1826 = vmatpush.msra.mxu0 0.0
        %1827 = vmatpush.msra.mxu0 0.0
        %1828 = vmatpush.msra.mxu0 0.0
        %1829 = vmatpush.msra.mxu0 0.0
        %1830 = vmatpush.msra.mxu0 0.0
        %1831 = vmatpush.msra.mxu0 0.0
        %1832 = vmatpush.msra.mxu0 0.0
        %1833 = vmatpush.msra.mxu0 0.0
        %1834 = vmatpush.msra.mxu0 0.0
        %1835 = vmatpush.msra.mxu0 0.0
        %1836 = vmatpush.msra.mxu0 0.0
        %1837 = vmatpush.msra.mxu0 0.0
        %1838 = vmatpush.msra.mxu0 %v525
        %1839 = vmatpush.msra.mxu0 %v524
        %1840 = vmatpush.msra.mxu0 %v523
        %1841 = vmatpush.msra.mxu0 %v522
        %1842 = vmatmul.f32.gmra.mxu0 %v1763
        %v1843 = vpop.f32.mrf.mxu0
        %v1844 = vadd.f32 0.0, %v1843
        %1845 = vdwg.mxu0
        %v1846 = vadd.f32 %v1824, %v1844
        %v1847 = vadd.f32 %v1846, %v656
        %v1848 = vxor.u32 %v1847, 2147483648
        %v1849 = vmul.f32 %v1848, 1.442695
        %v1850 = vpow.pop %v1849
        %v1851 = vadd.f32 %v1850, 1.0
        %v1852 = vrcp.pop %v1851
        %v1853 = vmul.f32 %v1851, %v1852
        %v1854 = vsub.f32 1.0, %v1853
        %v1855 = vmul.f32 %v1852, %v1854
        %v1856 = vadd.f32 %v1852, %v1855
        %vm1857 = vweird.f32 %v1851
        %vm1858 = vweird.f32 %v1852
        %vm1859 = vmor %vm1857, %vm1858
        %v1860 = vsel %vm1859, %v1852, %v1856
        %v1861 = vand.u32 2147483647, %v1851
        %vm1862 = vcmp.eq.f32.partialorder %v1861, 8.507059e+37
        %v1863 = vand.u32 %v1851, 2147483648
        %v1864 = vor.u32 1.1754944e-38, %v1863
        %v1865 = vsel %vm1862, %v1864, %v1860
        %v1866 = vmul.f32 1.0, %v1865
        %1867 = vmatpush.msra.mxu0 0.0
        %1868 = vmatpush.msra.mxu0 0.0
        %1869 = vmatpush.msra.mxu0 0.0
        %1870 = vmatpush.msra.mxu0 0.0
        %1871 = vmatpush.msra.mxu0 0.0
        %1872 = vmatpush.msra.mxu0 0.0
        %1873 = vmatpush.msra.mxu0 0.0
        %1874 = vmatpush.msra.mxu0 0.0
        %1875 = vmatpush.msra.mxu0 0.0
        %1876 = vmatpush.msra.mxu0 0.0
        %1877 = vmatpush.msra.mxu0 0.0
        %1878 = vmatpush.msra.mxu0 0.0
        %1879 = vmatpush.msra.mxu0 %v517
        %1880 = vmatpush.msra.mxu0 %v516
        %1881 = vmatpush.msra.mxu0 %v515
        %1882 = vmatpush.msra.mxu0 %v514
        %1883 = vmatmul.f32.gmra.mxu0 %v1740
        %v1884 = vpop.f32.mrf.mxu0
        %v1885 = vadd.f32 %v679, %v1884
        %1886 = vdwg.mxu0
        %1887 = vmatpush.msra.mxu0 0.0
        %1888 = vmatpush.msra.mxu0 0.0
        %1889 = vmatpush.msra.mxu0 0.0
        %1890 = vmatpush.msra.mxu0 0.0
        %1891 = vmatpush.msra.mxu0 0.0
        %1892 = vmatpush.msra.mxu0 0.0
        %1893 = vmatpush.msra.mxu0 0.0
        %1894 = vmatpush.msra.mxu0 0.0
        %1895 = vmatpush.msra.mxu0 0.0
        %1896 = vmatpush.msra.mxu0 0.0
        %1897 = vmatpush.msra.mxu0 0.0
        %1898 = vmatpush.msra.mxu0 0.0
        %1899 = vmatpush.msra.mxu0 %v529
        %1900 = vmatpush.msra.mxu0 %v528
        %1901 = vmatpush.msra.mxu0 %v527
        %1902 = vmatpush.msra.mxu0 %v526
        %1903 = vmatmul.f32.gmra.mxu0 %v1763
        %v1904 = vpop.f32.mrf.mxu0
        %v1905 = vadd.f32 %v702, %v1904
        %1906 = vdwg.mxu0
        %v1907 = vmul.f32 %v1805, %v1905
        %v1908 = vadd.f32 %v1885, %v1907
        %v1909 = vtanh.pop %v1908
        %v1910 = vsub.f32 1.0, %v1866
        %v1911 = vmul.f32 %v1910, %v1909
        %v1912 = vmul.f32 %v1866, %v1730
        %v1913 = vadd.f32 %v1911, %v1912
        %1915 = vset.pattern.permute.xlu0 0
        %1916 = vperm.xlu0 %1915, %v1738
        %v1917 = vpop.permute.xlu0 %1916
        %v1919 = vmul.f32 %v1917, %v1913
        %v1920 = vsub.f32 1.0, %v1738
        %1922 = vset.pattern.permute.xlu0 0
        %1923 = vperm.xlu0 %1922, %v1920
        %v1924 = vpop.permute.xlu0 %1923
        %v1926 = vmul.f32 %v1924, %v1730
        %v1927 = vadd.f32 %v1919, %v1926
        %v1928 = vmul.f32 %v1917, %v1927
        %v1930 = vrot.slane %v1928, 1
        %1932 = vst.msk [vmem:[%s415 + $0x6] sm:$0x1] %vm749, %v1928
        %1933 = vst.msk [vmem:[%s415 + $0xe] sm:$0x1] %vm749, %v1930
        %s1934 = scalar_lea.vmem %s432, 14
        %v1935 = vld [vmem:[%s1934] sm:$0x3]
        %v1936 = vrot.slane %v504, 6
        %v1937 = vsel %vm540, %v1936, 0
        %1939 = vmatpush.msra.mxu0 0.0
        %1940 = vmatpush.msra.mxu0 0.0
        %1941 = vmatpush.msra.mxu0 0.0
        %1942 = vmatpush.msra.mxu0 0.0
        %1943 = vmatpush.msra.mxu0 0.0
        %1944 = vmatpush.msra.mxu0 0.0
        %1945 = vmatpush.msra.mxu0 0.0
        %1946 = vmatpush.msra.mxu0 0.0
        %1947 = vmatpush.msra.mxu0 0.0
        %1948 = vmatpush.msra.mxu0 0.0
        %1949 = vmatpush.msra.mxu0 0.0
        %1950 = vmatpush.msra.mxu0 0.0
        %1951 = vmatpush.msra.mxu0 %v509
        %1952 = vmatpush.msra.mxu0 %v508
        %1953 = vmatpush.msra.mxu0 %v507
        %1954 = vmatpush.msra.mxu0 %v506
        %1955 = vmatmul.f32.gmra.mxu0 %v1937
        %v1956 = vpop.f32.mrf.mxu0
        %v1957 = vadd.f32 %v538, %v1956
        %1958 = vdwg.mxu0
        %v1960 = vsel %vm540, %v1927, 0
        %1962 = vmatpush.msra.mxu0 0.0
        %1963 = vmatpush.msra.mxu0 0.0
        %1964 = vmatpush.msra.mxu0 0.0
        %1965 = vmatpush.msra.mxu0 0.0
        %1966 = vmatpush.msra.mxu0 0.0
        %1967 = vmatpush.msra.mxu0 0.0
        %1968 = vmatpush.msra.mxu0 0.0
        %1969 = vmatpush.msra.mxu0 0.0
        %1970 = vmatpush.msra.mxu0 0.0
        %1971 = vmatpush.msra.mxu0 0.0
        %1972 = vmatpush.msra.mxu0 0.0
        %1973 = vmatpush.msra.mxu0 0.0
        %1974 = vmatpush.msra.mxu0 %v521
        %1975 = vmatpush.msra.mxu0 %v520
        %1976 = vmatpush.msra.mxu0 %v519
        %1977 = vmatpush.msra.mxu0 %v518
        %1978 = vmatmul.f32.gmra.mxu0 %v1960
        %v1979 = vpop.f32.mrf.mxu0
        %v1980 = vadd.f32 0.0, %v1979
        %1981 = vdwg.mxu0
        %v1982 = vadd.f32 %v1957, %v1980
        %v1983 = vadd.f32 %v1982, %v589
        %v1984 = vxor.u32 %v1983, 2147483648
        %v1985 = vmul.f32 %v1984, 1.442695
        %v1986 = vpow.pop %v1985
        %v1987 = vadd.f32 %v1986, 1.0
        %v1988 = vrcp.pop %v1987
        %v1989 = vmul.f32 %v1987, %v1988
        %v1990 = vsub.f32 1.0, %v1989
        %v1991 = vmul.f32 %v1988, %v1990
        %v1992 = vadd.f32 %v1988, %v1991
        %vm1993 = vweird.f32 %v1987
        %vm1994 = vweird.f32 %v1988
        %vm1995 = vmor %vm1993, %vm1994
        %v1996 = vsel %vm1995, %v1988, %v1992
        %v1997 = vand.u32 2147483647, %v1987
        %vm1998 = vcmp.eq.f32.partialorder %v1997, 8.507059e+37
        %v1999 = vand.u32 %v1987, 2147483648
        %v2000 = vor.u32 1.1754944e-38, %v1999
        %v2001 = vsel %vm1998, %v2000, %v1996
        %v2002 = vmul.f32 1.0, %v2001
        %2003 = vmatpush.msra.mxu0 0.0
        %2004 = vmatpush.msra.mxu0 0.0
        %2005 = vmatpush.msra.mxu0 0.0
        %2006 = vmatpush.msra.mxu0 0.0
        %2007 = vmatpush.msra.mxu0 0.0
        %2008 = vmatpush.msra.mxu0 0.0
        %2009 = vmatpush.msra.mxu0 0.0
        %2010 = vmatpush.msra.mxu0 0.0
        %2011 = vmatpush.msra.mxu0 0.0
        %2012 = vmatpush.msra.mxu0 0.0
        %2013 = vmatpush.msra.mxu0 0.0
        %2014 = vmatpush.msra.mxu0 0.0
        %2015 = vmatpush.msra.mxu0 %v513
        %2016 = vmatpush.msra.mxu0 %v512
        %2017 = vmatpush.msra.mxu0 %v511
        %2018 = vmatpush.msra.mxu0 %v510
        %2019 = vmatmul.f32.gmra.mxu0 %v1937
        %v2020 = vpop.f32.mrf.mxu0
        %v2021 = vadd.f32 %v612, %v2020
        %2022 = vdwg.mxu0
        %2023 = vmatpush.msra.mxu0 0.0
        %2024 = vmatpush.msra.mxu0 0.0
        %2025 = vmatpush.msra.mxu0 0.0
        %2026 = vmatpush.msra.mxu0 0.0
        %2027 = vmatpush.msra.mxu0 0.0
        %2028 = vmatpush.msra.mxu0 0.0
        %2029 = vmatpush.msra.mxu0 0.0
        %2030 = vmatpush.msra.mxu0 0.0
        %2031 = vmatpush.msra.mxu0 0.0
        %2032 = vmatpush.msra.mxu0 0.0
        %2033 = vmatpush.msra.mxu0 0.0
        %2034 = vmatpush.msra.mxu0 0.0
        %2035 = vmatpush.msra.mxu0 %v525
        %2036 = vmatpush.msra.mxu0 %v524
        %2037 = vmatpush.msra.mxu0 %v523
        %2038 = vmatpush.msra.mxu0 %v522
        %2039 = vmatmul.f32.gmra.mxu0 %v1960
        %v2040 = vpop.f32.mrf.mxu0
        %v2041 = vadd.f32 0.0, %v2040
        %2042 = vdwg.mxu0
        %v2043 = vadd.f32 %v2021, %v2041
        %v2044 = vadd.f32 %v2043, %v656
        %v2045 = vxor.u32 %v2044, 2147483648
        %v2046 = vmul.f32 %v2045, 1.442695
        %v2047 = vpow.pop %v2046
        %v2048 = vadd.f32 %v2047, 1.0
        %v2049 = vrcp.pop %v2048
        %v2050 = vmul.f32 %v2048, %v2049
        %v2051 = vsub.f32 1.0, %v2050
        %v2052 = vmul.f32 %v2049, %v2051
        %v2053 = vadd.f32 %v2049, %v2052
        %vm2054 = vweird.f32 %v2048
        %vm2055 = vweird.f32 %v2049
        %vm2056 = vmor %vm2054, %vm2055
        %v2057 = vsel %vm2056, %v2049, %v2053
        %v2058 = vand.u32 2147483647, %v2048
        %vm2059 = vcmp.eq.f32.partialorder %v2058, 8.507059e+37
        %v2060 = vand.u32 %v2048, 2147483648
        %v2061 = vor.u32 1.1754944e-38, %v2060
        %v2062 = vsel %vm2059, %v2061, %v2057
        %v2063 = vmul.f32 1.0, %v2062
        %2064 = vmatpush.msra.mxu0 0.0
        %2065 = vmatpush.msra.mxu0 0.0
        %2066 = vmatpush.msra.mxu0 0.0
        %2067 = vmatpush.msra.mxu0 0.0
        %2068 = vmatpush.msra.mxu0 0.0
        %2069 = vmatpush.msra.mxu0 0.0
        %2070 = vmatpush.msra.mxu0 0.0
        %2071 = vmatpush.msra.mxu0 0.0
        %2072 = vmatpush.msra.mxu0 0.0
        %2073 = vmatpush.msra.mxu0 0.0
        %2074 = vmatpush.msra.mxu0 0.0
        %2075 = vmatpush.msra.mxu0 0.0
        %2076 = vmatpush.msra.mxu0 %v517
        %2077 = vmatpush.msra.mxu0 %v516
        %2078 = vmatpush.msra.mxu0 %v515
        %2079 = vmatpush.msra.mxu0 %v514
        %2080 = vmatmul.f32.gmra.mxu0 %v1937
        %v2081 = vpop.f32.mrf.mxu0
        %v2082 = vadd.f32 %v679, %v2081
        %2083 = vdwg.mxu0
        %2084 = vmatpush.msra.mxu0 0.0
        %2085 = vmatpush.msra.mxu0 0.0
        %2086 = vmatpush.msra.mxu0 0.0
        %2087 = vmatpush.msra.mxu0 0.0
        %2088 = vmatpush.msra.mxu0 0.0
        %2089 = vmatpush.msra.mxu0 0.0
        %2090 = vmatpush.msra.mxu0 0.0
        %2091 = vmatpush.msra.mxu0 0.0
        %2092 = vmatpush.msra.mxu0 0.0
        %2093 = vmatpush.msra.mxu0 0.0
        %2094 = vmatpush.msra.mxu0 0.0
        %2095 = vmatpush.msra.mxu0 0.0
        %2096 = vmatpush.msra.mxu0 %v529
        %2097 = vmatpush.msra.mxu0 %v528
        %2098 = vmatpush.msra.mxu0 %v527
        %2099 = vmatpush.msra.mxu0 %v526
        %2100 = vmatmul.f32.gmra.mxu0 %v1960
        %v2101 = vpop.f32.mrf.mxu0
        %v2102 = vadd.f32 %v702, %v2101
        %2103 = vdwg.mxu0
        %v2104 = vmul.f32 %v2002, %v2102
        %v2105 = vadd.f32 %v2082, %v2104
        %v2106 = vtanh.pop %v2105
        %v2107 = vsub.f32 1.0, %v2063
        %v2108 = vmul.f32 %v2107, %v2106
        %v2109 = vmul.f32 %v2063, %v1927
        %v2110 = vadd.f32 %v2108, %v2109
        %2112 = vset.pattern.permute.xlu0 0
        %2113 = vperm.xlu0 %2112, %v1935
        %v2114 = vpop.permute.xlu0 %2113
        %v2116 = vmul.f32 %v2114, %v2110
        %v2117 = vsub.f32 1.0, %v1935
        %2119 = vset.pattern.permute.xlu0 0
        %2120 = vperm.xlu0 %2119, %v2117
        %v2121 = vpop.permute.xlu0 %2120
        %v2123 = vmul.f32 %v2121, %v1927
        %v2124 = vadd.f32 %v2116, %v2123
        %v2125 = vmul.f32 %v2114, %v2124
        %v2127 = vrot.slane %v2125, 1
        %2129 = vst.msk [vmem:[%s415 + $0x7] sm:$0x1] %vm749, %v2125
        %2130 = vst.msk [vmem:[%s415 + $0xf] sm:$0x1] %vm749, %v2127
        %vm2131 = vcmask 254976
        %2132 = vst.msk [vmem:[%s422] sm:$0x3] %vm2131, %v2124
        %s2133 = sand.u32 %s219, 1
        %s2134 = scalar_lea.sflag [#allocation4], %s2133
        %s2135 = sand.u32 %s219, 1
        %s2136 = smul.addr %s2135, 16
        %s2137 = scalar_lea.vmem [#allocation5], %s2136
        %s2138 = sand.u32 %s245, 1
        %s2139 = scalar_lea.sflag [#allocation7], %s2138
        %s2140 = sand.u32 %s245, 1
        %s2141 = smul.addr %s2140, 2
        %s2142 = scalar_lea.vmem [#allocation6], %s2141
        // Predicated region
        $region53: #{tpu_custom_call.1} parent=47 // pred_check
          %p2143 = pneg %p229
        $region54: #{tpu_custom_call.1} parent=47 // pred_check_branch
          %2145 = sbr.rel (%p2143) target = $region56
        $region55: #{tpu_custom_call.1} parent=47 // pred_region
          %2147 = vsyncadd %s2134, 0
          %s2148 = smul.addr %s29, 2
          %s2149 = smul.addr %s2148, 8
          %s2150 = scalar_lea.hbm %s7, %s2149
          %s2151 = sshll.u32 %s2137, 4
          %s2152 = int_to_ptr.vmem [resolvable:$true] %s2151
          %s2153 = sshll.u32 %s2150, 4
          %s2154 = int_to_ptr.hbm [resolvable:$true] %s2153
          %2159 = dma.vmem_to_hbm [thread:$0]  %s2152, 256, %s2154, %s2134, 128, 128, 8
        $region56: #{tpu_custom_call.1} parent=47 // pred_fallthru
          _
        // Predicated region
        $region57: #{tpu_custom_call.1} parent=47 // pred_check
          %p2160 = pneg %p255
        $region58: #{tpu_custom_call.1} parent=47 // pred_check_branch
          %2162 = sbr.rel (%p2160) target = $region60
        $region59: #{tpu_custom_call.1} parent=47 // pred_region
          %2164 = vsyncadd %s2139, 0
          %s2165 = smul.addr %s29, 2
          %s2166 = scalar_lea.hbm %s8, %s2165
          %s2168 = sshll.u32 %s2142, 4
          %s2169 = int_to_ptr.vmem [resolvable:$true] %s2168
          %s2170 = sshll.u32 %s2166, 4
          %s2171 = int_to_ptr.hbm [resolvable:$true] %s2170
          %2173 = dma.vmem_to_hbm [thread:$0]  %s2169, 32, %s2171, %s2139
        $region60: #{tpu_custom_call.1} parent=47 // pred_fallthru
          _
      $region48: #{tpu_custom_call.1} parent=5 // pred_fallthru
        _
      %p2174 = scmp.le.s32.totalorder 2, %s24
      // Predicated region
      $region61: #{tpu_custom_call.1} parent=5 // pred_check
        %p2175 = pneg %p2174
      $region62: #{tpu_custom_call.1} parent=5 // pred_check_branch
        %2177 = sbr.rel (%p2175) target = $region64
      $region63: #{tpu_custom_call.1} parent=5 // pred_region
        %s2178 = ssub.s32 %s24, 2
        // Predicated region
        $region65: #{tpu_custom_call.1} parent=63 // pred_check
          %p2179 = pneg %p235
        $region66: #{tpu_custom_call.1} parent=63 // pred_check_branch
          %2181 = sbr.rel (%p2179) target = $region68
        $region67: #{tpu_custom_call.1} parent=63 // pred_region
          %s2182 = sand.u32 %s220, 1
          %s2183 = scalar_lea.sflag [#allocation4], %s2182
          %s2184 = sand.u32 %s220, 1
          %s2185 = smul.addr %s2184, 16
          %s2186 = scalar_lea.vmem [#allocation5], %s2185
          %2188 = dma.done %s2183, 256
        $region68: #{tpu_custom_call.1} parent=63 // pred_fallthru
          _
        // Predicated region
        $region69: #{tpu_custom_call.1} parent=63 // pred_check
          %p2189 = pneg %p261
        $region70: #{tpu_custom_call.1} parent=63 // pred_check_branch
          %2191 = sbr.rel (%p2189) target = $region72
        $region71: #{tpu_custom_call.1} parent=63 // pred_region
          %s2192 = sand.u32 %s246, 1
          %s2193 = scalar_lea.sflag [#allocation7], %s2192
          %s2194 = sand.u32 %s246, 1
          %s2195 = smul.addr %s2194, 2
          %s2196 = scalar_lea.vmem [#allocation6], %s2195
          %2198 = dma.done %s2193, 32
        $region72: #{tpu_custom_call.1} parent=63 // pred_fallthru
          _
      $region64: #{tpu_custom_call.1} parent=5 // pred_fallthru
        _
    $region6: #{tpu_custom_call.1} parent=1 // loop_footer
      %s28 = sadd.s32 1, %s24
    $region7: #{tpu_custom_call.1} parent=1 // loop_footer_branch
      %23 = sbr.rel target = $region3
    $region8: #{tpu_custom_call.1} parent=1 // loop_exit
      _
    %2199 = vsyncpa [#allocation3], 1
    %s2200 = scalar_lea.sflag [#allocation3], 1
    %2201 = vsyncpa %s2200, 1
    %2202 = vsyncpa [#allocation4], 1
    %s2203 = scalar_lea.sflag [#allocation4], 1
    %2204 = vsyncpa %s2203, 1
    %2205 = vsyncpa [#allocation7], 1
    %s2206 = scalar_lea.sflag [#allocation7], 1
    %2207 = vsyncpa %s2206, 1

</llo_original>
